<compile_context>
chip_gen: v5e
topology: v5e:2x2
jax: 0.10.0
libtpu: 0.0.40
codegen_flags: <defaults>
</compile_context>

<pallas_src>
import numpy as np
import jax
import jax.numpy as jnp
from jax.experimental import pallas as pl
from jax.experimental.pallas import tpu as pltpu

B_TILE = 8     # batch tile: f32 sublane multiple; grid axis is "parallel" over tiles
LANE = 128
_BN_EPS = 1e-5
_STD = 0.1


def _round_up(v, m):
    return ((v + m - 1) // m) * m


# ------------------------------ fused kernel ------------------------------- #

def _fsra_kernel(xp_ref, stem_w_ref, stem_b_ref, w1cat_ref, b1_ref, fb1_ref,
                 w2_ref, b2_ref, preds_ref, feats_ref, fused_ref):
    """One batch tile of the whole SimpleFSRA forward; all intermediates stay in VMEM.

    xp_ref:     (4, Q, Bt, Kp)  bf16  region-major patchified input (K zero-padded)
    stem_w_ref: (5, Kp, C)      bf16  patchify-conv ("backbone") weight, replicated 5x
    stem_b_ref: (1, 1, C)       f32
    w1cat_ref:  (5, C, 2H)      bf16  [..., :H] head-k first Linear (BN folded),
                                      [..., H:] k-th chunk of the fusion Linear
    b1_ref:     (5, 1, H)       f32
    fb1_ref:    (1, H)          f32
    w2_ref:     (6, H, NCp)     bf16  5 head classifiers + final classifier
    b2_ref:     (6, 1, NCp)     f32
    """
    R, Q = xp_ref.shape[0], xp_ref.shape[1]
    H = fused_ref.shape[-1]

    # ---- AdaptiveAvgPool2d((2,2)) / ((1,1)) commuted through the linear stem --------
    # Region-major layout: each region is a contiguous major-axis block, so pooling is
    # unrolled VPU adds; the global pool is the mean of the 4 equal-count region means.
    rsum = xp_ref[:, 0].astype(jnp.float32)                       # (4, Bt, Kp)
    for q in range(1, Q):
        rsum = rsum + xp_ref[:, q].astype(jnp.float32)
    regions = rsum * (1.0 / Q)                                    # (4, Bt, Kp)
    gsum = regions[0:1]
    for r in range(1, R):
        gsum = gsum + regions[r:r + 1]
    pooled = jnp.concatenate([gsum * (1.0 / R), regions], axis=0)  # (5, Bt, Kp)

    # ---- backbone stem (patchify conv == Linear) applied to the pooled patches ------
    feats = jnp.einsum("kbn,knc->kbc",
                       pooled.astype(stem_w_ref.dtype), stem_w_ref[...],
                       preferred_element_type=jnp.float32) + stem_b_ref[...]
    feats_ref[...] = feats                                        # (5, Bt, C)

    # ---- first Linear of the 5 heads + the 5 fusion chunks, one batched einsum ------
    hcat = jnp.einsum("kbc,kch->kbh",
                      feats.astype(w1cat_ref.dtype), w1cat_ref[...],
                      preferred_element_type=jnp.float32)         # (5, Bt, 2H)
    h_heads = jnp.maximum(hcat[:, :, :H] + b1_ref[...], 0.0)      # (5, Bt, H)
    fsum = hcat[0, :, H:]
    for k in range(1, 5):
        fsum = fsum + hcat[k, :, H:]
    h_fused = jnp.maximum(fsum + fb1_ref[...], 0.0)               # (Bt, H)
    fused_ref[...] = h_fused

    # ---- all 6 classifier second Linears, one batched einsum ------------------------
    h6 = jnp.concatenate([h_heads, h_fused[None]], axis=0)        # (6, Bt, H)
    preds_ref[...] = jnp.einsum("kbh,khn->kbn",
                                h6.astype(w2_ref.dtype), w2_ref[...],
                                preferred_element_type=jnp.float32) + b2_ref[...]


# ------------------------------ glue / wrapper ------------------------------ #

def simple_fsra_forward(x, params):
    """x: (B, 3, H, W) float32 NCHW, matching the PyTorch module (eval mode)."""
    B, Cin, Himg, Wimg = x.shape
    p = params["patch"]
    C = params["backbone_dim"]
    H = params["hidden"]
    nc = params["num_classes"]
    ncp = params["nc_pad"]
    Kp = params["k_pad"]
    k_real = Cin * p * p
    Hp, Wp = Himg // p, Wimg // p
    # TODO(synk): odd feature maps need real AdaptiveAvgPool floor/ceil (overlapping) bins.
    assert Hp % 2 == 0 and Wp % 2 == 0, "2x2 regional pooling assumes an even feature map"
    h2, w2 = Hp // 2, Wp // 2
    Q = h2 * w2
    B_pad = _round_up(max(B, B_TILE), B_TILE)

    # bf16 BEFORE the layout shuffle so the transpose moves half the bytes.
    xb = x.astype(jnp.bfloat16)
    if B_pad != B:
        xb = jnp.pad(xb, ((0, B_pad - B), (0, 0), (0, 0), (0, 0)))
    # Patchify into region-major order (region, local patch, batch, Cin*p*p); pad K to 128.
    xp = xb.reshape(B_pad, Cin, 2, h2, p, 2, w2, p)
    xp = xp.transpose(2, 5, 3, 6, 0, 1, 4, 7)        # (i, j, hl, wl, b, c, ph, pw)
    xp = xp.reshape(4, Q, B_pad, k_real)
    if Kp != k_real:
        xp = jnp.pad(xp, ((0, 0), (0, 0), (0, 0), (0, Kp - k_real)))

    grid = (B_pad // B_TILE,)
    full = lambda shape: pl.BlockSpec(shape, lambda i: (0,) * len(shape))

    preds, feats, fused = pl.pallas_call(
        _fsra_kernel,
        out_shape=(
            jax.ShapeDtypeStruct((6, B_pad, ncp), jnp.float32),   # lane-dense logits slab
            jax.ShapeDtypeStruct((5, B_pad, C), jnp.float32),     # [global, r0..r3] feats
            jax.ShapeDtypeStruct((B_pad, H), jnp.float32),        # fused features
        ),
        grid=grid,
        in_specs=[
            pl.BlockSpec((4, Q, B_TILE, Kp), lambda i: (0, 0, i, 0)),  # xp: batch-tiled
            full((5, Kp, C)),        # stem_w (resident across batch tiles)
            full((1, 1, C)),         # stem_b
            full((5, C, 2 * H)),     # w1cat
            full((5, 1, H)),         # b1 (heads)
            full((1, H)),            # b1 (fusion)
            full((6, H, ncp)),       # w2 (5 heads + final)
            full((6, 1, ncp)),       # b2
        ],
        out_specs=(
            pl.BlockSpec((6, B_TILE, ncp), lambda i: (0, i, 0)),
            pl.BlockSpec((5, B_TILE, C), lambda i: (0, i, 0)),
            pl.BlockSpec((B_TILE, H), lambda i: (i, 0)),
        ),
        compiler_params=pltpu.CompilerParams(
            dimension_semantics=("parallel",),      # 2nd TensorCore on v7x; no-op v5e/v6e
            vmem_limit_bytes=32 * 1024 * 1024,
        ),
    )(xp, params["stem_w5"], params["stem_b"], params["w1cat"], params["b1_all"],
      params["fb1"], params["w2_all6"], params["b2_all6"])

    predictions = [preds[k, :B, :nc] for k in range(6)]            # global, r0..r3, final
    features = [feats[k, :B, :] for k in range(5)] + [fused[:B]]   # global, r0..r3, fused
    return predictions, features


# --------------------------- parameter construction ------------------------ #

def _folded_linear_bn(key, din, dout):
    """Linear(din,dout) -> BatchNorm1d(dout) (eval, init stats) folded into one affine."""
    kw, kb = jax.random.split(key)
    w = jax.random.normal(kw, (din, dout), jnp.float32) * _STD
    b = jax.random.normal(kb, (dout,), jnp.float32) * _STD
    scale = 1.0 / np.sqrt(1.0 + _BN_EPS)          # gamma=1, beta=0, mean=0, var=1
    return (w * scale).astype(jnp.bfloat16), (b * scale).astype(jnp.float32)


def _linear(key, din, dout, dout_pad):
    kw, kb = jax.random.split(key)
    w = jax.random.normal(kw, (din, dout), jnp.float32) * _STD
    b = jax.random.normal(kb, (dout,), jnp.float32) * _STD
    wp = jnp.zeros((din, dout_pad), jnp.float32).at[:, :dout].set(w).astype(jnp.bfloat16)
    bp = jnp.zeros((dout_pad,), jnp.float32).at[:dout].set(b)
    return wp, bp


def build_params(key, *, num_classes, backbone_dim, patch, hidden, cin):
    C, H = backbone_dim, hidden
    k_real = cin * patch * patch
    k_pad = _round_up(k_real, LANE)
    nc_pad = _round_up(num_classes, LANE)
    keys = jax.random.split(key, 13)

    # Backbone stem: patchify conv (kernel=stride=patch) expressed as a Linear.
    # TODO(synk): stands in for resnet18_backbone; a full ResNet-18 is out of scope here.
    kw, kb = jax.random.split(keys[0])
    sw = jax.random.normal(kw, (k_real, C), jnp.float32) * _STD
    sb = jax.random.normal(kb, (C,), jnp.float32) * _STD
    sw_p = jnp.zeros((k_pad, C), jnp.float32).at[:k_real, :].set(sw).astype(jnp.bfloat16)
    stem_w5 = jnp.broadcast_to(sw_p[None], (5, k_pad, C))   # replicated for batched einsum
    stem_b = sb.reshape(1, 1, C)

    # 5 classifier heads (global + 4 regions): Linear -> BN -> ReLU -> Dropout -> Linear.
    w1s, b1s, w2s, b2s = [], [], [], []
    for k in range(5):
        w1, b1 = _folded_linear_bn(keys[1 + k], C, H)
        w2, b2 = _linear(keys[6 + k], H, num_classes, nc_pad)
        w1s.append(w1)
        b1s.append(b1.reshape(1, H))
        w2s.append(w2)
        b2s.append(b2.reshape(1, nc_pad))

    # Feature fusion Linear(5C -> H) (+ folded BN) and the final classifier.
    fw1, fb1 = _folded_linear_bn(keys[11], 5 * C, H)
    fw1_chunks = fw1.reshape(5, C, H)                 # chunk k multiplies feats[k]
    fw2, fb2 = _linear(keys[12], H, num_classes, nc_pad)

    w1_all = jnp.stack(w1s)                                    # (5, C, H)    bf16
    w1cat = jnp.concatenate([w1_all, fw1_chunks], axis=2)      # (5, C, 2H)   bf16
    b1_all = jnp.stack(b1s)                                    # (5, 1, H)    f32
    w2_all6 = jnp.stack(w2s + [fw2])                           # (6, H, NCp)  bf16
    b2_all6 = jnp.stack(b2s + [fb2.reshape(1, nc_pad)])        # (6, 1, NCp)  f32

    return {
        "patch": patch, "backbone_dim": C, "hidden": H,
        "num_classes": num_classes, "nc_pad": nc_pad, "k_pad": k_pad,
        "stem_w5": stem_w5, "stem_b": stem_b,
        "w1cat": w1cat, "b1_all": b1_all, "fb1": fb1.reshape(1, H),
        "w2_all6": w2_all6, "b2_all6": b2_all6,
    }


# ------------------------------ pure-JAX reference -------------------------- #

def reference_forward(x, params):
    """Un-commuted reference (f32 math on the same folded/bf16 parameters)."""
    B, Cin, Himg, Wimg = x.shape
    p = params["patch"]
    C = params["backbone_dim"]
    H = params["hidden"]
    nc = params["num_classes"]
    k_real = Cin * p * p
    Hp, Wp = Himg // p, Wimg // p
    h2, w2 = Hp // 2, Wp // 2

    xp = (x.reshape(B, Cin, Hp, p, Wp, p).transpose(0, 2, 4, 1, 3, 5)
           .reshape(B, Hp, Wp, k_real))
    stem_w = params["stem_w5"][0, :k_real].astype(jnp.float32)
    stem_b = params["stem_b"].astype(jnp.float32).reshape(C)
    fmap = xp @ stem_w + stem_b                               # "backbone" output

    gfeat = fmap.mean(axis=(1, 2))
    rfeats = [fmap[:, i * h2:(i + 1) * h2, j * w2:(j + 1) * w2, :].mean(axis=(1, 2))
              for i in range(2) for j in range(2)]
    feats = [gfeat] + rfeats

    w1cat = params["w1cat"].astype(jnp.float32)
    b1 = params["b1_all"].astype(jnp.float32)
    fb1 = params["fb1"].astype(jnp.float32)
    w2 = params["w2_all6"].astype(jnp.float32)
    b2 = params["b2_all6"].astype(jnp.float32)

    preds = []
    fuse_pre = fb1
    for k in range(5):
        hk = jnp.maximum(feats[k] @ w1cat[k, :, :H] + b1[k], 0.0)
        preds.append((hk @ w2[k] + b2[k])[:, :nc])
        fuse_pre = fuse_pre + feats[k] @ w1cat[k, :, H:]
    fh = jnp.maximum(fuse_pre, 0.0)
    preds.append((fh @ w2[5] + b2[5])[:, :nc])
    return preds, feats + [fh]


# --------------------------------- main ------------------------------------ #

if __name__ == "__main__":
    key = jax.random.PRNGKey(0)
    kp, kx = jax.random.split(key)

    # Small shapes consistent with the module (it hardcodes hidden=512 in every head).
    num_classes = 10
    backbone_dim = 128     # lane-aligned stand-in for resnet18's 512
    patch = 4              # 16x16 input -> 4x4 feature map (even, like the real 8x8)
    hidden = 512
    Cin = 3
    B, Himg, Wimg = 2, 16, 16

    params = build_params(kp, num_classes=num_classes, backbone_dim=backbone_dim,
                          patch=patch, hidden=hidden, cin=Cin)
    x = jax.random.normal(kx, (B, Cin, Himg, Wimg), jnp.float32)

    fwd = jax.jit(lambda xx: simple_fsra_forward(xx, params))
    predictions, features = fwd(x)
    jax.block_until_ready(predictions)
    jax.block_until_ready(features)

    assert len(predictions) == 6 and len(features) == 6
    assert all(pr.shape == (B, num_classes) for pr in predictions)
    assert features[0].shape == (B, backbone_dim)
    assert all(features[1 + r].shape == (B, backbone_dim) for r in range(4))
    assert features[-1].shape == (B, hidden)

    ref_preds, ref_feats = reference_forward(x, params)
    for got, want in zip(predictions, ref_preds):
        np.testing.assert_allclose(np.asarray(got), np.asarray(want), atol=3e-2, rtol=3e-2)
    for got, want in zip(features, ref_feats):
        np.testing.assert_allclose(np.asarray(got), np.asarray(want), atol=3e-2, rtol=3e-2)

    print("KERNEL_OK")
</pallas_src>

<mosaic_0001>
module attributes {stable_mosaic.version = 11 : i64} {
  func.func @_fsra_kernel(%arg0: i32, %arg1: memref<4x4x8x128xbf16, #tpu.memory_space<vmem>>, %arg2: memref<5x128x128xbf16, #tpu.memory_space<vmem>>, %arg3: memref<1x1x128xf32, #tpu.memory_space<vmem>>, %arg4: memref<5x128x1024xbf16, #tpu.memory_space<vmem>>, %arg5: memref<5x1x512xf32, #tpu.memory_space<vmem>>, %arg6: memref<1x512xf32, #tpu.memory_space<vmem>>, %arg7: memref<6x512x128xbf16, #tpu.memory_space<vmem>>, %arg8: memref<6x1x128xf32, #tpu.memory_space<vmem>>, %arg9: memref<6x8x128xf32, #tpu.memory_space<vmem>>, %arg10: memref<5x8x128xf32, #tpu.memory_space<vmem>>, %arg11: memref<8x512xf32, #tpu.memory_space<vmem>>) attributes {dimension_semantics = [#tpu.dimension_semantics<parallel>], iteration_bounds = array<i64: 1>, scalar_prefetch = 0 : i64, scratch_operands = 0 : i64, tpu.core_type = #tpu.core_type<tc>, window_params = [{transform_indices = @transform_0, window_bounds = array<i64: 4, 4, 8, 128>}, {pipeline_mode = #tpu.pipeline_mode<synchronous>, transform_indices = @transform_1, window_bounds = array<i64: 5, 128, 128>}, {pipeline_mode = #tpu.pipeline_mode<synchronous>, transform_indices = @transform_2, window_bounds = array<i64: 1, 1, 128>}, {pipeline_mode = #tpu.pipeline_mode<synchronous>, transform_indices = @transform_3, window_bounds = array<i64: 5, 128, 1024>}, {pipeline_mode = #tpu.pipeline_mode<synchronous>, transform_indices = @transform_4, window_bounds = array<i64: 5, 1, 512>}, {pipeline_mode = #tpu.pipeline_mode<synchronous>, transform_indices = @transform_5, window_bounds = array<i64: 1, 512>}, {pipeline_mode = #tpu.pipeline_mode<synchronous>, transform_indices = @transform_6, window_bounds = array<i64: 6, 512, 128>}, {pipeline_mode = #tpu.pipeline_mode<synchronous>, transform_indices = @transform_7, window_bounds = array<i64: 6, 1, 128>}, {transform_indices = @transform_8, window_bounds = array<i64: 6, 8, 128>}, {transform_indices = @transform_9, window_bounds = array<i64: 5, 8, 128>}, {transform_indices = @transform_10, window_bounds = array<i64: 8, 512>}]} {
    %c0 = arith.constant 0 : index
    %c0_0 = arith.constant 0 : index
    %c0_1 = arith.constant 0 : index
    %c0_2 = arith.constant 0 : index
    %0 = vector.load %arg1[%c0, %c0_0, %c0_1, %c0_2] : memref<4x4x8x128xbf16, #tpu.memory_space<vmem>>, vector<4x1x8x128xbf16>
    %1 = vector.shape_cast %0 : vector<4x1x8x128xbf16> to vector<4x8x128xbf16>
    %2 = arith.extf %1 : vector<4x8x128xbf16> to vector<4x8x128xf32>
    %c0_3 = arith.constant 0 : index
    %c1 = arith.constant 1 : index
    %c0_4 = arith.constant 0 : index
    %c0_5 = arith.constant 0 : index
    %3 = vector.load %arg1[%c0_3, %c1, %c0_4, %c0_5] : memref<4x4x8x128xbf16, #tpu.memory_space<vmem>>, vector<4x1x8x128xbf16>
    %4 = vector.shape_cast %3 : vector<4x1x8x128xbf16> to vector<4x8x128xbf16>
    %5 = arith.extf %4 : vector<4x8x128xbf16> to vector<4x8x128xf32>
    %6 = arith.addf %2, %5 : vector<4x8x128xf32>
    %c0_6 = arith.constant 0 : index
    %c2 = arith.constant 2 : index
    %c0_7 = arith.constant 0 : index
    %c0_8 = arith.constant 0 : index
    %7 = vector.load %arg1[%c0_6, %c2, %c0_7, %c0_8] : memref<4x4x8x128xbf16, #tpu.memory_space<vmem>>, vector<4x1x8x128xbf16>
    %8 = vector.shape_cast %7 : vector<4x1x8x128xbf16> to vector<4x8x128xbf16>
    %9 = arith.extf %8 : vector<4x8x128xbf16> to vector<4x8x128xf32>
    %10 = arith.addf %6, %9 : vector<4x8x128xf32>
    %c0_9 = arith.constant 0 : index
    %c3 = arith.constant 3 : index
    %c0_10 = arith.constant 0 : index
    %c0_11 = arith.constant 0 : index
    %11 = vector.load %arg1[%c0_9, %c3, %c0_10, %c0_11] : memref<4x4x8x128xbf16, #tpu.memory_space<vmem>>, vector<4x1x8x128xbf16>
    %12 = vector.shape_cast %11 : vector<4x1x8x128xbf16> to vector<4x8x128xbf16>
    %13 = arith.extf %12 : vector<4x8x128xbf16> to vector<4x8x128xf32>
    %14 = arith.addf %10, %13 : vector<4x8x128xf32>
    %cst = arith.constant 2.500000e-01 : f32
    %15 = vector.broadcast %cst : f32 to vector<4x8x128xf32>
    %16 = arith.mulf %14, %15 : vector<4x8x128xf32>
    %17 = vector.extract_strided_slice %16 {offsets = [0, 0, 0], sizes = [1, 8, 128], strides = [1, 1, 1]} : vector<4x8x128xf32> to vector<1x8x128xf32>
    %18 = vector.extract_strided_slice %16 {offsets = [1, 0, 0], sizes = [1, 8, 128], strides = [1, 1, 1]} : vector<4x8x128xf32> to vector<1x8x128xf32>
    %19 = arith.addf %17, %18 : vector<1x8x128xf32>
    %20 = vector.extract_strided_slice %16 {offsets = [2, 0, 0], sizes = [1, 8, 128], strides = [1, 1, 1]} : vector<4x8x128xf32> to vector<1x8x128xf32>
    %21 = arith.addf %19, %20 : vector<1x8x128xf32>
    %22 = vector.extract_strided_slice %16 {offsets = [3, 0, 0], sizes = [1, 8, 128], strides = [1, 1, 1]} : vector<4x8x128xf32> to vector<1x8x128xf32>
    %23 = arith.addf %21, %22 : vector<1x8x128xf32>
    %cst_12 = arith.constant 2.500000e-01 : f32
    %24 = vector.broadcast %cst_12 : f32 to vector<1x8x128xf32>
    %25 = arith.mulf %23, %24 : vector<1x8x128xf32>
    %26 = tpu.concatenate %25, %16 in 0 : vector<1x8x128xf32>, vector<4x8x128xf32> -> vector<5x8x128xf32>
    %27 = arith.truncf %26 : vector<5x8x128xf32> to vector<5x8x128xbf16>
    %c0_13 = arith.constant 0 : index
    %c0_14 = arith.constant 0 : index
    %c0_15 = arith.constant 0 : index
    %28 = vector.load %arg2[%c0_13, %c0_14, %c0_15] : memref<5x128x128xbf16, #tpu.memory_space<vmem>>, vector<5x128x128xbf16>
    "tpu.trace_start"() <{level = 10 : i32, message = "kbn,knc->kbc"}> : () -> ()
    %cst_16 = arith.constant dense<0.000000e+00> : vector<5x8x128xf32>
    %29 = tpu.matmul %27, %28, %cst_16 {dimension_numbers = #tpu.dot_dimension_numbers<[2], [1], [1], [2], [0, 0, 0, 1, 1, 2], [0], [0]>} : vector<5x8x128xbf16>, vector<5x128x128xbf16>, vector<5x8x128xf32> -> vector<5x8x128xf32>
    "tpu.trace_stop"() : () -> ()
    %c0_17 = arith.constant 0 : index
    %c0_18 = arith.constant 0 : index
    %c0_19 = arith.constant 0 : index
    %30 = vector.load %arg3[%c0_17, %c0_18, %c0_19] : memref<1x1x128xf32, #tpu.memory_space<vmem>>, vector<1x1x128xf32>
    %31 = vector.broadcast %30 : vector<1x1x128xf32> to vector<5x8x128xf32>
    %32 = arith.addf %29, %31 : vector<5x8x128xf32>
    %c0_20 = arith.constant 0 : index
    %c0_21 = arith.constant 0 : index
    %c0_22 = arith.constant 0 : index
    %33 = vector.load %arg10[%c0_20, %c0_21, %c0_22] : memref<5x8x128xf32, #tpu.memory_space<vmem>>, vector<5x8x128xf32>
    tpu.vector_store %arg10[%c0_20, %c0_21, %c0_22], %32 {strides = array<i32>} : memref<5x8x128xf32, #tpu.memory_space<vmem>>, vector<5x8x128xf32>,
    %34 = arith.truncf %32 : vector<5x8x128xf32> to vector<5x8x128xbf16>
    %c0_23 = arith.constant 0 : index
    %c0_24 = arith.constant 0 : index
    %c0_25 = arith.constant 0 : index
    %35 = vector.load %arg4[%c0_23, %c0_24, %c0_25] : memref<5x128x1024xbf16, #tpu.memory_space<vmem>>, vector<5x128x1024xbf16>
    "tpu.trace_start"() <{level = 10 : i32, message = "kbc,kch->kbh"}> : () -> ()
    %cst_26 = arith.constant dense<0.000000e+00> : vector<5x8x1024xf32>
    %36 = tpu.matmul %34, %35, %cst_26 {dimension_numbers = #tpu.dot_dimension_numbers<[2], [1], [1], [2], [0, 0, 0, 1, 1, 2], [0], [0]>} : vector<5x8x128xbf16>, vector<5x128x1024xbf16>, vector<5x8x1024xf32> -> vector<5x8x1024xf32>
    "tpu.trace_stop"() : () -> ()
    %37 = vector.extract_strided_slice %36 {offsets = [0, 0, 0], sizes = [5, 8, 512], strides = [1, 1, 1]} : vector<5x8x1024xf32> to vector<5x8x512xf32>
    %c0_27 = arith.constant 0 : index
    %c0_28 = arith.constant 0 : index
    %c0_29 = arith.constant 0 : index
    %38 = vector.load %arg5[%c0_27, %c0_28, %c0_29] : memref<5x1x512xf32, #tpu.memory_space<vmem>>, vector<5x1x512xf32>
    %39 = vector.broadcast %38 : vector<5x1x512xf32> to vector<5x8x512xf32>
    %40 = arith.addf %37, %39 : vector<5x8x512xf32>
    %cst_30 = arith.constant 0.000000e+00 : f32
    %41 = vector.broadcast %cst_30 : f32 to vector<5x8x512xf32>
    %42 = arith.maximumf %40, %41 : vector<5x8x512xf32>
    %43 = vector.extract_strided_slice %36 {offsets = [0, 0, 512], sizes = [1, 8, 512], strides = [1, 1, 1]} : vector<5x8x1024xf32> to vector<1x8x512xf32>
    %44 = vector.shape_cast %43 : vector<1x8x512xf32> to vector<8x512xf32>
    %45 = vector.extract_strided_slice %36 {offsets = [1, 0, 512], sizes = [1, 8, 512], strides = [1, 1, 1]} : vector<5x8x1024xf32> to vector<1x8x512xf32>
    %46 = vector.shape_cast %45 : vector<1x8x512xf32> to vector<8x512xf32>
    %47 = arith.addf %44, %46 : vector<8x512xf32>
    %48 = vector.extract_strided_slice %36 {offsets = [2, 0, 512], sizes = [1, 8, 512], strides = [1, 1, 1]} : vector<5x8x1024xf32> to vector<1x8x512xf32>
    %49 = vector.shape_cast %48 : vector<1x8x512xf32> to vector<8x512xf32>
    %50 = arith.addf %47, %49 : vector<8x512xf32>
    %51 = vector.extract_strided_slice %36 {offsets = [3, 0, 512], sizes = [1, 8, 512], strides = [1, 1, 1]} : vector<5x8x1024xf32> to vector<1x8x512xf32>
    %52 = vector.shape_cast %51 : vector<1x8x512xf32> to vector<8x512xf32>
    %53 = arith.addf %50, %52 : vector<8x512xf32>
    %54 = vector.extract_strided_slice %36 {offsets = [4, 0, 512], sizes = [1, 8, 512], strides = [1, 1, 1]} : vector<5x8x1024xf32> to vector<1x8x512xf32>
    %55 = vector.shape_cast %54 : vector<1x8x512xf32> to vector<8x512xf32>
    %56 = arith.addf %53, %55 : vector<8x512xf32>
    %c0_31 = arith.constant 0 : index
    %c0_32 = arith.constant 0 : index
    %57 = vector.load %arg6[%c0_31, %c0_32] : memref<1x512xf32, #tpu.memory_space<vmem>>, vector<1x512xf32>
    %58 = vector.broadcast %57 : vector<1x512xf32> to vector<8x512xf32>
    %59 = arith.addf %56, %58 : vector<8x512xf32>
    %cst_33 = arith.constant 0.000000e+00 : f32
    %60 = vector.broadcast %cst_33 : f32 to vector<8x512xf32>
    %61 = arith.maximumf %59, %60 : vector<8x512xf32>
    %c0_34 = arith.constant 0 : index
    %c0_35 = arith.constant 0 : index
    %62 = vector.load %arg11[%c0_34, %c0_35] : memref<8x512xf32, #tpu.memory_space<vmem>>, vector<8x512xf32>
    tpu.vector_store %arg11[%c0_34, %c0_35], %61 {strides = array<i32>} : memref<8x512xf32, #tpu.memory_space<vmem>>, vector<8x512xf32>,
    %63 = vector.shape_cast %61 : vector<8x512xf32> to vector<1x8x512xf32>
    %64 = tpu.concatenate %42, %63 in 0 : vector<5x8x512xf32>, vector<1x8x512xf32> -> vector<6x8x512xf32>
    %65 = arith.truncf %64 : vector<6x8x512xf32> to vector<6x8x512xbf16>
    %c0_36 = arith.constant 0 : index
    %c0_37 = arith.constant 0 : index
    %c0_38 = arith.constant 0 : index
    %66 = vector.load %arg7[%c0_36, %c0_37, %c0_38] : memref<6x512x128xbf16, #tpu.memory_space<vmem>>, vector<6x512x128xbf16>
    "tpu.trace_start"() <{level = 10 : i32, message = "kbh,khn->kbn"}> : () -> ()
    %cst_39 = arith.constant dense<0.000000e+00> : vector<6x8x128xf32>
    %67 = tpu.matmul %65, %66, %cst_39 {dimension_numbers = #tpu.dot_dimension_numbers<[2], [1], [1], [2], [0, 0, 0, 1, 1, 2], [0], [0]>} : vector<6x8x512xbf16>, vector<6x512x128xbf16>, vector<6x8x128xf32> -> vector<6x8x128xf32>
    "tpu.trace_stop"() : () -> ()
    %c0_40 = arith.constant 0 : index
    %c0_41 = arith.constant 0 : index
    %c0_42 = arith.constant 0 : index
    %68 = vector.load %arg8[%c0_40, %c0_41, %c0_42] : memref<6x1x128xf32, #tpu.memory_space<vmem>>, vector<6x1x128xf32>
    %69 = vector.broadcast %68 : vector<6x1x128xf32> to vector<6x8x128xf32>
    %70 = arith.addf %67, %69 : vector<6x8x128xf32>
    %c0_43 = arith.constant 0 : index
    %c0_44 = arith.constant 0 : index
    %c0_45 = arith.constant 0 : index
    %71 = vector.load %arg9[%c0_43, %c0_44, %c0_45] : memref<6x8x128xf32, #tpu.memory_space<vmem>>, vector<6x8x128xf32>
    tpu.vector_store %arg9[%c0_43, %c0_44, %c0_45], %70 {strides = array<i32>} : memref<6x8x128xf32, #tpu.memory_space<vmem>>, vector<6x8x128xf32>,
    return
  }
  func.func @transform_0(%arg0: i32) -> (i32, i32, i32, i32) {
    %c0_i32 = arith.constant 0 : i32
    %c0_i32_0 = arith.constant 0 : i32
    %c0_i32_1 = arith.constant 0 : i32
    %c0_i32_2 = arith.constant 0 : i32
    return %c0_i32, %c0_i32_0, %arg0, %c0_i32_1 : i32, i32, i32, i32
  }
  func.func @transform_1(%arg0: i32) -> (i32, i32, i32) {
    %c0_i32 = arith.constant 0 : i32
    %c0_i32_0 = arith.constant 0 : i32
    %c0_i32_1 = arith.constant 0 : i32
    %c0_i32_2 = arith.constant 0 : i32
    return %c0_i32, %c0_i32_0, %c0_i32_1 : i32, i32, i32
  }
  func.func @transform_2(%arg0: i32) -> (i32, i32, i32) {
    %c0_i32 = arith.constant 0 : i32
    %c0_i32_0 = arith.constant 0 : i32
    %c0_i32_1 = arith.constant 0 : i32
    %c0_i32_2 = arith.constant 0 : i32
    return %c0_i32, %c0_i32_0, %c0_i32_1 : i32, i32, i32
  }
  func.func @transform_3(%arg0: i32) -> (i32, i32, i32) {
    %c0_i32 = arith.constant 0 : i32
    %c0_i32_0 = arith.constant 0 : i32
    %c0_i32_1 = arith.constant 0 : i32
    %c0_i32_2 = arith.constant 0 : i32
    return %c0_i32, %c0_i32_0, %c0_i32_1 : i32, i32, i32
  }
  func.func @transform_4(%arg0: i32) -> (i32, i32, i32) {
    %c0_i32 = arith.constant 0 : i32
    %c0_i32_0 = arith.constant 0 : i32
    %c0_i32_1 = arith.constant 0 : i32
    %c0_i32_2 = arith.constant 0 : i32
    return %c0_i32, %c0_i32_0, %c0_i32_1 : i32, i32, i32
  }
  func.func @transform_5(%arg0: i32) -> (i32, i32) {
    %c0_i32 = arith.constant 0 : i32
    %c0_i32_0 = arith.constant 0 : i32
    %c0_i32_1 = arith.constant 0 : i32
    return %c0_i32, %c0_i32_0 : i32, i32
  }
  func.func @transform_6(%arg0: i32) -> (i32, i32, i32) {
    %c0_i32 = arith.constant 0 : i32
    %c0_i32_0 = arith.constant 0 : i32
    %c0_i32_1 = arith.constant 0 : i32
    %c0_i32_2 = arith.constant 0 : i32
    return %c0_i32, %c0_i32_0, %c0_i32_1 : i32, i32, i32
  }
  func.func @transform_7(%arg0: i32) -> (i32, i32, i32) {
    %c0_i32 = arith.constant 0 : i32
    %c0_i32_0 = arith.constant 0 : i32
    %c0_i32_1 = arith.constant 0 : i32
    %c0_i32_2 = arith.constant 0 : i32
    return %c0_i32, %c0_i32_0, %c0_i32_1 : i32, i32, i32
  }
  func.func @transform_8(%arg0: i32) -> (i32, i32, i32) {
    %c0_i32 = arith.constant 0 : i32
    %c0_i32_0 = arith.constant 0 : i32
    %c0_i32_1 = arith.constant 0 : i32
    return %c0_i32, %arg0, %c0_i32_0 : i32, i32, i32
  }
  func.func @transform_9(%arg0: i32) -> (i32, i32, i32) {
    %c0_i32 = arith.constant 0 : i32
    %c0_i32_0 = arith.constant 0 : i32
    %c0_i32_1 = arith.constant 0 : i32
    return %c0_i32, %arg0, %c0_i32_0 : i32, i32, i32
  }
  func.func @transform_10(%arg0: i32) -> (i32, i32) {
    %c0_i32 = arith.constant 0 : i32
    %c0_i32_0 = arith.constant 0 : i32
    return %arg0, %c0_i32 : i32, i32
  }
}

</mosaic_0001>

<llo_original>
// kernel: _lambda_.1
$region0: #{_lambda_.1}
  #allocation0 [shape = 'u32[]', space=smem, size = 0x4, offset = 0x4, fixed_abs, tag = 'smem constant byte address 0x4 - core index']
  #allocation1 [shape = 'u32[72,128]{1,0:T(1,128)}', space=vmem, size = 0x9000, scoped, tag = 'internal scratch']
  %s0 = inlined_call_operand.vmem [shape: bf16[4,4,8,128], index: 0, kind: input, shape index: {}]
  %s1 = inlined_call_operand.hbm [shape: bf16[5,128,128], index: 1, kind: input, shape index: {}]
  %s2 = inlined_call_operand.vmem [shape: f32[1,1,128], index: 2, kind: input, shape index: {}]
  %s3 = inlined_call_operand.vmem [shape: bf16[5,128,1024], index: 3, kind: input, shape index: {}]
  %s4 = inlined_call_operand.vmem [shape: f32[5,1,512], index: 4, kind: input, shape index: {}]
  %s5 = inlined_call_operand.vmem [shape: f32[1,512], index: 5, kind: input, shape index: {}]
  %s6 = inlined_call_operand.hbm [shape: bf16[6,512,128], index: 6, kind: input, shape index: {}]
  %s7 = inlined_call_operand.vmem [shape: f32[6,1,128], index: 7, kind: input, shape index: {}]
  %s8 = inlined_call_operand.vmem [shape: f32[6,8,128], index: 8, kind: output, shape index: {0}]
  %s9 = inlined_call_operand.vmem [shape: f32[5,8,128], index: 9, kind: output, shape index: {1}]
  %s10 = inlined_call_operand.vmem [shape: f32[8,512], index: 10, kind: output, shape index: {2}]
  %11 = xla_tuple %s8, %s9, %s10
  %s12 = sld [smem:[#allocation0]]
  $region66: #{_lambda_.1} parent=0
    _
  %s14 = ssub.s32 1, %s12
  %s15 = scalar_select 0, %s14, %s12
  $region1: #{_lambda_.1} parent=0
    #allocation2 [shape = 'u8[163840]{0}', space=vmem, size = 0x28000, scoped, tag = 'input window, operand 1, single buffered']
    #allocation3 [shape = 's32[1]{0}', space=sflag, size = 0x4, scoped, tag = 'scoped memory for _lambda_.1']
    #allocation4 [shape = 'u8[786432]{0}', space=vmem, size = 0xc0000, scoped, tag = 'input window, operand 6, single buffered']
    #allocation5 [shape = 's32[1]{0}', space=sflag, size = 0x4, scoped, tag = 'scoped memory for _lambda_.1']
    %16 = vsyncpa [#allocation3], 0
    %17 = vsyncpa [#allocation5], 0
    // Predicated region
    $region2: #{_lambda_.1} parent=1 // pred_check
      _
    $region3: #{_lambda_.1} parent=1 // pred_check_branch
      %19 = sbr.rel (0) target = $region5
    $region4: #{_lambda_.1} parent=1 // pred_region
      _
    $region5: #{_lambda_.1} parent=1 // pred_fallthru
      _
    // Predicated region
    $region6: #{_lambda_.1} parent=1 // pred_check
      _
    $region7: #{_lambda_.1} parent=1 // pred_check_branch
      %21 = sbr.rel (0) target = $region9
    $region8: #{_lambda_.1} parent=1 // pred_region
      %23 = vsyncadd [#allocation3], 0
      %s24 = sshll.u32 %s1, 4
      %s25 = int_to_ptr.hbm [resolvable:$true] %s24
      %s26 = sshll.u32 [#allocation2], 4
      %s27 = int_to_ptr.vmem [resolvable:$true] %s26
      %32 = dma.hbm_to_vmem [thread:$0]  %s25, 5120, %s27, [#allocation3], 64, 64, 4
    $region9: #{_lambda_.1} parent=1 // pred_fallthru
      _
    // Predicated region
    $region10: #{_lambda_.1} parent=1 // pred_check
      _
    $region11: #{_lambda_.1} parent=1 // pred_check_branch
      %34 = sbr.rel (0) target = $region13
    $region12: #{_lambda_.1} parent=1 // pred_region
      _
    $region13: #{_lambda_.1} parent=1 // pred_fallthru
      _
    // Predicated region
    $region14: #{_lambda_.1} parent=1 // pred_check
      _
    $region15: #{_lambda_.1} parent=1 // pred_check_branch
      %36 = sbr.rel (0) target = $region17
    $region16: #{_lambda_.1} parent=1 // pred_region
      _
    $region17: #{_lambda_.1} parent=1 // pred_fallthru
      _
    // Predicated region
    $region18: #{_lambda_.1} parent=1 // pred_check
      _
    $region19: #{_lambda_.1} parent=1 // pred_check_branch
      %38 = sbr.rel (0) target = $region21
    $region20: #{_lambda_.1} parent=1 // pred_region
      _
    $region21: #{_lambda_.1} parent=1 // pred_fallthru
      _
    // Predicated region
    $region22: #{_lambda_.1} parent=1 // pred_check
      _
    $region23: #{_lambda_.1} parent=1 // pred_check_branch
      %40 = sbr.rel (0) target = $region25
    $region24: #{_lambda_.1} parent=1 // pred_region
      _
    $region25: #{_lambda_.1} parent=1 // pred_fallthru
      _
    // Predicated region
    $region26: #{_lambda_.1} parent=1 // pred_check
      _
    $region27: #{_lambda_.1} parent=1 // pred_check_branch
      %42 = sbr.rel (0) target = $region29
    $region28: #{_lambda_.1} parent=1 // pred_region
      %44 = vsyncadd [#allocation5], 0
      %s45 = sshll.u32 %s6, 4
      %s46 = int_to_ptr.hbm [resolvable:$true] %s45
      %s47 = sshll.u32 [#allocation4], 4
      %s48 = int_to_ptr.vmem [resolvable:$true] %s47
      %53 = dma.hbm_to_vmem [thread:$0]  %s46, 24576, %s48, [#allocation5], 64, 64, 4
    $region29: #{_lambda_.1} parent=1 // pred_fallthru
      _
    // Predicated region
    $region30: #{_lambda_.1} parent=1 // pred_check
      _
    $region31: #{_lambda_.1} parent=1 // pred_check_branch
      %55 = sbr.rel (0) target = $region33
    $region32: #{_lambda_.1} parent=1 // pred_region
      _
    $region33: #{_lambda_.1} parent=1 // pred_fallthru
      _
    // Predicated region
    $region34: #{_lambda_.1} parent=1 // pred_check
      _
    $region35: #{_lambda_.1} parent=1 // pred_check_branch
      %57 = sbr.rel (0) target = $region37
    $region36: #{_lambda_.1} parent=1 // pred_region
      %59 = dma.done [#allocation3], 5120
    $region37: #{_lambda_.1} parent=1 // pred_fallthru
      _
    // Predicated region
    $region38: #{_lambda_.1} parent=1 // pred_check
      _
    $region39: #{_lambda_.1} parent=1 // pred_check_branch
      %61 = sbr.rel (0) target = $region41
    $region40: #{_lambda_.1} parent=1 // pred_region
      %63 = dma.done [#allocation5], 24576
    $region41: #{_lambda_.1} parent=1 // pred_fallthru
      _
    %v64 = vld [vmem:[%s0] sm:$0xf]
    %v65 = vld [vmem:[%s0 + $0x10] sm:$0xf]
    %v66 = vld [vmem:[%s0 + $0x20] sm:$0xf]
    %v67 = vld [vmem:[%s0 + $0x30] sm:$0xf]
    %v68 = vunpack.c.l.bf16 %v64
    %v69 = vunpack.c.l.bf16 %v65
    %v70 = vunpack.c.l.bf16 %v66
    %v71 = vunpack.c.l.bf16 %v67
    %s72 = scalar_lea.vmem %s0, 4
    %v73 = vld [vmem:[%s72] sm:$0xf]
    %v74 = vld [vmem:[%s72 + $0x10] sm:$0xf]
    %v75 = vld [vmem:[%s72 + $0x20] sm:$0xf]
    %v76 = vld [vmem:[%s72 + $0x30] sm:$0xf]
    %v77 = vunpack.c.l.bf16 %v73
    %v78 = vunpack.c.l.bf16 %v74
    %v79 = vunpack.c.l.bf16 %v75
    %v80 = vunpack.c.l.bf16 %v76
    %v81 = vadd.f32 %v68, %v77
    %v82 = vadd.f32 %v69, %v78
    %v83 = vadd.f32 %v70, %v79
    %v84 = vadd.f32 %v71, %v80
    %s85 = scalar_lea.vmem %s0, 8
    %v86 = vld [vmem:[%s85] sm:$0xf]
    %v87 = vld [vmem:[%s85 + $0x10] sm:$0xf]
    %v88 = vld [vmem:[%s85 + $0x20] sm:$0xf]
    %v89 = vld [vmem:[%s85 + $0x30] sm:$0xf]
    %v90 = vunpack.c.l.bf16 %v86
    %v91 = vunpack.c.l.bf16 %v87
    %v92 = vunpack.c.l.bf16 %v88
    %v93 = vunpack.c.l.bf16 %v89
    %v94 = vadd.f32 %v81, %v90
    %v95 = vadd.f32 %v82, %v91
    %v96 = vadd.f32 %v83, %v92
    %v97 = vadd.f32 %v84, %v93
    %s98 = scalar_lea.vmem %s0, 12
    %v99 = vld [vmem:[%s98] sm:$0xf]
    %v100 = vld [vmem:[%s98 + $0x10] sm:$0xf]
    %v101 = vld [vmem:[%s98 + $0x20] sm:$0xf]
    %v102 = vld [vmem:[%s98 + $0x30] sm:$0xf]
    %v103 = vunpack.c.l.bf16 %v99
    %v104 = vunpack.c.l.bf16 %v100
    %v105 = vunpack.c.l.bf16 %v101
    %v106 = vunpack.c.l.bf16 %v102
    %v107 = vadd.f32 %v94, %v103
    %v108 = vadd.f32 %v95, %v104
    %v109 = vadd.f32 %v96, %v105
    %v110 = vadd.f32 %v97, %v106
    %v111 = vmul.f32 %v107, 0.25
    %v112 = vmul.f32 %v108, 0.25
    %v113 = vmul.f32 %v109, 0.25
    %v114 = vmul.f32 %v110, 0.25
    %v115 = vadd.f32 %v111, %v112
    %v116 = vadd.f32 %v115, %v113
    %v117 = vadd.f32 %v116, %v114
    %v118 = vmul.f32 %v117, 0.25
    %v119 = vpack.c.bf16 %v118, %v118
    %v120 = vpack.c.bf16 %v111, %v111
    %v121 = vpack.c.bf16 %v112, %v112
    %v122 = vpack.c.bf16 %v113, %v113
    %v123 = vpack.c.bf16 %v114, %v114
    %v124 = vld [vmem:[#allocation2] sm:$0xf]
    %v125 = vld [vmem:[#allocation2 + $0x4] sm:$0xf]
    %v126 = vld [vmem:[#allocation2 + $0x8] sm:$0xf]
    %v127 = vld [vmem:[#allocation2 + $0xc] sm:$0xf]
    %v128 = vld [vmem:[#allocation2 + $0x10] sm:$0xf]
    %v129 = vld [vmem:[#allocation2 + $0x14] sm:$0xf]
    %v130 = vld [vmem:[#allocation2 + $0x18] sm:$0xf]
    %v131 = vld [vmem:[#allocation2 + $0x1c] sm:$0xf]
    %v132 = vld [vmem:[#allocation2 + $0x20] sm:$0xf]
    %v133 = vld [vmem:[#allocation2 + $0x24] sm:$0xf]
    %v134 = vld [vmem:[#allocation2 + $0x28] sm:$0xf]
    %v135 = vld [vmem:[#allocation2 + $0x2c] sm:$0xf]
    %v136 = vld [vmem:[#allocation2 + $0x30] sm:$0xf]
    %v137 = vld [vmem:[#allocation2 + $0x34] sm:$0xf]
    %v138 = vld [vmem:[#allocation2 + $0x38] sm:$0xf]
    %v139 = vld [vmem:[#allocation2 + $0x3c] sm:$0xf]
    %v140 = vld [vmem:[#allocation2 + $0x40] sm:$0xf]
    %v141 = vld [vmem:[#allocation2 + $0x44] sm:$0xf]
    %v142 = vld [vmem:[#allocation2 + $0x48] sm:$0xf]
    %v143 = vld [vmem:[#allocation2 + $0x4c] sm:$0xf]
    %v144 = vld [vmem:[#allocation2 + $0x50] sm:$0xf]
    %v145 = vld [vmem:[#allocation2 + $0x54] sm:$0xf]
    %v146 = vld [vmem:[#allocation2 + $0x58] sm:$0xf]
    %v147 = vld [vmem:[#allocation2 + $0x5c] sm:$0xf]
    %v148 = vld [vmem:[#allocation2 + $0x60] sm:$0xf]
    %v149 = vld [vmem:[#allocation2 + $0x64] sm:$0xf]
    %v150 = vld [vmem:[#allocation2 + $0x68] sm:$0xf]
    %v151 = vld [vmem:[#allocation2 + $0x6c] sm:$0xf]
    %v152 = vld [vmem:[#allocation2 + $0x70] sm:$0xf]
    %v153 = vld [vmem:[#allocation2 + $0x74] sm:$0xf]
    %v154 = vld [vmem:[#allocation2 + $0x78] sm:$0xf]
    %v155 = vld [vmem:[#allocation2 + $0x7c] sm:$0xf]
    %v156 = vld [vmem:[#allocation2 + $0x80] sm:$0xf]
    %v157 = vld [vmem:[#allocation2 + $0x84] sm:$0xf]
    %v158 = vld [vmem:[#allocation2 + $0x88] sm:$0xf]
    %v159 = vld [vmem:[#allocation2 + $0x8c] sm:$0xf]
    %v160 = vld [vmem:[#allocation2 + $0x90] sm:$0xf]
    %v161 = vld [vmem:[#allocation2 + $0x94] sm:$0xf]
    %v162 = vld [vmem:[#allocation2 + $0x98] sm:$0xf]
    %v163 = vld [vmem:[#allocation2 + $0x9c] sm:$0xf]
    %v164 = vld [vmem:[#allocation2 + $0xa0] sm:$0xf]
    %v165 = vld [vmem:[#allocation2 + $0xa4] sm:$0xf]
    %v166 = vld [vmem:[#allocation2 + $0xa8] sm:$0xf]
    %v167 = vld [vmem:[#allocation2 + $0xac] sm:$0xf]
    %v168 = vld [vmem:[#allocation2 + $0xb0] sm:$0xf]
    %v169 = vld [vmem:[#allocation2 + $0xb4] sm:$0xf]
    %v170 = vld [vmem:[#allocation2 + $0xb8] sm:$0xf]
    %v171 = vld [vmem:[#allocation2 + $0xbc] sm:$0xf]
    %v172 = vld [vmem:[#allocation2 + $0xc0] sm:$0xf]
    %v173 = vld [vmem:[#allocation2 + $0xc4] sm:$0xf]
    %v174 = vld [vmem:[#allocation2 + $0xc8] sm:$0xf]
    %v175 = vld [vmem:[#allocation2 + $0xcc] sm:$0xf]
    %v176 = vld [vmem:[#allocation2 + $0xd0] sm:$0xf]
    %v177 = vld [vmem:[#allocation2 + $0xd4] sm:$0xf]
    %v178 = vld [vmem:[#allocation2 + $0xd8] sm:$0xf]
    %v179 = vld [vmem:[#allocation2 + $0xdc] sm:$0xf]
    %v180 = vld [vmem:[#allocation2 + $0xe0] sm:$0xf]
    %v181 = vld [vmem:[#allocation2 + $0xe4] sm:$0xf]
    %v182 = vld [vmem:[#allocation2 + $0xe8] sm:$0xf]
    %v183 = vld [vmem:[#allocation2 + $0xec] sm:$0xf]
    %v184 = vld [vmem:[#allocation2 + $0xf0] sm:$0xf]
    %v185 = vld [vmem:[#allocation2 + $0xf4] sm:$0xf]
    %v186 = vld [vmem:[#allocation2 + $0xf8] sm:$0xf]
    %v187 = vld [vmem:[#allocation2 + $0xfc] sm:$0xf]
    %v188 = vld [vmem:[#allocation2 + $0x100] sm:$0xf]
    %v189 = vld [vmem:[#allocation2 + $0x104] sm:$0xf]
    %v190 = vld [vmem:[#allocation2 + $0x108] sm:$0xf]
    %v191 = vld [vmem:[#allocation2 + $0x10c] sm:$0xf]
    %v192 = vld [vmem:[#allocation2 + $0x110] sm:$0xf]
    %v193 = vld [vmem:[#allocation2 + $0x114] sm:$0xf]
    %v194 = vld [vmem:[#allocation2 + $0x118] sm:$0xf]
    %v195 = vld [vmem:[#allocation2 + $0x11c] sm:$0xf]
    %v196 = vld [vmem:[#allocation2 + $0x120] sm:$0xf]
    %v197 = vld [vmem:[#allocation2 + $0x124] sm:$0xf]
    %v198 = vld [vmem:[#allocation2 + $0x128] sm:$0xf]
    %v199 = vld [vmem:[#allocation2 + $0x12c] sm:$0xf]
    %v200 = vld [vmem:[#allocation2 + $0x130] sm:$0xf]
    %v201 = vld [vmem:[#allocation2 + $0x134] sm:$0xf]
    %v202 = vld [vmem:[#allocation2 + $0x138] sm:$0xf]
    %v203 = vld [vmem:[#allocation2 + $0x13c] sm:$0xf]
    %v204 = vld [vmem:[%s2] sm:$0x1]
    %v206 = vperm.slane %v204, 0
    %v224 = vunpack.c.l.b16 %v124
    %v225 = vunpack.c.l.b16 %v125
    %v226 = vunpack.c.l.b16 %v126
    %v227 = vunpack.c.l.b16 %v127
    %v228 = vunpack.c.l.b16 %v128
    %v229 = vunpack.c.l.b16 %v129
    %v230 = vunpack.c.l.b16 %v130
    %v231 = vunpack.c.l.b16 %v131
    %v232 = vunpack.c.l.b16 %v132
    %v233 = vunpack.c.l.b16 %v133
    %v234 = vunpack.c.l.b16 %v134
    %v235 = vunpack.c.l.b16 %v135
    %v236 = vunpack.c.l.b16 %v136
    %v237 = vunpack.c.l.b16 %v137
    %v238 = vunpack.c.l.b16 %v138
    %v239 = vunpack.c.l.b16 %v139
    %v240 = vpack.c.b16 %v225, %v224
    %v241 = vpack.c.b16 %v227, %v226
    %v242 = vpack.c.b16 %v229, %v228
    %v243 = vpack.c.b16 %v231, %v230
    %v244 = vpack.c.b16 %v233, %v232
    %v245 = vpack.c.b16 %v235, %v234
    %v246 = vpack.c.b16 %v237, %v236
    %v247 = vpack.c.b16 %v239, %v238
    %256 = vmatpush.bf16.msra.mxu0 %v247
    %257 = vmatpush.bf16.msra.mxu0 %v246
    %258 = vmatpush.bf16.msra.mxu0 %v245
    %259 = vmatpush.bf16.msra.mxu0 %v244
    %260 = vmatpush.bf16.msra.mxu0 %v243
    %261 = vmatpush.bf16.msra.mxu0 %v242
    %262 = vmatpush.bf16.msra.mxu0 %v241
    %263 = vmatpush.bf16.msra.mxu0 %v240
    %264 = vmatmul.bf16.gmra.mxu0 %v119
    %v265 = vpop.f32.mrf.mxu0
    %v266 = vadd.f32 %v206, %v265
    %v267 = vpop.f32.mrf.mxu0
    %268 = vdwg.mxu0
    %v285 = vunpack.c.l.b16 %v140
    %v286 = vunpack.c.l.b16 %v141
    %v287 = vunpack.c.l.b16 %v142
    %v288 = vunpack.c.l.b16 %v143
    %v289 = vunpack.c.l.b16 %v144
    %v290 = vunpack.c.l.b16 %v145
    %v291 = vunpack.c.l.b16 %v146
    %v292 = vunpack.c.l.b16 %v147
    %v293 = vunpack.c.l.b16 %v148
    %v294 = vunpack.c.l.b16 %v149
    %v295 = vunpack.c.l.b16 %v150
    %v296 = vunpack.c.l.b16 %v151
    %v297 = vunpack.c.l.b16 %v152
    %v298 = vunpack.c.l.b16 %v153
    %v299 = vunpack.c.l.b16 %v154
    %v300 = vunpack.c.l.b16 %v155
    %v301 = vpack.c.b16 %v286, %v285
    %v302 = vpack.c.b16 %v288, %v287
    %v303 = vpack.c.b16 %v290, %v289
    %v304 = vpack.c.b16 %v292, %v291
    %v305 = vpack.c.b16 %v294, %v293
    %v306 = vpack.c.b16 %v296, %v295
    %v307 = vpack.c.b16 %v298, %v297
    %v308 = vpack.c.b16 %v300, %v299
    %317 = vmatpush.bf16.msra.mxu0 %v308
    %318 = vmatpush.bf16.msra.mxu0 %v307
    %319 = vmatpush.bf16.msra.mxu0 %v306
    %320 = vmatpush.bf16.msra.mxu0 %v305
    %321 = vmatpush.bf16.msra.mxu0 %v304
    %322 = vmatpush.bf16.msra.mxu0 %v303
    %323 = vmatpush.bf16.msra.mxu0 %v302
    %324 = vmatpush.bf16.msra.mxu0 %v301
    %325 = vmatmul.bf16.gmra.mxu0 %v120
    %v326 = vpop.f32.mrf.mxu0
    %v327 = vadd.f32 %v206, %v326
    %v328 = vpop.f32.mrf.mxu0
    %329 = vdwg.mxu0
    %v346 = vunpack.c.l.b16 %v156
    %v347 = vunpack.c.l.b16 %v157
    %v348 = vunpack.c.l.b16 %v158
    %v349 = vunpack.c.l.b16 %v159
    %v350 = vunpack.c.l.b16 %v160
    %v351 = vunpack.c.l.b16 %v161
    %v352 = vunpack.c.l.b16 %v162
    %v353 = vunpack.c.l.b16 %v163
    %v354 = vunpack.c.l.b16 %v164
    %v355 = vunpack.c.l.b16 %v165
    %v356 = vunpack.c.l.b16 %v166
    %v357 = vunpack.c.l.b16 %v167
    %v358 = vunpack.c.l.b16 %v168
    %v359 = vunpack.c.l.b16 %v169
    %v360 = vunpack.c.l.b16 %v170
    %v361 = vunpack.c.l.b16 %v171
    %v362 = vpack.c.b16 %v347, %v346
    %v363 = vpack.c.b16 %v349, %v348
    %v364 = vpack.c.b16 %v351, %v350
    %v365 = vpack.c.b16 %v353, %v352
    %v366 = vpack.c.b16 %v355, %v354
    %v367 = vpack.c.b16 %v357, %v356
    %v368 = vpack.c.b16 %v359, %v358
    %v369 = vpack.c.b16 %v361, %v360
    %378 = vmatpush.bf16.msra.mxu0 %v369
    %379 = vmatpush.bf16.msra.mxu0 %v368
    %380 = vmatpush.bf16.msra.mxu0 %v367
    %381 = vmatpush.bf16.msra.mxu0 %v366
    %382 = vmatpush.bf16.msra.mxu0 %v365
    %383 = vmatpush.bf16.msra.mxu0 %v364
    %384 = vmatpush.bf16.msra.mxu0 %v363
    %385 = vmatpush.bf16.msra.mxu0 %v362
    %386 = vmatmul.bf16.gmra.mxu0 %v121
    %v387 = vpop.f32.mrf.mxu0
    %v388 = vadd.f32 %v206, %v387
    %v389 = vpop.f32.mrf.mxu0
    %390 = vdwg.mxu0
    %v407 = vunpack.c.l.b16 %v172
    %v408 = vunpack.c.l.b16 %v173
    %v409 = vunpack.c.l.b16 %v174
    %v410 = vunpack.c.l.b16 %v175
    %v411 = vunpack.c.l.b16 %v176
    %v412 = vunpack.c.l.b16 %v177
    %v413 = vunpack.c.l.b16 %v178
    %v414 = vunpack.c.l.b16 %v179
    %v415 = vunpack.c.l.b16 %v180
    %v416 = vunpack.c.l.b16 %v181
    %v417 = vunpack.c.l.b16 %v182
    %v418 = vunpack.c.l.b16 %v183
    %v419 = vunpack.c.l.b16 %v184
    %v420 = vunpack.c.l.b16 %v185
    %v421 = vunpack.c.l.b16 %v186
    %v422 = vunpack.c.l.b16 %v187
    %v423 = vpack.c.b16 %v408, %v407
    %v424 = vpack.c.b16 %v410, %v409
    %v425 = vpack.c.b16 %v412, %v411
    %v426 = vpack.c.b16 %v414, %v413
    %v427 = vpack.c.b16 %v416, %v415
    %v428 = vpack.c.b16 %v418, %v417
    %v429 = vpack.c.b16 %v420, %v419
    %v430 = vpack.c.b16 %v422, %v421
    %439 = vmatpush.bf16.msra.mxu0 %v430
    %440 = vmatpush.bf16.msra.mxu0 %v429
    %441 = vmatpush.bf16.msra.mxu0 %v428
    %442 = vmatpush.bf16.msra.mxu0 %v427
    %443 = vmatpush.bf16.msra.mxu0 %v426
    %444 = vmatpush.bf16.msra.mxu0 %v425
    %445 = vmatpush.bf16.msra.mxu0 %v424
    %446 = vmatpush.bf16.msra.mxu0 %v423
    %447 = vmatmul.bf16.gmra.mxu0 %v122
    %v448 = vpop.f32.mrf.mxu0
    %v449 = vadd.f32 %v206, %v448
    %v450 = vpop.f32.mrf.mxu0
    %451 = vdwg.mxu0
    %v468 = vunpack.c.l.b16 %v188
    %v469 = vunpack.c.l.b16 %v189
    %v470 = vunpack.c.l.b16 %v190
    %v471 = vunpack.c.l.b16 %v191
    %v472 = vunpack.c.l.b16 %v192
    %v473 = vunpack.c.l.b16 %v193
    %v474 = vunpack.c.l.b16 %v194
    %v475 = vunpack.c.l.b16 %v195
    %v476 = vunpack.c.l.b16 %v196
    %v477 = vunpack.c.l.b16 %v197
    %v478 = vunpack.c.l.b16 %v198
    %v479 = vunpack.c.l.b16 %v199
    %v480 = vunpack.c.l.b16 %v200
    %v481 = vunpack.c.l.b16 %v201
    %v482 = vunpack.c.l.b16 %v202
    %v483 = vunpack.c.l.b16 %v203
    %v484 = vpack.c.b16 %v469, %v468
    %v485 = vpack.c.b16 %v471, %v470
    %v486 = vpack.c.b16 %v473, %v472
    %v487 = vpack.c.b16 %v475, %v474
    %v488 = vpack.c.b16 %v477, %v476
    %v489 = vpack.c.b16 %v479, %v478
    %v490 = vpack.c.b16 %v481, %v480
    %v491 = vpack.c.b16 %v483, %v482
    %500 = vmatpush.bf16.msra.mxu0 %v491
    %501 = vmatpush.bf16.msra.mxu0 %v490
    %502 = vmatpush.bf16.msra.mxu0 %v489
    %503 = vmatpush.bf16.msra.mxu0 %v488
    %504 = vmatpush.bf16.msra.mxu0 %v487
    %505 = vmatpush.bf16.msra.mxu0 %v486
    %506 = vmatpush.bf16.msra.mxu0 %v485
    %507 = vmatpush.bf16.msra.mxu0 %v484
    %508 = vmatmul.bf16.gmra.mxu0 %v123
    %v509 = vpop.f32.mrf.mxu0
    %v510 = vadd.f32 %v206, %v509
    %v511 = vpop.f32.mrf.mxu0
    %512 = vdwg.mxu0
    %513 = vst [vmem:[%s9] sm:$0xff] %v266
    %514 = vst [vmem:[%s9 + $0x8] sm:$0xff] %v327
    %515 = vst [vmem:[%s9 + $0x10] sm:$0xff] %v388
    %516 = vst [vmem:[%s9 + $0x18] sm:$0xff] %v449
    %517 = vst [vmem:[%s9 + $0x20] sm:$0xff] %v510
    %v518 = vpack.c.bf16 %v266, %v266
    %v519 = vpack.c.bf16 %v327, %v327
    %v520 = vpack.c.bf16 %v388, %v388
    %v521 = vpack.c.bf16 %v449, %v449
    %v522 = vpack.c.bf16 %v510, %v510
    %v523 = vld [vmem:[%s3] sm:$0xff]
    %v524 = vld [vmem:[%s3 + $0x8] sm:$0xff]
    %v525 = vld [vmem:[%s3 + $0x10] sm:$0xff]
    %v526 = vld [vmem:[%s3 + $0x18] sm:$0xff]
    %v527 = vld [vmem:[%s3 + $0x20] sm:$0xff]
    %v528 = vld [vmem:[%s3 + $0x28] sm:$0xff]
    %v529 = vld [vmem:[%s3 + $0x30] sm:$0xff]
    %v530 = vld [vmem:[%s3 + $0x38] sm:$0xff]
    %v531 = vld [vmem:[%s3 + $0x40] sm:$0xff]
    %v532 = vld [vmem:[%s3 + $0x48] sm:$0xff]
    %v533 = vld [vmem:[%s3 + $0x50] sm:$0xff]
    %v534 = vld [vmem:[%s3 + $0x58] sm:$0xff]
    %v535 = vld [vmem:[%s3 + $0x60] sm:$0xff]
    %v536 = vld [vmem:[%s3 + $0x68] sm:$0xff]
    %v537 = vld [vmem:[%s3 + $0x70] sm:$0xff]
    %v538 = vld [vmem:[%s3 + $0x78] sm:$0xff]
    %v539 = vld [vmem:[%s3 + $0x80] sm:$0xff]
    %v540 = vld [vmem:[%s3 + $0x88] sm:$0xff]
    %v541 = vld [vmem:[%s3 + $0x90] sm:$0xff]
    %v542 = vld [vmem:[%s3 + $0x98] sm:$0xff]
    %v543 = vld [vmem:[%s3 + $0xa0] sm:$0xff]
    %v544 = vld [vmem:[%s3 + $0xa8] sm:$0xff]
    %v545 = vld [vmem:[%s3 + $0xb0] sm:$0xff]
    %v546 = vld [vmem:[%s3 + $0xb8] sm:$0xff]
    %v547 = vld [vmem:[%s3 + $0xc0] sm:$0xff]
    %v548 = vld [vmem:[%s3 + $0xc8] sm:$0xff]
    %v549 = vld [vmem:[%s3 + $0xd0] sm:$0xff]
    %v550 = vld [vmem:[%s3 + $0xd8] sm:$0xff]
    %v551 = vld [vmem:[%s3 + $0xe0] sm:$0xff]
    %v552 = vld [vmem:[%s3 + $0xe8] sm:$0xff]
    %v553 = vld [vmem:[%s3 + $0xf0] sm:$0xff]
    %v554 = vld [vmem:[%s3 + $0xf8] sm:$0xff]
    %v555 = vld [vmem:[%s3 + $0x100] sm:$0xff]
    %v556 = vld [vmem:[%s3 + $0x108] sm:$0xff]
    %v557 = vld [vmem:[%s3 + $0x110] sm:$0xff]
    %v558 = vld [vmem:[%s3 + $0x118] sm:$0xff]
    %v559 = vld [vmem:[%s3 + $0x120] sm:$0xff]
    %v560 = vld [vmem:[%s3 + $0x128] sm:$0xff]
    %v561 = vld [vmem:[%s3 + $0x130] sm:$0xff]
    %v562 = vld [vmem:[%s3 + $0x138] sm:$0xff]
    %v563 = vld [vmem:[%s3 + $0x140] sm:$0xff]
    %v564 = vld [vmem:[%s3 + $0x148] sm:$0xff]
    %v565 = vld [vmem:[%s3 + $0x150] sm:$0xff]
    %v566 = vld [vmem:[%s3 + $0x158] sm:$0xff]
    %v567 = vld [vmem:[%s3 + $0x160] sm:$0xff]
    %v568 = vld [vmem:[%s3 + $0x168] sm:$0xff]
    %v569 = vld [vmem:[%s3 + $0x170] sm:$0xff]
    %v570 = vld [vmem:[%s3 + $0x178] sm:$0xff]
    %v571 = vld [vmem:[%s3 + $0x180] sm:$0xff]
    %v572 = vld [vmem:[%s3 + $0x188] sm:$0xff]
    %v573 = vld [vmem:[%s3 + $0x190] sm:$0xff]
    %v574 = vld [vmem:[%s3 + $0x198] sm:$0xff]
    %v575 = vld [vmem:[%s3 + $0x1a0] sm:$0xff]
    %v576 = vld [vmem:[%s3 + $0x1a8] sm:$0xff]
    %v577 = vld [vmem:[%s3 + $0x1b0] sm:$0xff]
    %v578 = vld [vmem:[%s3 + $0x1b8] sm:$0xff]
    %v579 = vld [vmem:[%s3 + $0x1c0] sm:$0xff]
    %v580 = vld [vmem:[%s3 + $0x1c8] sm:$0xff]
    %v581 = vld [vmem:[%s3 + $0x1d0] sm:$0xff]
    %v582 = vld [vmem:[%s3 + $0x1d8] sm:$0xff]
    %v583 = vld [vmem:[%s3 + $0x1e0] sm:$0xff]
    %v584 = vld [vmem:[%s3 + $0x1e8] sm:$0xff]
    %v585 = vld [vmem:[%s3 + $0x1f0] sm:$0xff]
    %v586 = vld [vmem:[%s3 + $0x1f8] sm:$0xff]
    %v587 = vld [vmem:[%s3 + $0x200] sm:$0xff]
    %v588 = vld [vmem:[%s3 + $0x208] sm:$0xff]
    %v589 = vld [vmem:[%s3 + $0x210] sm:$0xff]
    %v590 = vld [vmem:[%s3 + $0x218] sm:$0xff]
    %v591 = vld [vmem:[%s3 + $0x220] sm:$0xff]
    %v592 = vld [vmem:[%s3 + $0x228] sm:$0xff]
    %v593 = vld [vmem:[%s3 + $0x230] sm:$0xff]
    %v594 = vld [vmem:[%s3 + $0x238] sm:$0xff]
    %v595 = vld [vmem:[%s3 + $0x240] sm:$0xff]
    %v596 = vld [vmem:[%s3 + $0x248] sm:$0xff]
    %v597 = vld [vmem:[%s3 + $0x250] sm:$0xff]
    %v598 = vld [vmem:[%s3 + $0x258] sm:$0xff]
    %v599 = vld [vmem:[%s3 + $0x260] sm:$0xff]
    %v600 = vld [vmem:[%s3 + $0x268] sm:$0xff]
    %v601 = vld [vmem:[%s3 + $0x270] sm:$0xff]
    %v602 = vld [vmem:[%s3 + $0x278] sm:$0xff]
    %v603 = vld [vmem:[%s3 + $0x280] sm:$0xff]
    %v604 = vld [vmem:[%s3 + $0x288] sm:$0xff]
    %v605 = vld [vmem:[%s3 + $0x290] sm:$0xff]
    %v606 = vld [vmem:[%s3 + $0x298] sm:$0xff]
    %v607 = vld [vmem:[%s3 + $0x2a0] sm:$0xff]
    %v608 = vld [vmem:[%s3 + $0x2a8] sm:$0xff]
    %v609 = vld [vmem:[%s3 + $0x2b0] sm:$0xff]
    %v610 = vld [vmem:[%s3 + $0x2b8] sm:$0xff]
    %v611 = vld [vmem:[%s3 + $0x2c0] sm:$0xff]
    %v612 = vld [vmem:[%s3 + $0x2c8] sm:$0xff]
    %v613 = vld [vmem:[%s3 + $0x2d0] sm:$0xff]
    %v614 = vld [vmem:[%s3 + $0x2d8] sm:$0xff]
    %v615 = vld [vmem:[%s3 + $0x2e0] sm:$0xff]
    %v616 = vld [vmem:[%s3 + $0x2e8] sm:$0xff]
    %v617 = vld [vmem:[%s3 + $0x2f0] sm:$0xff]
    %v618 = vld [vmem:[%s3 + $0x2f8] sm:$0xff]
    %v619 = vld [vmem:[%s3 + $0x300] sm:$0xff]
    %v620 = vld [vmem:[%s3 + $0x308] sm:$0xff]
    %v621 = vld [vmem:[%s3 + $0x310] sm:$0xff]
    %v622 = vld [vmem:[%s3 + $0x318] sm:$0xff]
    %v623 = vld [vmem:[%s3 + $0x320] sm:$0xff]
    %v624 = vld [vmem:[%s3 + $0x328] sm:$0xff]
    %v625 = vld [vmem:[%s3 + $0x330] sm:$0xff]
    %v626 = vld [vmem:[%s3 + $0x338] sm:$0xff]
    %v627 = vld [vmem:[%s3 + $0x340] sm:$0xff]
    %v628 = vld [vmem:[%s3 + $0x348] sm:$0xff]
    %v629 = vld [vmem:[%s3 + $0x350] sm:$0xff]
    %v630 = vld [vmem:[%s3 + $0x358] sm:$0xff]
    %v631 = vld [vmem:[%s3 + $0x360] sm:$0xff]
    %v632 = vld [vmem:[%s3 + $0x368] sm:$0xff]
    %v633 = vld [vmem:[%s3 + $0x370] sm:$0xff]
    %v634 = vld [vmem:[%s3 + $0x378] sm:$0xff]
    %v635 = vld [vmem:[%s3 + $0x380] sm:$0xff]
    %v636 = vld [vmem:[%s3 + $0x388] sm:$0xff]
    %v637 = vld [vmem:[%s3 + $0x390] sm:$0xff]
    %v638 = vld [vmem:[%s3 + $0x398] sm:$0xff]
    %v639 = vld [vmem:[%s3 + $0x3a0] sm:$0xff]
    %v640 = vld [vmem:[%s3 + $0x3a8] sm:$0xff]
    %v641 = vld [vmem:[%s3 + $0x3b0] sm:$0xff]
    %v642 = vld [vmem:[%s3 + $0x3b8] sm:$0xff]
    %v643 = vld [vmem:[%s3 + $0x3c0] sm:$0xff]
    %v644 = vld [vmem:[%s3 + $0x3c8] sm:$0xff]
    %v645 = vld [vmem:[%s3 + $0x3d0] sm:$0xff]
    %v646 = vld [vmem:[%s3 + $0x3d8] sm:$0xff]
    %v647 = vld [vmem:[%s3 + $0x3e0] sm:$0xff]
    %v648 = vld [vmem:[%s3 + $0x3e8] sm:$0xff]
    %v649 = vld [vmem:[%s3 + $0x3f0] sm:$0xff]
    %v650 = vld [vmem:[%s3 + $0x3f8] sm:$0xff]
    %v651 = vld [vmem:[%s3 + $0x400] sm:$0xff]
    %v652 = vld [vmem:[%s3 + $0x408] sm:$0xff]
    %v653 = vld [vmem:[%s3 + $0x410] sm:$0xff]
    %v654 = vld [vmem:[%s3 + $0x418] sm:$0xff]
    %v655 = vld [vmem:[%s3 + $0x420] sm:$0xff]
    %v656 = vld [vmem:[%s3 + $0x428] sm:$0xff]
    %v657 = vld [vmem:[%s3 + $0x430] sm:$0xff]
    %v658 = vld [vmem:[%s3 + $0x438] sm:$0xff]
    %v659 = vld [vmem:[%s3 + $0x440] sm:$0xff]
    %v660 = vld [vmem:[%s3 + $0x448] sm:$0xff]
    %v661 = vld [vmem:[%s3 + $0x450] sm:$0xff]
    %v662 = vld [vmem:[%s3 + $0x458] sm:$0xff]
    %v663 = vld [vmem:[%s3 + $0x460] sm:$0xff]
    %v664 = vld [vmem:[%s3 + $0x468] sm:$0xff]
    %v665 = vld [vmem:[%s3 + $0x470] sm:$0xff]
    %v666 = vld [vmem:[%s3 + $0x478] sm:$0xff]
    %v667 = vld [vmem:[%s3 + $0x480] sm:$0xff]
    %v668 = vld [vmem:[%s3 + $0x488] sm:$0xff]
    %v669 = vld [vmem:[%s3 + $0x490] sm:$0xff]
    %v670 = vld [vmem:[%s3 + $0x498] sm:$0xff]
    %v671 = vld [vmem:[%s3 + $0x4a0] sm:$0xff]
    %v672 = vld [vmem:[%s3 + $0x4a8] sm:$0xff]
    %v673 = vld [vmem:[%s3 + $0x4b0] sm:$0xff]
    %v674 = vld [vmem:[%s3 + $0x4b8] sm:$0xff]
    %v675 = vld [vmem:[%s3 + $0x4c0] sm:$0xff]
    %v676 = vld [vmem:[%s3 + $0x4c8] sm:$0xff]
    %v677 = vld [vmem:[%s3 + $0x4d0] sm:$0xff]
    %v678 = vld [vmem:[%s3 + $0x4d8] sm:$0xff]
    %v679 = vld [vmem:[%s3 + $0x4e0] sm:$0xff]
    %v680 = vld [vmem:[%s3 + $0x4e8] sm:$0xff]
    %v681 = vld [vmem:[%s3 + $0x4f0] sm:$0xff]
    %v682 = vld [vmem:[%s3 + $0x4f8] sm:$0xff]
    %v683 = vld [vmem:[%s3 + $0x500] sm:$0xff]
    %v684 = vld [vmem:[%s3 + $0x508] sm:$0xff]
    %v685 = vld [vmem:[%s3 + $0x510] sm:$0xff]
    %v686 = vld [vmem:[%s3 + $0x518] sm:$0xff]
    %v687 = vld [vmem:[%s3 + $0x520] sm:$0xff]
    %v688 = vld [vmem:[%s3 + $0x528] sm:$0xff]
    %v689 = vld [vmem:[%s3 + $0x530] sm:$0xff]
    %v690 = vld [vmem:[%s3 + $0x538] sm:$0xff]
    %v691 = vld [vmem:[%s3 + $0x540] sm:$0xff]
    %v692 = vld [vmem:[%s3 + $0x548] sm:$0xff]
    %v693 = vld [vmem:[%s3 + $0x550] sm:$0xff]
    %v694 = vld [vmem:[%s3 + $0x558] sm:$0xff]
    %v695 = vld [vmem:[%s3 + $0x560] sm:$0xff]
    %v696 = vld [vmem:[%s3 + $0x568] sm:$0xff]
    %v697 = vld [vmem:[%s3 + $0x570] sm:$0xff]
    %v698 = vld [vmem:[%s3 + $0x578] sm:$0xff]
    %v699 = vld [vmem:[%s3 + $0x580] sm:$0xff]
    %v700 = vld [vmem:[%s3 + $0x588] sm:$0xff]
    %v701 = vld [vmem:[%s3 + $0x590] sm:$0xff]
    %v702 = vld [vmem:[%s3 + $0x598] sm:$0xff]
    %v703 = vld [vmem:[%s3 + $0x5a0] sm:$0xff]
    %v704 = vld [vmem:[%s3 + $0x5a8] sm:$0xff]
    %v705 = vld [vmem:[%s3 + $0x5b0] sm:$0xff]
    %v706 = vld [vmem:[%s3 + $0x5b8] sm:$0xff]
    %v707 = vld [vmem:[%s3 + $0x5c0] sm:$0xff]
    %v708 = vld [vmem:[%s3 + $0x5c8] sm:$0xff]
    %v709 = vld [vmem:[%s3 + $0x5d0] sm:$0xff]
    %v710 = vld [vmem:[%s3 + $0x5d8] sm:$0xff]
    %v711 = vld [vmem:[%s3 + $0x5e0] sm:$0xff]
    %v712 = vld [vmem:[%s3 + $0x5e8] sm:$0xff]
    %v713 = vld [vmem:[%s3 + $0x5f0] sm:$0xff]
    %v714 = vld [vmem:[%s3 + $0x5f8] sm:$0xff]
    %v715 = vld [vmem:[%s3 + $0x600] sm:$0xff]
    %v716 = vld [vmem:[%s3 + $0x608] sm:$0xff]
    %v717 = vld [vmem:[%s3 + $0x610] sm:$0xff]
    %v718 = vld [vmem:[%s3 + $0x618] sm:$0xff]
    %v719 = vld [vmem:[%s3 + $0x620] sm:$0xff]
    %v720 = vld [vmem:[%s3 + $0x628] sm:$0xff]
    %v721 = vld [vmem:[%s3 + $0x630] sm:$0xff]
    %v722 = vld [vmem:[%s3 + $0x638] sm:$0xff]
    %v723 = vld [vmem:[%s3 + $0x640] sm:$0xff]
    %v724 = vld [vmem:[%s3 + $0x648] sm:$0xff]
    %v725 = vld [vmem:[%s3 + $0x650] sm:$0xff]
    %v726 = vld [vmem:[%s3 + $0x658] sm:$0xff]
    %v727 = vld [vmem:[%s3 + $0x660] sm:$0xff]
    %v728 = vld [vmem:[%s3 + $0x668] sm:$0xff]
    %v729 = vld [vmem:[%s3 + $0x670] sm:$0xff]
    %v730 = vld [vmem:[%s3 + $0x678] sm:$0xff]
    %v731 = vld [vmem:[%s3 + $0x680] sm:$0xff]
    %v732 = vld [vmem:[%s3 + $0x688] sm:$0xff]
    %v733 = vld [vmem:[%s3 + $0x690] sm:$0xff]
    %v734 = vld [vmem:[%s3 + $0x698] sm:$0xff]
    %v735 = vld [vmem:[%s3 + $0x6a0] sm:$0xff]
    %v736 = vld [vmem:[%s3 + $0x6a8] sm:$0xff]
    %v737 = vld [vmem:[%s3 + $0x6b0] sm:$0xff]
    %v738 = vld [vmem:[%s3 + $0x6b8] sm:$0xff]
    %v739 = vld [vmem:[%s3 + $0x6c0] sm:$0xff]
    %v740 = vld [vmem:[%s3 + $0x6c8] sm:$0xff]
    %v741 = vld [vmem:[%s3 + $0x6d0] sm:$0xff]
    %v742 = vld [vmem:[%s3 + $0x6d8] sm:$0xff]
    %v743 = vld [vmem:[%s3 + $0x6e0] sm:$0xff]
    %v744 = vld [vmem:[%s3 + $0x6e8] sm:$0xff]
    %v745 = vld [vmem:[%s3 + $0x6f0] sm:$0xff]
    %v746 = vld [vmem:[%s3 + $0x6f8] sm:$0xff]
    %v747 = vld [vmem:[%s3 + $0x700] sm:$0xff]
    %v748 = vld [vmem:[%s3 + $0x708] sm:$0xff]
    %v749 = vld [vmem:[%s3 + $0x710] sm:$0xff]
    %v750 = vld [vmem:[%s3 + $0x718] sm:$0xff]
    %v751 = vld [vmem:[%s3 + $0x720] sm:$0xff]
    %v752 = vld [vmem:[%s3 + $0x728] sm:$0xff]
    %v753 = vld [vmem:[%s3 + $0x730] sm:$0xff]
    %v754 = vld [vmem:[%s3 + $0x738] sm:$0xff]
    %v755 = vld [vmem:[%s3 + $0x740] sm:$0xff]
    %v756 = vld [vmem:[%s3 + $0x748] sm:$0xff]
    %v757 = vld [vmem:[%s3 + $0x750] sm:$0xff]
    %v758 = vld [vmem:[%s3 + $0x758] sm:$0xff]
    %v759 = vld [vmem:[%s3 + $0x760] sm:$0xff]
    %v760 = vld [vmem:[%s3 + $0x768] sm:$0xff]
    %v761 = vld [vmem:[%s3 + $0x770] sm:$0xff]
    %v762 = vld [vmem:[%s3 + $0x778] sm:$0xff]
    %v763 = vld [vmem:[%s3 + $0x780] sm:$0xff]
    %v764 = vld [vmem:[%s3 + $0x788] sm:$0xff]
    %v765 = vld [vmem:[%s3 + $0x790] sm:$0xff]
    %v766 = vld [vmem:[%s3 + $0x798] sm:$0xff]
    %v767 = vld [vmem:[%s3 + $0x7a0] sm:$0xff]
    %v768 = vld [vmem:[%s3 + $0x7a8] sm:$0xff]
    %v769 = vld [vmem:[%s3 + $0x7b0] sm:$0xff]
    %v770 = vld [vmem:[%s3 + $0x7b8] sm:$0xff]
    %v771 = vld [vmem:[%s3 + $0x7c0] sm:$0xff]
    %v772 = vld [vmem:[%s3 + $0x7c8] sm:$0xff]
    %v773 = vld [vmem:[%s3 + $0x7d0] sm:$0xff]
    %v774 = vld [vmem:[%s3 + $0x7d8] sm:$0xff]
    %v775 = vld [vmem:[%s3 + $0x7e0] sm:$0xff]
    %v776 = vld [vmem:[%s3 + $0x7e8] sm:$0xff]
    %v777 = vld [vmem:[%s3 + $0x7f0] sm:$0xff]
    %v778 = vld [vmem:[%s3 + $0x7f8] sm:$0xff]
    %v779 = vld [vmem:[%s3 + $0x800] sm:$0xff]
    %v780 = vld [vmem:[%s3 + $0x808] sm:$0xff]
    %v781 = vld [vmem:[%s3 + $0x810] sm:$0xff]
    %v782 = vld [vmem:[%s3 + $0x818] sm:$0xff]
    %v783 = vld [vmem:[%s3 + $0x820] sm:$0xff]
    %v784 = vld [vmem:[%s3 + $0x828] sm:$0xff]
    %v785 = vld [vmem:[%s3 + $0x830] sm:$0xff]
    %v786 = vld [vmem:[%s3 + $0x838] sm:$0xff]
    %v787 = vld [vmem:[%s3 + $0x840] sm:$0xff]
    %v788 = vld [vmem:[%s3 + $0x848] sm:$0xff]
    %v789 = vld [vmem:[%s3 + $0x850] sm:$0xff]
    %v790 = vld [vmem:[%s3 + $0x858] sm:$0xff]
    %v791 = vld [vmem:[%s3 + $0x860] sm:$0xff]
    %v792 = vld [vmem:[%s3 + $0x868] sm:$0xff]
    %v793 = vld [vmem:[%s3 + $0x870] sm:$0xff]
    %v794 = vld [vmem:[%s3 + $0x878] sm:$0xff]
    %v795 = vld [vmem:[%s3 + $0x880] sm:$0xff]
    %v796 = vld [vmem:[%s3 + $0x888] sm:$0xff]
    %v797 = vld [vmem:[%s3 + $0x890] sm:$0xff]
    %v798 = vld [vmem:[%s3 + $0x898] sm:$0xff]
    %v799 = vld [vmem:[%s3 + $0x8a0] sm:$0xff]
    %v800 = vld [vmem:[%s3 + $0x8a8] sm:$0xff]
    %v801 = vld [vmem:[%s3 + $0x8b0] sm:$0xff]
    %v802 = vld [vmem:[%s3 + $0x8b8] sm:$0xff]
    %v803 = vld [vmem:[%s3 + $0x8c0] sm:$0xff]
    %v804 = vld [vmem:[%s3 + $0x8c8] sm:$0xff]
    %v805 = vld [vmem:[%s3 + $0x8d0] sm:$0xff]
    %v806 = vld [vmem:[%s3 + $0x8d8] sm:$0xff]
    %v807 = vld [vmem:[%s3 + $0x8e0] sm:$0xff]
    %v808 = vld [vmem:[%s3 + $0x8e8] sm:$0xff]
    %v809 = vld [vmem:[%s3 + $0x8f0] sm:$0xff]
    %v810 = vld [vmem:[%s3 + $0x8f8] sm:$0xff]
    %v811 = vld [vmem:[%s3 + $0x900] sm:$0xff]
    %v812 = vld [vmem:[%s3 + $0x908] sm:$0xff]
    %v813 = vld [vmem:[%s3 + $0x910] sm:$0xff]
    %v814 = vld [vmem:[%s3 + $0x918] sm:$0xff]
    %v815 = vld [vmem:[%s3 + $0x920] sm:$0xff]
    %v816 = vld [vmem:[%s3 + $0x928] sm:$0xff]
    %v817 = vld [vmem:[%s3 + $0x930] sm:$0xff]
    %v818 = vld [vmem:[%s3 + $0x938] sm:$0xff]
    %v819 = vld [vmem:[%s3 + $0x940] sm:$0xff]
    %v820 = vld [vmem:[%s3 + $0x948] sm:$0xff]
    %v821 = vld [vmem:[%s3 + $0x950] sm:$0xff]
    %v822 = vld [vmem:[%s3 + $0x958] sm:$0xff]
    %v823 = vld [vmem:[%s3 + $0x960] sm:$0xff]
    %v824 = vld [vmem:[%s3 + $0x968] sm:$0xff]
    %v825 = vld [vmem:[%s3 + $0x970] sm:$0xff]
    %v826 = vld [vmem:[%s3 + $0x978] sm:$0xff]
    %v827 = vld [vmem:[%s3 + $0x980] sm:$0xff]
    %v828 = vld [vmem:[%s3 + $0x988] sm:$0xff]
    %v829 = vld [vmem:[%s3 + $0x990] sm:$0xff]
    %v830 = vld [vmem:[%s3 + $0x998] sm:$0xff]
    %v831 = vld [vmem:[%s3 + $0x9a0] sm:$0xff]
    %v832 = vld [vmem:[%s3 + $0x9a8] sm:$0xff]
    %v833 = vld [vmem:[%s3 + $0x9b0] sm:$0xff]
    %v834 = vld [vmem:[%s3 + $0x9b8] sm:$0xff]
    %v835 = vld [vmem:[%s3 + $0x9c0] sm:$0xff]
    %v836 = vld [vmem:[%s3 + $0x9c8] sm:$0xff]
    %v837 = vld [vmem:[%s3 + $0x9d0] sm:$0xff]
    %v838 = vld [vmem:[%s3 + $0x9d8] sm:$0xff]
    %v839 = vld [vmem:[%s3 + $0x9e0] sm:$0xff]
    %v840 = vld [vmem:[%s3 + $0x9e8] sm:$0xff]
    %v841 = vld [vmem:[%s3 + $0x9f0] sm:$0xff]
    %v842 = vld [vmem:[%s3 + $0x9f8] sm:$0xff]
    %v907 = vunpack.c.l.b16 %v523
    %v908 = vunpack.c.h.b16 %v523
    %v909 = vunpack.c.l.b16 %v524
    %v910 = vunpack.c.h.b16 %v524
    %v911 = vunpack.c.l.b16 %v525
    %v912 = vunpack.c.h.b16 %v525
    %v913 = vunpack.c.l.b16 %v526
    %v914 = vunpack.c.h.b16 %v526
    %v915 = vunpack.c.l.b16 %v527
    %v916 = vunpack.c.h.b16 %v527
    %v917 = vunpack.c.l.b16 %v528
    %v918 = vunpack.c.h.b16 %v528
    %v919 = vunpack.c.l.b16 %v529
    %v920 = vunpack.c.h.b16 %v529
    %v921 = vunpack.c.l.b16 %v530
    %v922 = vunpack.c.h.b16 %v530
    %v923 = vunpack.c.l.b16 %v531
    %v924 = vunpack.c.h.b16 %v531
    %v925 = vunpack.c.l.b16 %v532
    %v926 = vunpack.c.h.b16 %v532
    %v927 = vunpack.c.l.b16 %v533
    %v928 = vunpack.c.h.b16 %v533
    %v929 = vunpack.c.l.b16 %v534
    %v930 = vunpack.c.h.b16 %v534
    %v931 = vunpack.c.l.b16 %v535
    %v932 = vunpack.c.h.b16 %v535
    %v933 = vunpack.c.l.b16 %v536
    %v934 = vunpack.c.h.b16 %v536
    %v935 = vunpack.c.l.b16 %v537
    %v936 = vunpack.c.h.b16 %v537
    %v937 = vunpack.c.l.b16 %v538
    %v938 = vunpack.c.h.b16 %v538
    %v939 = vunpack.c.l.b16 %v539
    %v940 = vunpack.c.h.b16 %v539
    %v941 = vunpack.c.l.b16 %v540
    %v942 = vunpack.c.h.b16 %v540
    %v943 = vunpack.c.l.b16 %v541
    %v944 = vunpack.c.h.b16 %v541
    %v945 = vunpack.c.l.b16 %v542
    %v946 = vunpack.c.h.b16 %v542
    %v947 = vunpack.c.l.b16 %v543
    %v948 = vunpack.c.h.b16 %v543
    %v949 = vunpack.c.l.b16 %v544
    %v950 = vunpack.c.h.b16 %v544
    %v951 = vunpack.c.l.b16 %v545
    %v952 = vunpack.c.h.b16 %v545
    %v953 = vunpack.c.l.b16 %v546
    %v954 = vunpack.c.h.b16 %v546
    %v955 = vunpack.c.l.b16 %v547
    %v956 = vunpack.c.h.b16 %v547
    %v957 = vunpack.c.l.b16 %v548
    %v958 = vunpack.c.h.b16 %v548
    %v959 = vunpack.c.l.b16 %v549
    %v960 = vunpack.c.h.b16 %v549
    %v961 = vunpack.c.l.b16 %v550
    %v962 = vunpack.c.h.b16 %v550
    %v963 = vunpack.c.l.b16 %v551
    %v964 = vunpack.c.h.b16 %v551
    %v965 = vunpack.c.l.b16 %v552
    %v966 = vunpack.c.h.b16 %v552
    %v967 = vunpack.c.l.b16 %v553
    %v968 = vunpack.c.h.b16 %v553
    %v969 = vunpack.c.l.b16 %v554
    %v970 = vunpack.c.h.b16 %v554
    %v971 = vunpack.c.l.b16 %v555
    %v972 = vunpack.c.h.b16 %v555
    %v973 = vunpack.c.l.b16 %v556
    %v974 = vunpack.c.h.b16 %v556
    %v975 = vunpack.c.l.b16 %v557
    %v976 = vunpack.c.h.b16 %v557
    %v977 = vunpack.c.l.b16 %v558
    %v978 = vunpack.c.h.b16 %v558
    %v979 = vunpack.c.l.b16 %v559
    %v980 = vunpack.c.h.b16 %v559
    %v981 = vunpack.c.l.b16 %v560
    %v982 = vunpack.c.h.b16 %v560
    %v983 = vunpack.c.l.b16 %v561
    %v984 = vunpack.c.h.b16 %v561
    %v985 = vunpack.c.l.b16 %v562
    %v986 = vunpack.c.h.b16 %v562
    %v987 = vunpack.c.l.b16 %v563
    %v988 = vunpack.c.h.b16 %v563
    %v989 = vunpack.c.l.b16 %v564
    %v990 = vunpack.c.h.b16 %v564
    %v991 = vunpack.c.l.b16 %v565
    %v992 = vunpack.c.h.b16 %v565
    %v993 = vunpack.c.l.b16 %v566
    %v994 = vunpack.c.h.b16 %v566
    %v995 = vunpack.c.l.b16 %v567
    %v996 = vunpack.c.h.b16 %v567
    %v997 = vunpack.c.l.b16 %v568
    %v998 = vunpack.c.h.b16 %v568
    %v999 = vunpack.c.l.b16 %v569
    %v1000 = vunpack.c.h.b16 %v569
    %v1001 = vunpack.c.l.b16 %v570
    %v1002 = vunpack.c.h.b16 %v570
    %v1003 = vunpack.c.l.b16 %v571
    %v1004 = vunpack.c.h.b16 %v571
    %v1005 = vunpack.c.l.b16 %v572
    %v1006 = vunpack.c.h.b16 %v572
    %v1007 = vunpack.c.l.b16 %v573
    %v1008 = vunpack.c.h.b16 %v573
    %v1009 = vunpack.c.l.b16 %v574
    %v1010 = vunpack.c.h.b16 %v574
    %v1011 = vunpack.c.l.b16 %v575
    %v1012 = vunpack.c.h.b16 %v575
    %v1013 = vunpack.c.l.b16 %v576
    %v1014 = vunpack.c.h.b16 %v576
    %v1015 = vunpack.c.l.b16 %v577
    %v1016 = vunpack.c.h.b16 %v577
    %v1017 = vunpack.c.l.b16 %v578
    %v1018 = vunpack.c.h.b16 %v578
    %v1019 = vunpack.c.l.b16 %v579
    %v1020 = vunpack.c.h.b16 %v579
    %v1021 = vunpack.c.l.b16 %v580
    %v1022 = vunpack.c.h.b16 %v580
    %v1023 = vunpack.c.l.b16 %v581
    %v1024 = vunpack.c.h.b16 %v581
    %v1025 = vunpack.c.l.b16 %v582
    %v1026 = vunpack.c.h.b16 %v582
    %v1027 = vunpack.c.l.b16 %v583
    %v1028 = vunpack.c.h.b16 %v583
    %v1029 = vunpack.c.l.b16 %v584
    %v1030 = vunpack.c.h.b16 %v584
    %v1031 = vunpack.c.l.b16 %v585
    %v1032 = vunpack.c.h.b16 %v585
    %v1033 = vunpack.c.l.b16 %v586
    %v1034 = vunpack.c.h.b16 %v586
    %v1035 = vpack.c.b16 %v915, %v907
    %v1036 = vpack.c.b16 %v916, %v908
    %v1037 = vpack.c.b16 %v917, %v909
    %v1038 = vpack.c.b16 %v918, %v910
    %v1039 = vpack.c.b16 %v919, %v911
    %v1040 = vpack.c.b16 %v920, %v912
    %v1041 = vpack.c.b16 %v921, %v913
    %v1042 = vpack.c.b16 %v922, %v914
    %v1043 = vpack.c.b16 %v931, %v923
    %v1044 = vpack.c.b16 %v932, %v924
    %v1045 = vpack.c.b16 %v933, %v925
    %v1046 = vpack.c.b16 %v934, %v926
    %v1047 = vpack.c.b16 %v935, %v927
    %v1048 = vpack.c.b16 %v936, %v928
    %v1049 = vpack.c.b16 %v937, %v929
    %v1050 = vpack.c.b16 %v938, %v930
    %v1051 = vpack.c.b16 %v947, %v939
    %v1052 = vpack.c.b16 %v948, %v940
    %v1053 = vpack.c.b16 %v949, %v941
    %v1054 = vpack.c.b16 %v950, %v942
    %v1055 = vpack.c.b16 %v951, %v943
    %v1056 = vpack.c.b16 %v952, %v944
    %v1057 = vpack.c.b16 %v953, %v945
    %v1058 = vpack.c.b16 %v954, %v946
    %v1059 = vpack.c.b16 %v963, %v955
    %v1060 = vpack.c.b16 %v964, %v956
    %v1061 = vpack.c.b16 %v965, %v957
    %v1062 = vpack.c.b16 %v966, %v958
    %v1063 = vpack.c.b16 %v967, %v959
    %v1064 = vpack.c.b16 %v968, %v960
    %v1065 = vpack.c.b16 %v969, %v961
    %v1066 = vpack.c.b16 %v970, %v962
    %v1067 = vpack.c.b16 %v979, %v971
    %v1068 = vpack.c.b16 %v980, %v972
    %v1069 = vpack.c.b16 %v981, %v973
    %v1070 = vpack.c.b16 %v982, %v974
    %v1071 = vpack.c.b16 %v983, %v975
    %v1072 = vpack.c.b16 %v984, %v976
    %v1073 = vpack.c.b16 %v985, %v977
    %v1074 = vpack.c.b16 %v986, %v978
    %v1075 = vpack.c.b16 %v995, %v987
    %v1076 = vpack.c.b16 %v996, %v988
    %v1077 = vpack.c.b16 %v997, %v989
    %v1078 = vpack.c.b16 %v998, %v990
    %v1079 = vpack.c.b16 %v999, %v991
    %v1080 = vpack.c.b16 %v1000, %v992
    %v1081 = vpack.c.b16 %v1001, %v993
    %v1082 = vpack.c.b16 %v1002, %v994
    %v1083 = vpack.c.b16 %v1011, %v1003
    %v1084 = vpack.c.b16 %v1012, %v1004
    %v1085 = vpack.c.b16 %v1013, %v1005
    %v1086 = vpack.c.b16 %v1014, %v1006
    %v1087 = vpack.c.b16 %v1015, %v1007
    %v1088 = vpack.c.b16 %v1016, %v1008
    %v1089 = vpack.c.b16 %v1017, %v1009
    %v1090 = vpack.c.b16 %v1018, %v1010
    %v1091 = vpack.c.b16 %v1027, %v1019
    %v1092 = vpack.c.b16 %v1028, %v1020
    %v1093 = vpack.c.b16 %v1029, %v1021
    %v1094 = vpack.c.b16 %v1030, %v1022
    %v1095 = vpack.c.b16 %v1031, %v1023
    %v1096 = vpack.c.b16 %v1032, %v1024
    %v1097 = vpack.c.b16 %v1033, %v1025
    %v1098 = vpack.c.b16 %v1034, %v1026
    %1163 = vmatpush.bf16.msra.mxu0 %v1091
    %1164 = vmatpush.bf16.msra.mxu0 %v1083
    %1165 = vmatpush.bf16.msra.mxu0 %v1075
    %1166 = vmatpush.bf16.msra.mxu0 %v1067
    %1167 = vmatpush.bf16.msra.mxu0 %v1059
    %1168 = vmatpush.bf16.msra.mxu0 %v1051
    %1169 = vmatpush.bf16.msra.mxu0 %v1043
    %1170 = vmatpush.bf16.msra.mxu0 %v1035
    %1171 = vmatmul.bf16.gmra.mxu0 %v518
    %v1172 = vpop.f32.mrf.mxu0
    %v1173 = vadd.f32 0.0, %v1172
    %v1174 = vpop.f32.mrf.mxu0
    %1175 = vdwg.mxu0
    %1176 = vmatpush.bf16.msra.mxu0 %v1092
    %1177 = vmatpush.bf16.msra.mxu0 %v1084
    %1178 = vmatpush.bf16.msra.mxu0 %v1076
    %1179 = vmatpush.bf16.msra.mxu0 %v1068
    %1180 = vmatpush.bf16.msra.mxu0 %v1060
    %1181 = vmatpush.bf16.msra.mxu0 %v1052
    %1182 = vmatpush.bf16.msra.mxu0 %v1044
    %1183 = vmatpush.bf16.msra.mxu0 %v1036
    %1184 = vmatmul.bf16.gmra.mxu0 %v518
    %v1185 = vpop.f32.mrf.mxu0
    %v1186 = vadd.f32 0.0, %v1185
    %v1187 = vpop.f32.mrf.mxu0
    %1188 = vdwg.mxu0
    %1189 = vmatpush.bf16.msra.mxu0 %v1093
    %1190 = vmatpush.bf16.msra.mxu0 %v1085
    %1191 = vmatpush.bf16.msra.mxu0 %v1077
    %1192 = vmatpush.bf16.msra.mxu0 %v1069
    %1193 = vmatpush.bf16.msra.mxu0 %v1061
    %1194 = vmatpush.bf16.msra.mxu0 %v1053
    %1195 = vmatpush.bf16.msra.mxu0 %v1045
    %1196 = vmatpush.bf16.msra.mxu0 %v1037
    %1197 = vmatmul.bf16.gmra.mxu0 %v518
    %v1198 = vpop.f32.mrf.mxu0
    %v1199 = vadd.f32 0.0, %v1198
    %v1200 = vpop.f32.mrf.mxu0
    %1201 = vdwg.mxu0
    %1202 = vmatpush.bf16.msra.mxu0 %v1094
    %1203 = vmatpush.bf16.msra.mxu0 %v1086
    %1204 = vmatpush.bf16.msra.mxu0 %v1078
    %1205 = vmatpush.bf16.msra.mxu0 %v1070
    %1206 = vmatpush.bf16.msra.mxu0 %v1062
    %1207 = vmatpush.bf16.msra.mxu0 %v1054
    %1208 = vmatpush.bf16.msra.mxu0 %v1046
    %1209 = vmatpush.bf16.msra.mxu0 %v1038
    %1210 = vmatmul.bf16.gmra.mxu0 %v518
    %v1211 = vpop.f32.mrf.mxu0
    %v1212 = vadd.f32 0.0, %v1211
    %v1213 = vpop.f32.mrf.mxu0
    %1214 = vdwg.mxu0
    %1215 = vmatpush.bf16.msra.mxu0 %v1095
    %1216 = vmatpush.bf16.msra.mxu0 %v1087
    %1217 = vmatpush.bf16.msra.mxu0 %v1079
    %1218 = vmatpush.bf16.msra.mxu0 %v1071
    %1219 = vmatpush.bf16.msra.mxu0 %v1063
    %1220 = vmatpush.bf16.msra.mxu0 %v1055
    %1221 = vmatpush.bf16.msra.mxu0 %v1047
    %1222 = vmatpush.bf16.msra.mxu0 %v1039
    %1223 = vmatmul.bf16.gmra.mxu0 %v518
    %v1224 = vpop.f32.mrf.mxu0
    %v1225 = vadd.f32 0.0, %v1224
    %v1226 = vpop.f32.mrf.mxu0
    %1227 = vdwg.mxu0
    %1228 = vmatpush.bf16.msra.mxu0 %v1096
    %1229 = vmatpush.bf16.msra.mxu0 %v1088
    %1230 = vmatpush.bf16.msra.mxu0 %v1080
    %1231 = vmatpush.bf16.msra.mxu0 %v1072
    %1232 = vmatpush.bf16.msra.mxu0 %v1064
    %1233 = vmatpush.bf16.msra.mxu0 %v1056
    %1234 = vmatpush.bf16.msra.mxu0 %v1048
    %1235 = vmatpush.bf16.msra.mxu0 %v1040
    %1236 = vmatmul.bf16.gmra.mxu0 %v518
    %v1237 = vpop.f32.mrf.mxu0
    %v1238 = vadd.f32 0.0, %v1237
    %v1239 = vpop.f32.mrf.mxu0
    %1240 = vdwg.mxu0
    %1241 = vmatpush.bf16.msra.mxu0 %v1097
    %1242 = vmatpush.bf16.msra.mxu0 %v1089
    %1243 = vmatpush.bf16.msra.mxu0 %v1081
    %1244 = vmatpush.bf16.msra.mxu0 %v1073
    %1245 = vmatpush.bf16.msra.mxu0 %v1065
    %1246 = vmatpush.bf16.msra.mxu0 %v1057
    %1247 = vmatpush.bf16.msra.mxu0 %v1049
    %1248 = vmatpush.bf16.msra.mxu0 %v1041
    %1249 = vmatmul.bf16.gmra.mxu0 %v518
    %v1250 = vpop.f32.mrf.mxu0
    %v1251 = vadd.f32 0.0, %v1250
    %v1252 = vpop.f32.mrf.mxu0
    %1253 = vdwg.mxu0
    %1254 = vmatpush.bf16.msra.mxu0 %v1098
    %1255 = vmatpush.bf16.msra.mxu0 %v1090
    %1256 = vmatpush.bf16.msra.mxu0 %v1082
    %1257 = vmatpush.bf16.msra.mxu0 %v1074
    %1258 = vmatpush.bf16.msra.mxu0 %v1066
    %1259 = vmatpush.bf16.msra.mxu0 %v1058
    %1260 = vmatpush.bf16.msra.mxu0 %v1050
    %1261 = vmatpush.bf16.msra.mxu0 %v1042
    %1262 = vmatmul.bf16.gmra.mxu0 %v518
    %v1263 = vpop.f32.mrf.mxu0
    %v1264 = vadd.f32 0.0, %v1263
    %v1265 = vpop.f32.mrf.mxu0
    %1266 = vdwg.mxu0
    %v1331 = vunpack.c.l.b16 %v587
    %v1332 = vunpack.c.h.b16 %v587
    %v1333 = vunpack.c.l.b16 %v588
    %v1334 = vunpack.c.h.b16 %v588
    %v1335 = vunpack.c.l.b16 %v589
    %v1336 = vunpack.c.h.b16 %v589
    %v1337 = vunpack.c.l.b16 %v590
    %v1338 = vunpack.c.h.b16 %v590
    %v1339 = vunpack.c.l.b16 %v591
    %v1340 = vunpack.c.h.b16 %v591
    %v1341 = vunpack.c.l.b16 %v592
    %v1342 = vunpack.c.h.b16 %v592
    %v1343 = vunpack.c.l.b16 %v593
    %v1344 = vunpack.c.h.b16 %v593
    %v1345 = vunpack.c.l.b16 %v594
    %v1346 = vunpack.c.h.b16 %v594
    %v1347 = vunpack.c.l.b16 %v595
    %v1348 = vunpack.c.h.b16 %v595
    %v1349 = vunpack.c.l.b16 %v596
    %v1350 = vunpack.c.h.b16 %v596
    %v1351 = vunpack.c.l.b16 %v597
    %v1352 = vunpack.c.h.b16 %v597
    %v1353 = vunpack.c.l.b16 %v598
    %v1354 = vunpack.c.h.b16 %v598
    %v1355 = vunpack.c.l.b16 %v599
    %v1356 = vunpack.c.h.b16 %v599
    %v1357 = vunpack.c.l.b16 %v600
    %v1358 = vunpack.c.h.b16 %v600
    %v1359 = vunpack.c.l.b16 %v601
    %v1360 = vunpack.c.h.b16 %v601
    %v1361 = vunpack.c.l.b16 %v602
    %v1362 = vunpack.c.h.b16 %v602
    %v1363 = vunpack.c.l.b16 %v603
    %v1364 = vunpack.c.h.b16 %v603
    %v1365 = vunpack.c.l.b16 %v604
    %v1366 = vunpack.c.h.b16 %v604
    %v1367 = vunpack.c.l.b16 %v605
    %v1368 = vunpack.c.h.b16 %v605
    %v1369 = vunpack.c.l.b16 %v606
    %v1370 = vunpack.c.h.b16 %v606
    %v1371 = vunpack.c.l.b16 %v607
    %v1372 = vunpack.c.h.b16 %v607
    %v1373 = vunpack.c.l.b16 %v608
    %v1374 = vunpack.c.h.b16 %v608
    %v1375 = vunpack.c.l.b16 %v609
    %v1376 = vunpack.c.h.b16 %v609
    %v1377 = vunpack.c.l.b16 %v610
    %v1378 = vunpack.c.h.b16 %v610
    %v1379 = vunpack.c.l.b16 %v611
    %v1380 = vunpack.c.h.b16 %v611
    %v1381 = vunpack.c.l.b16 %v612
    %v1382 = vunpack.c.h.b16 %v612
    %v1383 = vunpack.c.l.b16 %v613
    %v1384 = vunpack.c.h.b16 %v613
    %v1385 = vunpack.c.l.b16 %v614
    %v1386 = vunpack.c.h.b16 %v614
    %v1387 = vunpack.c.l.b16 %v615
    %v1388 = vunpack.c.h.b16 %v615
    %v1389 = vunpack.c.l.b16 %v616
    %v1390 = vunpack.c.h.b16 %v616
    %v1391 = vunpack.c.l.b16 %v617
    %v1392 = vunpack.c.h.b16 %v617
    %v1393 = vunpack.c.l.b16 %v618
    %v1394 = vunpack.c.h.b16 %v618
    %v1395 = vunpack.c.l.b16 %v619
    %v1396 = vunpack.c.h.b16 %v619
    %v1397 = vunpack.c.l.b16 %v620
    %v1398 = vunpack.c.h.b16 %v620
    %v1399 = vunpack.c.l.b16 %v621
    %v1400 = vunpack.c.h.b16 %v621
    %v1401 = vunpack.c.l.b16 %v622
    %v1402 = vunpack.c.h.b16 %v622
    %v1403 = vunpack.c.l.b16 %v623
    %v1404 = vunpack.c.h.b16 %v623
    %v1405 = vunpack.c.l.b16 %v624
    %v1406 = vunpack.c.h.b16 %v624
    %v1407 = vunpack.c.l.b16 %v625
    %v1408 = vunpack.c.h.b16 %v625
    %v1409 = vunpack.c.l.b16 %v626
    %v1410 = vunpack.c.h.b16 %v626
    %v1411 = vunpack.c.l.b16 %v627
    %v1412 = vunpack.c.h.b16 %v627
    %v1413 = vunpack.c.l.b16 %v628
    %v1414 = vunpack.c.h.b16 %v628
    %v1415 = vunpack.c.l.b16 %v629
    %v1416 = vunpack.c.h.b16 %v629
    %v1417 = vunpack.c.l.b16 %v630
    %v1418 = vunpack.c.h.b16 %v630
    %v1419 = vunpack.c.l.b16 %v631
    %v1420 = vunpack.c.h.b16 %v631
    %v1421 = vunpack.c.l.b16 %v632
    %v1422 = vunpack.c.h.b16 %v632
    %v1423 = vunpack.c.l.b16 %v633
    %v1424 = vunpack.c.h.b16 %v633
    %v1425 = vunpack.c.l.b16 %v634
    %v1426 = vunpack.c.h.b16 %v634
    %v1427 = vunpack.c.l.b16 %v635
    %v1428 = vunpack.c.h.b16 %v635
    %v1429 = vunpack.c.l.b16 %v636
    %v1430 = vunpack.c.h.b16 %v636
    %v1431 = vunpack.c.l.b16 %v637
    %v1432 = vunpack.c.h.b16 %v637
    %v1433 = vunpack.c.l.b16 %v638
    %v1434 = vunpack.c.h.b16 %v638
    %v1435 = vunpack.c.l.b16 %v639
    %v1436 = vunpack.c.h.b16 %v639
    %v1437 = vunpack.c.l.b16 %v640
    %v1438 = vunpack.c.h.b16 %v640
    %v1439 = vunpack.c.l.b16 %v641
    %v1440 = vunpack.c.h.b16 %v641
    %v1441 = vunpack.c.l.b16 %v642
    %v1442 = vunpack.c.h.b16 %v642
    %v1443 = vunpack.c.l.b16 %v643
    %v1444 = vunpack.c.h.b16 %v643
    %v1445 = vunpack.c.l.b16 %v644
    %v1446 = vunpack.c.h.b16 %v644
    %v1447 = vunpack.c.l.b16 %v645
    %v1448 = vunpack.c.h.b16 %v645
    %v1449 = vunpack.c.l.b16 %v646
    %v1450 = vunpack.c.h.b16 %v646
    %v1451 = vunpack.c.l.b16 %v647
    %v1452 = vunpack.c.h.b16 %v647
    %v1453 = vunpack.c.l.b16 %v648
    %v1454 = vunpack.c.h.b16 %v648
    %v1455 = vunpack.c.l.b16 %v649
    %v1456 = vunpack.c.h.b16 %v649
    %v1457 = vunpack.c.l.b16 %v650
    %v1458 = vunpack.c.h.b16 %v650
    %v1459 = vpack.c.b16 %v1339, %v1331
    %v1460 = vpack.c.b16 %v1340, %v1332
    %v1461 = vpack.c.b16 %v1341, %v1333
    %v1462 = vpack.c.b16 %v1342, %v1334
    %v1463 = vpack.c.b16 %v1343, %v1335
    %v1464 = vpack.c.b16 %v1344, %v1336
    %v1465 = vpack.c.b16 %v1345, %v1337
    %v1466 = vpack.c.b16 %v1346, %v1338
    %v1467 = vpack.c.b16 %v1355, %v1347
    %v1468 = vpack.c.b16 %v1356, %v1348
    %v1469 = vpack.c.b16 %v1357, %v1349
    %v1470 = vpack.c.b16 %v1358, %v1350
    %v1471 = vpack.c.b16 %v1359, %v1351
    %v1472 = vpack.c.b16 %v1360, %v1352
    %v1473 = vpack.c.b16 %v1361, %v1353
    %v1474 = vpack.c.b16 %v1362, %v1354
    %v1475 = vpack.c.b16 %v1371, %v1363
    %v1476 = vpack.c.b16 %v1372, %v1364
    %v1477 = vpack.c.b16 %v1373, %v1365
    %v1478 = vpack.c.b16 %v1374, %v1366
    %v1479 = vpack.c.b16 %v1375, %v1367
    %v1480 = vpack.c.b16 %v1376, %v1368
    %v1481 = vpack.c.b16 %v1377, %v1369
    %v1482 = vpack.c.b16 %v1378, %v1370
    %v1483 = vpack.c.b16 %v1387, %v1379
    %v1484 = vpack.c.b16 %v1388, %v1380
    %v1485 = vpack.c.b16 %v1389, %v1381
    %v1486 = vpack.c.b16 %v1390, %v1382
    %v1487 = vpack.c.b16 %v1391, %v1383
    %v1488 = vpack.c.b16 %v1392, %v1384
    %v1489 = vpack.c.b16 %v1393, %v1385
    %v1490 = vpack.c.b16 %v1394, %v1386
    %v1491 = vpack.c.b16 %v1403, %v1395
    %v1492 = vpack.c.b16 %v1404, %v1396
    %v1493 = vpack.c.b16 %v1405, %v1397
    %v1494 = vpack.c.b16 %v1406, %v1398
    %v1495 = vpack.c.b16 %v1407, %v1399
    %v1496 = vpack.c.b16 %v1408, %v1400
    %v1497 = vpack.c.b16 %v1409, %v1401
    %v1498 = vpack.c.b16 %v1410, %v1402
    %v1499 = vpack.c.b16 %v1419, %v1411
    %v1500 = vpack.c.b16 %v1420, %v1412
    %v1501 = vpack.c.b16 %v1421, %v1413
    %v1502 = vpack.c.b16 %v1422, %v1414
    %v1503 = vpack.c.b16 %v1423, %v1415
    %v1504 = vpack.c.b16 %v1424, %v1416
    %v1505 = vpack.c.b16 %v1425, %v1417
    %v1506 = vpack.c.b16 %v1426, %v1418
    %v1507 = vpack.c.b16 %v1435, %v1427
    %v1508 = vpack.c.b16 %v1436, %v1428
    %v1509 = vpack.c.b16 %v1437, %v1429
    %v1510 = vpack.c.b16 %v1438, %v1430
    %v1511 = vpack.c.b16 %v1439, %v1431
    %v1512 = vpack.c.b16 %v1440, %v1432
    %v1513 = vpack.c.b16 %v1441, %v1433
    %v1514 = vpack.c.b16 %v1442, %v1434
    %v1515 = vpack.c.b16 %v1451, %v1443
    %v1516 = vpack.c.b16 %v1452, %v1444
    %v1517 = vpack.c.b16 %v1453, %v1445
    %v1518 = vpack.c.b16 %v1454, %v1446
    %v1519 = vpack.c.b16 %v1455, %v1447
    %v1520 = vpack.c.b16 %v1456, %v1448
    %v1521 = vpack.c.b16 %v1457, %v1449
    %v1522 = vpack.c.b16 %v1458, %v1450
    %1587 = vmatpush.bf16.msra.mxu0 %v1515
    %1588 = vmatpush.bf16.msra.mxu0 %v1507
    %1589 = vmatpush.bf16.msra.mxu0 %v1499
    %1590 = vmatpush.bf16.msra.mxu0 %v1491
    %1591 = vmatpush.bf16.msra.mxu0 %v1483
    %1592 = vmatpush.bf16.msra.mxu0 %v1475
    %1593 = vmatpush.bf16.msra.mxu0 %v1467
    %1594 = vmatpush.bf16.msra.mxu0 %v1459
    %1595 = vmatmul.bf16.gmra.mxu0 %v519
    %v1596 = vpop.f32.mrf.mxu0
    %v1597 = vadd.f32 0.0, %v1596
    %v1598 = vpop.f32.mrf.mxu0
    %1599 = vdwg.mxu0
    %1600 = vmatpush.bf16.msra.mxu0 %v1516
    %1601 = vmatpush.bf16.msra.mxu0 %v1508
    %1602 = vmatpush.bf16.msra.mxu0 %v1500
    %1603 = vmatpush.bf16.msra.mxu0 %v1492
    %1604 = vmatpush.bf16.msra.mxu0 %v1484
    %1605 = vmatpush.bf16.msra.mxu0 %v1476
    %1606 = vmatpush.bf16.msra.mxu0 %v1468
    %1607 = vmatpush.bf16.msra.mxu0 %v1460
    %1608 = vmatmul.bf16.gmra.mxu0 %v519
    %v1609 = vpop.f32.mrf.mxu0
    %v1610 = vadd.f32 0.0, %v1609
    %v1611 = vpop.f32.mrf.mxu0
    %1612 = vdwg.mxu0
    %1613 = vmatpush.bf16.msra.mxu0 %v1517
    %1614 = vmatpush.bf16.msra.mxu0 %v1509
    %1615 = vmatpush.bf16.msra.mxu0 %v1501
    %1616 = vmatpush.bf16.msra.mxu0 %v1493
    %1617 = vmatpush.bf16.msra.mxu0 %v1485
    %1618 = vmatpush.bf16.msra.mxu0 %v1477
    %1619 = vmatpush.bf16.msra.mxu0 %v1469
    %1620 = vmatpush.bf16.msra.mxu0 %v1461
    %1621 = vmatmul.bf16.gmra.mxu0 %v519
    %v1622 = vpop.f32.mrf.mxu0
    %v1623 = vadd.f32 0.0, %v1622
    %v1624 = vpop.f32.mrf.mxu0
    %1625 = vdwg.mxu0
    %1626 = vmatpush.bf16.msra.mxu0 %v1518
    %1627 = vmatpush.bf16.msra.mxu0 %v1510
    %1628 = vmatpush.bf16.msra.mxu0 %v1502
    %1629 = vmatpush.bf16.msra.mxu0 %v1494
    %1630 = vmatpush.bf16.msra.mxu0 %v1486
    %1631 = vmatpush.bf16.msra.mxu0 %v1478
    %1632 = vmatpush.bf16.msra.mxu0 %v1470
    %1633 = vmatpush.bf16.msra.mxu0 %v1462
    %1634 = vmatmul.bf16.gmra.mxu0 %v519
    %v1635 = vpop.f32.mrf.mxu0
    %v1636 = vadd.f32 0.0, %v1635
    %v1637 = vpop.f32.mrf.mxu0
    %1638 = vdwg.mxu0
    %1639 = vmatpush.bf16.msra.mxu0 %v1519
    %1640 = vmatpush.bf16.msra.mxu0 %v1511
    %1641 = vmatpush.bf16.msra.mxu0 %v1503
    %1642 = vmatpush.bf16.msra.mxu0 %v1495
    %1643 = vmatpush.bf16.msra.mxu0 %v1487
    %1644 = vmatpush.bf16.msra.mxu0 %v1479
    %1645 = vmatpush.bf16.msra.mxu0 %v1471
    %1646 = vmatpush.bf16.msra.mxu0 %v1463
    %1647 = vmatmul.bf16.gmra.mxu0 %v519
    %v1648 = vpop.f32.mrf.mxu0
    %v1649 = vadd.f32 0.0, %v1648
    %v1650 = vpop.f32.mrf.mxu0
    %1651 = vdwg.mxu0
    %1652 = vmatpush.bf16.msra.mxu0 %v1520
    %1653 = vmatpush.bf16.msra.mxu0 %v1512
    %1654 = vmatpush.bf16.msra.mxu0 %v1504
    %1655 = vmatpush.bf16.msra.mxu0 %v1496
    %1656 = vmatpush.bf16.msra.mxu0 %v1488
    %1657 = vmatpush.bf16.msra.mxu0 %v1480
    %1658 = vmatpush.bf16.msra.mxu0 %v1472
    %1659 = vmatpush.bf16.msra.mxu0 %v1464
    %1660 = vmatmul.bf16.gmra.mxu0 %v519
    %v1661 = vpop.f32.mrf.mxu0
    %v1662 = vadd.f32 0.0, %v1661
    %v1663 = vpop.f32.mrf.mxu0
    %1664 = vdwg.mxu0
    %1665 = vmatpush.bf16.msra.mxu0 %v1521
    %1666 = vmatpush.bf16.msra.mxu0 %v1513
    %1667 = vmatpush.bf16.msra.mxu0 %v1505
    %1668 = vmatpush.bf16.msra.mxu0 %v1497
    %1669 = vmatpush.bf16.msra.mxu0 %v1489
    %1670 = vmatpush.bf16.msra.mxu0 %v1481
    %1671 = vmatpush.bf16.msra.mxu0 %v1473
    %1672 = vmatpush.bf16.msra.mxu0 %v1465
    %1673 = vmatmul.bf16.gmra.mxu0 %v519
    %v1674 = vpop.f32.mrf.mxu0
    %v1675 = vadd.f32 0.0, %v1674
    %v1676 = vpop.f32.mrf.mxu0
    %1677 = vdwg.mxu0
    %1678 = vmatpush.bf16.msra.mxu0 %v1522
    %1679 = vmatpush.bf16.msra.mxu0 %v1514
    %1680 = vmatpush.bf16.msra.mxu0 %v1506
    %1681 = vmatpush.bf16.msra.mxu0 %v1498
    %1682 = vmatpush.bf16.msra.mxu0 %v1490
    %1683 = vmatpush.bf16.msra.mxu0 %v1482
    %1684 = vmatpush.bf16.msra.mxu0 %v1474
    %1685 = vmatpush.bf16.msra.mxu0 %v1466
    %1686 = vmatmul.bf16.gmra.mxu0 %v519
    %v1687 = vpop.f32.mrf.mxu0
    %v1688 = vadd.f32 0.0, %v1687
    %v1689 = vpop.f32.mrf.mxu0
    %1690 = vdwg.mxu0
    %v1755 = vunpack.c.l.b16 %v651
    %v1756 = vunpack.c.h.b16 %v651
    %v1757 = vunpack.c.l.b16 %v652
    %v1758 = vunpack.c.h.b16 %v652
    %v1759 = vunpack.c.l.b16 %v653
    %v1760 = vunpack.c.h.b16 %v653
    %v1761 = vunpack.c.l.b16 %v654
    %v1762 = vunpack.c.h.b16 %v654
    %v1763 = vunpack.c.l.b16 %v655
    %v1764 = vunpack.c.h.b16 %v655
    %v1765 = vunpack.c.l.b16 %v656
    %v1766 = vunpack.c.h.b16 %v656
    %v1767 = vunpack.c.l.b16 %v657
    %v1768 = vunpack.c.h.b16 %v657
    %v1769 = vunpack.c.l.b16 %v658
    %v1770 = vunpack.c.h.b16 %v658
    %v1771 = vunpack.c.l.b16 %v659
    %v1772 = vunpack.c.h.b16 %v659
    %v1773 = vunpack.c.l.b16 %v660
    %v1774 = vunpack.c.h.b16 %v660
    %v1775 = vunpack.c.l.b16 %v661
    %v1776 = vunpack.c.h.b16 %v661
    %v1777 = vunpack.c.l.b16 %v662
    %v1778 = vunpack.c.h.b16 %v662
    %v1779 = vunpack.c.l.b16 %v663
    %v1780 = vunpack.c.h.b16 %v663
    %v1781 = vunpack.c.l.b16 %v664
    %v1782 = vunpack.c.h.b16 %v664
    %v1783 = vunpack.c.l.b16 %v665
    %v1784 = vunpack.c.h.b16 %v665
    %v1785 = vunpack.c.l.b16 %v666
    %v1786 = vunpack.c.h.b16 %v666
    %v1787 = vunpack.c.l.b16 %v667
    %v1788 = vunpack.c.h.b16 %v667
    %v1789 = vunpack.c.l.b16 %v668
    %v1790 = vunpack.c.h.b16 %v668
    %v1791 = vunpack.c.l.b16 %v669
    %v1792 = vunpack.c.h.b16 %v669
    %v1793 = vunpack.c.l.b16 %v670
    %v1794 = vunpack.c.h.b16 %v670
    %v1795 = vunpack.c.l.b16 %v671
    %v1796 = vunpack.c.h.b16 %v671
    %v1797 = vunpack.c.l.b16 %v672
    %v1798 = vunpack.c.h.b16 %v672
    %v1799 = vunpack.c.l.b16 %v673
    %v1800 = vunpack.c.h.b16 %v673
    %v1801 = vunpack.c.l.b16 %v674
    %v1802 = vunpack.c.h.b16 %v674
    %v1803 = vunpack.c.l.b16 %v675
    %v1804 = vunpack.c.h.b16 %v675
    %v1805 = vunpack.c.l.b16 %v676
    %v1806 = vunpack.c.h.b16 %v676
    %v1807 = vunpack.c.l.b16 %v677
    %v1808 = vunpack.c.h.b16 %v677
    %v1809 = vunpack.c.l.b16 %v678
    %v1810 = vunpack.c.h.b16 %v678
    %v1811 = vunpack.c.l.b16 %v679
    %v1812 = vunpack.c.h.b16 %v679
    %v1813 = vunpack.c.l.b16 %v680
    %v1814 = vunpack.c.h.b16 %v680
    %v1815 = vunpack.c.l.b16 %v681
    %v1816 = vunpack.c.h.b16 %v681
    %v1817 = vunpack.c.l.b16 %v682
    %v1818 = vunpack.c.h.b16 %v682
    %v1819 = vunpack.c.l.b16 %v683
    %v1820 = vunpack.c.h.b16 %v683
    %v1821 = vunpack.c.l.b16 %v684
    %v1822 = vunpack.c.h.b16 %v684
    %v1823 = vunpack.c.l.b16 %v685
    %v1824 = vunpack.c.h.b16 %v685
    %v1825 = vunpack.c.l.b16 %v686
    %v1826 = vunpack.c.h.b16 %v686
    %v1827 = vunpack.c.l.b16 %v687
    %v1828 = vunpack.c.h.b16 %v687
    %v1829 = vunpack.c.l.b16 %v688
    %v1830 = vunpack.c.h.b16 %v688
    %v1831 = vunpack.c.l.b16 %v689
    %v1832 = vunpack.c.h.b16 %v689
    %v1833 = vunpack.c.l.b16 %v690
    %v1834 = vunpack.c.h.b16 %v690
    %v1835 = vunpack.c.l.b16 %v691
    %v1836 = vunpack.c.h.b16 %v691
    %v1837 = vunpack.c.l.b16 %v692
    %v1838 = vunpack.c.h.b16 %v692
    %v1839 = vunpack.c.l.b16 %v693
    %v1840 = vunpack.c.h.b16 %v693
    %v1841 = vunpack.c.l.b16 %v694
    %v1842 = vunpack.c.h.b16 %v694
    %v1843 = vunpack.c.l.b16 %v695
    %v1844 = vunpack.c.h.b16 %v695
    %v1845 = vunpack.c.l.b16 %v696
    %v1846 = vunpack.c.h.b16 %v696
    %v1847 = vunpack.c.l.b16 %v697
    %v1848 = vunpack.c.h.b16 %v697
    %v1849 = vunpack.c.l.b16 %v698
    %v1850 = vunpack.c.h.b16 %v698
    %v1851 = vunpack.c.l.b16 %v699
    %v1852 = vunpack.c.h.b16 %v699
    %v1853 = vunpack.c.l.b16 %v700
    %v1854 = vunpack.c.h.b16 %v700
    %v1855 = vunpack.c.l.b16 %v701
    %v1856 = vunpack.c.h.b16 %v701
    %v1857 = vunpack.c.l.b16 %v702
    %v1858 = vunpack.c.h.b16 %v702
    %v1859 = vunpack.c.l.b16 %v703
    %v1860 = vunpack.c.h.b16 %v703
    %v1861 = vunpack.c.l.b16 %v704
    %v1862 = vunpack.c.h.b16 %v704
    %v1863 = vunpack.c.l.b16 %v705
    %v1864 = vunpack.c.h.b16 %v705
    %v1865 = vunpack.c.l.b16 %v706
    %v1866 = vunpack.c.h.b16 %v706
    %v1867 = vunpack.c.l.b16 %v707
    %v1868 = vunpack.c.h.b16 %v707
    %v1869 = vunpack.c.l.b16 %v708
    %v1870 = vunpack.c.h.b16 %v708
    %v1871 = vunpack.c.l.b16 %v709
    %v1872 = vunpack.c.h.b16 %v709
    %v1873 = vunpack.c.l.b16 %v710
    %v1874 = vunpack.c.h.b16 %v710
    %v1875 = vunpack.c.l.b16 %v711
    %v1876 = vunpack.c.h.b16 %v711
    %v1877 = vunpack.c.l.b16 %v712
    %v1878 = vunpack.c.h.b16 %v712
    %v1879 = vunpack.c.l.b16 %v713
    %v1880 = vunpack.c.h.b16 %v713
    %v1881 = vunpack.c.l.b16 %v714
    %v1882 = vunpack.c.h.b16 %v714
    %v1883 = vpack.c.b16 %v1763, %v1755
    %v1884 = vpack.c.b16 %v1764, %v1756
    %v1885 = vpack.c.b16 %v1765, %v1757
    %v1886 = vpack.c.b16 %v1766, %v1758
    %v1887 = vpack.c.b16 %v1767, %v1759
    %v1888 = vpack.c.b16 %v1768, %v1760
    %v1889 = vpack.c.b16 %v1769, %v1761
    %v1890 = vpack.c.b16 %v1770, %v1762
    %v1891 = vpack.c.b16 %v1779, %v1771
    %v1892 = vpack.c.b16 %v1780, %v1772
    %v1893 = vpack.c.b16 %v1781, %v1773
    %v1894 = vpack.c.b16 %v1782, %v1774
    %v1895 = vpack.c.b16 %v1783, %v1775
    %v1896 = vpack.c.b16 %v1784, %v1776
    %v1897 = vpack.c.b16 %v1785, %v1777
    %v1898 = vpack.c.b16 %v1786, %v1778
    %v1899 = vpack.c.b16 %v1795, %v1787
    %v1900 = vpack.c.b16 %v1796, %v1788
    %v1901 = vpack.c.b16 %v1797, %v1789
    %v1902 = vpack.c.b16 %v1798, %v1790
    %v1903 = vpack.c.b16 %v1799, %v1791
    %v1904 = vpack.c.b16 %v1800, %v1792
    %v1905 = vpack.c.b16 %v1801, %v1793
    %v1906 = vpack.c.b16 %v1802, %v1794
    %v1907 = vpack.c.b16 %v1811, %v1803
    %v1908 = vpack.c.b16 %v1812, %v1804
    %v1909 = vpack.c.b16 %v1813, %v1805
    %v1910 = vpack.c.b16 %v1814, %v1806
    %v1911 = vpack.c.b16 %v1815, %v1807
    %v1912 = vpack.c.b16 %v1816, %v1808
    %v1913 = vpack.c.b16 %v1817, %v1809
    %v1914 = vpack.c.b16 %v1818, %v1810
    %v1915 = vpack.c.b16 %v1827, %v1819
    %v1916 = vpack.c.b16 %v1828, %v1820
    %v1917 = vpack.c.b16 %v1829, %v1821
    %v1918 = vpack.c.b16 %v1830, %v1822
    %v1919 = vpack.c.b16 %v1831, %v1823
    %v1920 = vpack.c.b16 %v1832, %v1824
    %v1921 = vpack.c.b16 %v1833, %v1825
    %v1922 = vpack.c.b16 %v1834, %v1826
    %v1923 = vpack.c.b16 %v1843, %v1835
    %v1924 = vpack.c.b16 %v1844, %v1836
    %v1925 = vpack.c.b16 %v1845, %v1837
    %v1926 = vpack.c.b16 %v1846, %v1838
    %v1927 = vpack.c.b16 %v1847, %v1839
    %v1928 = vpack.c.b16 %v1848, %v1840
    %v1929 = vpack.c.b16 %v1849, %v1841
    %v1930 = vpack.c.b16 %v1850, %v1842
    %v1931 = vpack.c.b16 %v1859, %v1851
    %v1932 = vpack.c.b16 %v1860, %v1852
    %v1933 = vpack.c.b16 %v1861, %v1853
    %v1934 = vpack.c.b16 %v1862, %v1854
    %v1935 = vpack.c.b16 %v1863, %v1855
    %v1936 = vpack.c.b16 %v1864, %v1856
    %v1937 = vpack.c.b16 %v1865, %v1857
    %v1938 = vpack.c.b16 %v1866, %v1858
    %v1939 = vpack.c.b16 %v1875, %v1867
    %v1940 = vpack.c.b16 %v1876, %v1868
    %v1941 = vpack.c.b16 %v1877, %v1869
    %v1942 = vpack.c.b16 %v1878, %v1870
    %v1943 = vpack.c.b16 %v1879, %v1871
    %v1944 = vpack.c.b16 %v1880, %v1872
    %v1945 = vpack.c.b16 %v1881, %v1873
    %v1946 = vpack.c.b16 %v1882, %v1874
    %2011 = vmatpush.bf16.msra.mxu0 %v1939
    %2012 = vmatpush.bf16.msra.mxu0 %v1931
    %2013 = vmatpush.bf16.msra.mxu0 %v1923
    %2014 = vmatpush.bf16.msra.mxu0 %v1915
    %2015 = vmatpush.bf16.msra.mxu0 %v1907
    %2016 = vmatpush.bf16.msra.mxu0 %v1899
    %2017 = vmatpush.bf16.msra.mxu0 %v1891
    %2018 = vmatpush.bf16.msra.mxu0 %v1883
    %2019 = vmatmul.bf16.gmra.mxu0 %v520
    %v2020 = vpop.f32.mrf.mxu0
    %v2021 = vadd.f32 0.0, %v2020
    %v2022 = vpop.f32.mrf.mxu0
    %2023 = vdwg.mxu0
    %2024 = vmatpush.bf16.msra.mxu0 %v1940
    %2025 = vmatpush.bf16.msra.mxu0 %v1932
    %2026 = vmatpush.bf16.msra.mxu0 %v1924
    %2027 = vmatpush.bf16.msra.mxu0 %v1916
    %2028 = vmatpush.bf16.msra.mxu0 %v1908
    %2029 = vmatpush.bf16.msra.mxu0 %v1900
    %2030 = vmatpush.bf16.msra.mxu0 %v1892
    %2031 = vmatpush.bf16.msra.mxu0 %v1884
    %2032 = vmatmul.bf16.gmra.mxu0 %v520
    %v2033 = vpop.f32.mrf.mxu0
    %v2034 = vadd.f32 0.0, %v2033
    %v2035 = vpop.f32.mrf.mxu0
    %2036 = vdwg.mxu0
    %2037 = vmatpush.bf16.msra.mxu0 %v1941
    %2038 = vmatpush.bf16.msra.mxu0 %v1933
    %2039 = vmatpush.bf16.msra.mxu0 %v1925
    %2040 = vmatpush.bf16.msra.mxu0 %v1917
    %2041 = vmatpush.bf16.msra.mxu0 %v1909
    %2042 = vmatpush.bf16.msra.mxu0 %v1901
    %2043 = vmatpush.bf16.msra.mxu0 %v1893
    %2044 = vmatpush.bf16.msra.mxu0 %v1885
    %2045 = vmatmul.bf16.gmra.mxu0 %v520
    %v2046 = vpop.f32.mrf.mxu0
    %v2047 = vadd.f32 0.0, %v2046
    %v2048 = vpop.f32.mrf.mxu0
    %2049 = vdwg.mxu0
    %2050 = vmatpush.bf16.msra.mxu0 %v1942
    %2051 = vmatpush.bf16.msra.mxu0 %v1934
    %2052 = vmatpush.bf16.msra.mxu0 %v1926
    %2053 = vmatpush.bf16.msra.mxu0 %v1918
    %2054 = vmatpush.bf16.msra.mxu0 %v1910
    %2055 = vmatpush.bf16.msra.mxu0 %v1902
    %2056 = vmatpush.bf16.msra.mxu0 %v1894
    %2057 = vmatpush.bf16.msra.mxu0 %v1886
    %2058 = vmatmul.bf16.gmra.mxu0 %v520
    %v2059 = vpop.f32.mrf.mxu0
    %v2060 = vadd.f32 0.0, %v2059
    %v2061 = vpop.f32.mrf.mxu0
    %2062 = vdwg.mxu0
    %2063 = vmatpush.bf16.msra.mxu0 %v1943
    %2064 = vmatpush.bf16.msra.mxu0 %v1935
    %2065 = vmatpush.bf16.msra.mxu0 %v1927
    %2066 = vmatpush.bf16.msra.mxu0 %v1919
    %2067 = vmatpush.bf16.msra.mxu0 %v1911
    %2068 = vmatpush.bf16.msra.mxu0 %v1903
    %2069 = vmatpush.bf16.msra.mxu0 %v1895
    %2070 = vmatpush.bf16.msra.mxu0 %v1887
    %2071 = vmatmul.bf16.gmra.mxu0 %v520
    %v2072 = vpop.f32.mrf.mxu0
    %v2073 = vadd.f32 0.0, %v2072
    %v2074 = vpop.f32.mrf.mxu0
    %2075 = vdwg.mxu0
    %2076 = vmatpush.bf16.msra.mxu0 %v1944
    %2077 = vmatpush.bf16.msra.mxu0 %v1936
    %2078 = vmatpush.bf16.msra.mxu0 %v1928
    %2079 = vmatpush.bf16.msra.mxu0 %v1920
    %2080 = vmatpush.bf16.msra.mxu0 %v1912
    %2081 = vmatpush.bf16.msra.mxu0 %v1904
    %2082 = vmatpush.bf16.msra.mxu0 %v1896
    %2083 = vmatpush.bf16.msra.mxu0 %v1888
    %2084 = vmatmul.bf16.gmra.mxu0 %v520
    %v2085 = vpop.f32.mrf.mxu0
    %v2086 = vadd.f32 0.0, %v2085
    %v2087 = vpop.f32.mrf.mxu0
    %2088 = vdwg.mxu0
    %2089 = vmatpush.bf16.msra.mxu0 %v1945
    %2090 = vmatpush.bf16.msra.mxu0 %v1937
    %2091 = vmatpush.bf16.msra.mxu0 %v1929
    %2092 = vmatpush.bf16.msra.mxu0 %v1921
    %2093 = vmatpush.bf16.msra.mxu0 %v1913
    %2094 = vmatpush.bf16.msra.mxu0 %v1905
    %2095 = vmatpush.bf16.msra.mxu0 %v1897
    %2096 = vmatpush.bf16.msra.mxu0 %v1889
    %2097 = vmatmul.bf16.gmra.mxu0 %v520
    %v2098 = vpop.f32.mrf.mxu0
    %v2099 = vadd.f32 0.0, %v2098
    %v2100 = vpop.f32.mrf.mxu0
    %2101 = vdwg.mxu0
    %2102 = vmatpush.bf16.msra.mxu0 %v1946
    %2103 = vmatpush.bf16.msra.mxu0 %v1938
    %2104 = vmatpush.bf16.msra.mxu0 %v1930
    %2105 = vmatpush.bf16.msra.mxu0 %v1922
    %2106 = vmatpush.bf16.msra.mxu0 %v1914
    %2107 = vmatpush.bf16.msra.mxu0 %v1906
    %2108 = vmatpush.bf16.msra.mxu0 %v1898
    %2109 = vmatpush.bf16.msra.mxu0 %v1890
    %2110 = vmatmul.bf16.gmra.mxu0 %v520
    %v2111 = vpop.f32.mrf.mxu0
    %v2112 = vadd.f32 0.0, %v2111
    %v2113 = vpop.f32.mrf.mxu0
    %2114 = vdwg.mxu0
    %v2179 = vunpack.c.l.b16 %v715
    %v2180 = vunpack.c.h.b16 %v715
    %v2181 = vunpack.c.l.b16 %v716
    %v2182 = vunpack.c.h.b16 %v716
    %v2183 = vunpack.c.l.b16 %v717
    %v2184 = vunpack.c.h.b16 %v717
    %v2185 = vunpack.c.l.b16 %v718
    %v2186 = vunpack.c.h.b16 %v718
    %v2187 = vunpack.c.l.b16 %v719
    %v2188 = vunpack.c.h.b16 %v719
    %v2189 = vunpack.c.l.b16 %v720
    %v2190 = vunpack.c.h.b16 %v720
    %v2191 = vunpack.c.l.b16 %v721
    %v2192 = vunpack.c.h.b16 %v721
    %v2193 = vunpack.c.l.b16 %v722
    %v2194 = vunpack.c.h.b16 %v722
    %v2195 = vunpack.c.l.b16 %v723
    %v2196 = vunpack.c.h.b16 %v723
    %v2197 = vunpack.c.l.b16 %v724
    %v2198 = vunpack.c.h.b16 %v724
    %v2199 = vunpack.c.l.b16 %v725
    %v2200 = vunpack.c.h.b16 %v725
    %v2201 = vunpack.c.l.b16 %v726
    %v2202 = vunpack.c.h.b16 %v726
    %v2203 = vunpack.c.l.b16 %v727
    %v2204 = vunpack.c.h.b16 %v727
    %v2205 = vunpack.c.l.b16 %v728
    %v2206 = vunpack.c.h.b16 %v728
    %v2207 = vunpack.c.l.b16 %v729
    %v2208 = vunpack.c.h.b16 %v729
    %v2209 = vunpack.c.l.b16 %v730
    %v2210 = vunpack.c.h.b16 %v730
    %v2211 = vunpack.c.l.b16 %v731
    %v2212 = vunpack.c.h.b16 %v731
    %v2213 = vunpack.c.l.b16 %v732
    %v2214 = vunpack.c.h.b16 %v732
    %v2215 = vunpack.c.l.b16 %v733
    %v2216 = vunpack.c.h.b16 %v733
    %v2217 = vunpack.c.l.b16 %v734
    %v2218 = vunpack.c.h.b16 %v734
    %v2219 = vunpack.c.l.b16 %v735
    %v2220 = vunpack.c.h.b16 %v735
    %v2221 = vunpack.c.l.b16 %v736
    %v2222 = vunpack.c.h.b16 %v736
    %v2223 = vunpack.c.l.b16 %v737
    %v2224 = vunpack.c.h.b16 %v737
    %v2225 = vunpack.c.l.b16 %v738
    %v2226 = vunpack.c.h.b16 %v738
    %v2227 = vunpack.c.l.b16 %v739
    %v2228 = vunpack.c.h.b16 %v739
    %v2229 = vunpack.c.l.b16 %v740
    %v2230 = vunpack.c.h.b16 %v740
    %v2231 = vunpack.c.l.b16 %v741
    %v2232 = vunpack.c.h.b16 %v741
    %v2233 = vunpack.c.l.b16 %v742
    %v2234 = vunpack.c.h.b16 %v742
    %v2235 = vunpack.c.l.b16 %v743
    %v2236 = vunpack.c.h.b16 %v743
    %v2237 = vunpack.c.l.b16 %v744
    %v2238 = vunpack.c.h.b16 %v744
    %v2239 = vunpack.c.l.b16 %v745
    %v2240 = vunpack.c.h.b16 %v745
    %v2241 = vunpack.c.l.b16 %v746
    %v2242 = vunpack.c.h.b16 %v746
    %v2243 = vunpack.c.l.b16 %v747
    %v2244 = vunpack.c.h.b16 %v747
    %v2245 = vunpack.c.l.b16 %v748
    %v2246 = vunpack.c.h.b16 %v748
    %v2247 = vunpack.c.l.b16 %v749
    %v2248 = vunpack.c.h.b16 %v749
    %v2249 = vunpack.c.l.b16 %v750
    %v2250 = vunpack.c.h.b16 %v750
    %v2251 = vunpack.c.l.b16 %v751
    %v2252 = vunpack.c.h.b16 %v751
    %v2253 = vunpack.c.l.b16 %v752
    %v2254 = vunpack.c.h.b16 %v752
    %v2255 = vunpack.c.l.b16 %v753
    %v2256 = vunpack.c.h.b16 %v753
    %v2257 = vunpack.c.l.b16 %v754
    %v2258 = vunpack.c.h.b16 %v754
    %v2259 = vunpack.c.l.b16 %v755
    %v2260 = vunpack.c.h.b16 %v755
    %v2261 = vunpack.c.l.b16 %v756
    %v2262 = vunpack.c.h.b16 %v756
    %v2263 = vunpack.c.l.b16 %v757
    %v2264 = vunpack.c.h.b16 %v757
    %v2265 = vunpack.c.l.b16 %v758
    %v2266 = vunpack.c.h.b16 %v758
    %v2267 = vunpack.c.l.b16 %v759
    %v2268 = vunpack.c.h.b16 %v759
    %v2269 = vunpack.c.l.b16 %v760
    %v2270 = vunpack.c.h.b16 %v760
    %v2271 = vunpack.c.l.b16 %v761
    %v2272 = vunpack.c.h.b16 %v761
    %v2273 = vunpack.c.l.b16 %v762
    %v2274 = vunpack.c.h.b16 %v762
    %v2275 = vunpack.c.l.b16 %v763
    %v2276 = vunpack.c.h.b16 %v763
    %v2277 = vunpack.c.l.b16 %v764
    %v2278 = vunpack.c.h.b16 %v764
    %v2279 = vunpack.c.l.b16 %v765
    %v2280 = vunpack.c.h.b16 %v765
    %v2281 = vunpack.c.l.b16 %v766
    %v2282 = vunpack.c.h.b16 %v766
    %v2283 = vunpack.c.l.b16 %v767
    %v2284 = vunpack.c.h.b16 %v767
    %v2285 = vunpack.c.l.b16 %v768
    %v2286 = vunpack.c.h.b16 %v768
    %v2287 = vunpack.c.l.b16 %v769
    %v2288 = vunpack.c.h.b16 %v769
    %v2289 = vunpack.c.l.b16 %v770
    %v2290 = vunpack.c.h.b16 %v770
    %v2291 = vunpack.c.l.b16 %v771
    %v2292 = vunpack.c.h.b16 %v771
    %v2293 = vunpack.c.l.b16 %v772
    %v2294 = vunpack.c.h.b16 %v772
    %v2295 = vunpack.c.l.b16 %v773
    %v2296 = vunpack.c.h.b16 %v773
    %v2297 = vunpack.c.l.b16 %v774
    %v2298 = vunpack.c.h.b16 %v774
    %v2299 = vunpack.c.l.b16 %v775
    %v2300 = vunpack.c.h.b16 %v775
    %v2301 = vunpack.c.l.b16 %v776
    %v2302 = vunpack.c.h.b16 %v776
    %v2303 = vunpack.c.l.b16 %v777
    %v2304 = vunpack.c.h.b16 %v777
    %v2305 = vunpack.c.l.b16 %v778
    %v2306 = vunpack.c.h.b16 %v778
    %v2307 = vpack.c.b16 %v2187, %v2179
    %v2308 = vpack.c.b16 %v2188, %v2180
    %v2309 = vpack.c.b16 %v2189, %v2181
    %v2310 = vpack.c.b16 %v2190, %v2182
    %v2311 = vpack.c.b16 %v2191, %v2183
    %v2312 = vpack.c.b16 %v2192, %v2184
    %v2313 = vpack.c.b16 %v2193, %v2185
    %v2314 = vpack.c.b16 %v2194, %v2186
    %v2315 = vpack.c.b16 %v2203, %v2195
    %v2316 = vpack.c.b16 %v2204, %v2196
    %v2317 = vpack.c.b16 %v2205, %v2197
    %v2318 = vpack.c.b16 %v2206, %v2198
    %v2319 = vpack.c.b16 %v2207, %v2199
    %v2320 = vpack.c.b16 %v2208, %v2200
    %v2321 = vpack.c.b16 %v2209, %v2201
    %v2322 = vpack.c.b16 %v2210, %v2202
    %v2323 = vpack.c.b16 %v2219, %v2211
    %v2324 = vpack.c.b16 %v2220, %v2212
    %v2325 = vpack.c.b16 %v2221, %v2213
    %v2326 = vpack.c.b16 %v2222, %v2214
    %v2327 = vpack.c.b16 %v2223, %v2215
    %v2328 = vpack.c.b16 %v2224, %v2216
    %v2329 = vpack.c.b16 %v2225, %v2217
    %v2330 = vpack.c.b16 %v2226, %v2218
    %v2331 = vpack.c.b16 %v2235, %v2227
    %v2332 = vpack.c.b16 %v2236, %v2228
    %v2333 = vpack.c.b16 %v2237, %v2229
    %v2334 = vpack.c.b16 %v2238, %v2230
    %v2335 = vpack.c.b16 %v2239, %v2231
    %v2336 = vpack.c.b16 %v2240, %v2232
    %v2337 = vpack.c.b16 %v2241, %v2233
    %v2338 = vpack.c.b16 %v2242, %v2234
    %v2339 = vpack.c.b16 %v2251, %v2243
    %v2340 = vpack.c.b16 %v2252, %v2244
    %v2341 = vpack.c.b16 %v2253, %v2245
    %v2342 = vpack.c.b16 %v2254, %v2246
    %v2343 = vpack.c.b16 %v2255, %v2247
    %v2344 = vpack.c.b16 %v2256, %v2248
    %v2345 = vpack.c.b16 %v2257, %v2249
    %v2346 = vpack.c.b16 %v2258, %v2250
    %v2347 = vpack.c.b16 %v2267, %v2259
    %v2348 = vpack.c.b16 %v2268, %v2260
    %v2349 = vpack.c.b16 %v2269, %v2261
    %v2350 = vpack.c.b16 %v2270, %v2262
    %v2351 = vpack.c.b16 %v2271, %v2263
    %v2352 = vpack.c.b16 %v2272, %v2264
    %v2353 = vpack.c.b16 %v2273, %v2265
    %v2354 = vpack.c.b16 %v2274, %v2266
    %v2355 = vpack.c.b16 %v2283, %v2275
    %v2356 = vpack.c.b16 %v2284, %v2276
    %v2357 = vpack.c.b16 %v2285, %v2277
    %v2358 = vpack.c.b16 %v2286, %v2278
    %v2359 = vpack.c.b16 %v2287, %v2279
    %v2360 = vpack.c.b16 %v2288, %v2280
    %v2361 = vpack.c.b16 %v2289, %v2281
    %v2362 = vpack.c.b16 %v2290, %v2282
    %v2363 = vpack.c.b16 %v2299, %v2291
    %v2364 = vpack.c.b16 %v2300, %v2292
    %v2365 = vpack.c.b16 %v2301, %v2293
    %v2366 = vpack.c.b16 %v2302, %v2294
    %v2367 = vpack.c.b16 %v2303, %v2295
    %v2368 = vpack.c.b16 %v2304, %v2296
    %v2369 = vpack.c.b16 %v2305, %v2297
    %v2370 = vpack.c.b16 %v2306, %v2298
    %2435 = vmatpush.bf16.msra.mxu0 %v2363
    %2436 = vmatpush.bf16.msra.mxu0 %v2355
    %2437 = vmatpush.bf16.msra.mxu0 %v2347
    %2438 = vmatpush.bf16.msra.mxu0 %v2339
    %2439 = vmatpush.bf16.msra.mxu0 %v2331
    %2440 = vmatpush.bf16.msra.mxu0 %v2323
    %2441 = vmatpush.bf16.msra.mxu0 %v2315
    %2442 = vmatpush.bf16.msra.mxu0 %v2307
    %2443 = vmatmul.bf16.gmra.mxu0 %v521
    %v2444 = vpop.f32.mrf.mxu0
    %v2445 = vadd.f32 0.0, %v2444
    %v2446 = vpop.f32.mrf.mxu0
    %2447 = vdwg.mxu0
    %2448 = vmatpush.bf16.msra.mxu0 %v2364
    %2449 = vmatpush.bf16.msra.mxu0 %v2356
    %2450 = vmatpush.bf16.msra.mxu0 %v2348
    %2451 = vmatpush.bf16.msra.mxu0 %v2340
    %2452 = vmatpush.bf16.msra.mxu0 %v2332
    %2453 = vmatpush.bf16.msra.mxu0 %v2324
    %2454 = vmatpush.bf16.msra.mxu0 %v2316
    %2455 = vmatpush.bf16.msra.mxu0 %v2308
    %2456 = vmatmul.bf16.gmra.mxu0 %v521
    %v2457 = vpop.f32.mrf.mxu0
    %v2458 = vadd.f32 0.0, %v2457
    %v2459 = vpop.f32.mrf.mxu0
    %2460 = vdwg.mxu0
    %2461 = vmatpush.bf16.msra.mxu0 %v2365
    %2462 = vmatpush.bf16.msra.mxu0 %v2357
    %2463 = vmatpush.bf16.msra.mxu0 %v2349
    %2464 = vmatpush.bf16.msra.mxu0 %v2341
    %2465 = vmatpush.bf16.msra.mxu0 %v2333
    %2466 = vmatpush.bf16.msra.mxu0 %v2325
    %2467 = vmatpush.bf16.msra.mxu0 %v2317
    %2468 = vmatpush.bf16.msra.mxu0 %v2309
    %2469 = vmatmul.bf16.gmra.mxu0 %v521
    %v2470 = vpop.f32.mrf.mxu0
    %v2471 = vadd.f32 0.0, %v2470
    %v2472 = vpop.f32.mrf.mxu0
    %2473 = vdwg.mxu0
    %2474 = vmatpush.bf16.msra.mxu0 %v2366
    %2475 = vmatpush.bf16.msra.mxu0 %v2358
    %2476 = vmatpush.bf16.msra.mxu0 %v2350
    %2477 = vmatpush.bf16.msra.mxu0 %v2342
    %2478 = vmatpush.bf16.msra.mxu0 %v2334
    %2479 = vmatpush.bf16.msra.mxu0 %v2326
    %2480 = vmatpush.bf16.msra.mxu0 %v2318
    %2481 = vmatpush.bf16.msra.mxu0 %v2310
    %2482 = vmatmul.bf16.gmra.mxu0 %v521
    %v2483 = vpop.f32.mrf.mxu0
    %v2484 = vadd.f32 0.0, %v2483
    %v2485 = vpop.f32.mrf.mxu0
    %2486 = vdwg.mxu0
    %2487 = vmatpush.bf16.msra.mxu0 %v2367
    %2488 = vmatpush.bf16.msra.mxu0 %v2359
    %2489 = vmatpush.bf16.msra.mxu0 %v2351
    %2490 = vmatpush.bf16.msra.mxu0 %v2343
    %2491 = vmatpush.bf16.msra.mxu0 %v2335
    %2492 = vmatpush.bf16.msra.mxu0 %v2327
    %2493 = vmatpush.bf16.msra.mxu0 %v2319
    %2494 = vmatpush.bf16.msra.mxu0 %v2311
    %2495 = vmatmul.bf16.gmra.mxu0 %v521
    %v2496 = vpop.f32.mrf.mxu0
    %v2497 = vadd.f32 0.0, %v2496
    %v2498 = vpop.f32.mrf.mxu0
    %2499 = vdwg.mxu0
    %2500 = vmatpush.bf16.msra.mxu0 %v2368
    %2501 = vmatpush.bf16.msra.mxu0 %v2360
    %2502 = vmatpush.bf16.msra.mxu0 %v2352
    %2503 = vmatpush.bf16.msra.mxu0 %v2344
    %2504 = vmatpush.bf16.msra.mxu0 %v2336
    %2505 = vmatpush.bf16.msra.mxu0 %v2328
    %2506 = vmatpush.bf16.msra.mxu0 %v2320
    %2507 = vmatpush.bf16.msra.mxu0 %v2312
    %2508 = vmatmul.bf16.gmra.mxu0 %v521
    %v2509 = vpop.f32.mrf.mxu0
    %v2510 = vadd.f32 0.0, %v2509
    %v2511 = vpop.f32.mrf.mxu0
    %2512 = vdwg.mxu0
    %2513 = vmatpush.bf16.msra.mxu0 %v2369
    %2514 = vmatpush.bf16.msra.mxu0 %v2361
    %2515 = vmatpush.bf16.msra.mxu0 %v2353
    %2516 = vmatpush.bf16.msra.mxu0 %v2345
    %2517 = vmatpush.bf16.msra.mxu0 %v2337
    %2518 = vmatpush.bf16.msra.mxu0 %v2329
    %2519 = vmatpush.bf16.msra.mxu0 %v2321
    %2520 = vmatpush.bf16.msra.mxu0 %v2313
    %2521 = vmatmul.bf16.gmra.mxu0 %v521
    %v2522 = vpop.f32.mrf.mxu0
    %v2523 = vadd.f32 0.0, %v2522
    %v2524 = vpop.f32.mrf.mxu0
    %2525 = vdwg.mxu0
    %2526 = vmatpush.bf16.msra.mxu0 %v2370
    %2527 = vmatpush.bf16.msra.mxu0 %v2362
    %2528 = vmatpush.bf16.msra.mxu0 %v2354
    %2529 = vmatpush.bf16.msra.mxu0 %v2346
    %2530 = vmatpush.bf16.msra.mxu0 %v2338
    %2531 = vmatpush.bf16.msra.mxu0 %v2330
    %2532 = vmatpush.bf16.msra.mxu0 %v2322
    %2533 = vmatpush.bf16.msra.mxu0 %v2314
    %2534 = vmatmul.bf16.gmra.mxu0 %v521
    %v2535 = vpop.f32.mrf.mxu0
    %v2536 = vadd.f32 0.0, %v2535
    %v2537 = vpop.f32.mrf.mxu0
    %2538 = vdwg.mxu0
    %v2603 = vunpack.c.l.b16 %v779
    %v2604 = vunpack.c.h.b16 %v779
    %v2605 = vunpack.c.l.b16 %v780
    %v2606 = vunpack.c.h.b16 %v780
    %v2607 = vunpack.c.l.b16 %v781
    %v2608 = vunpack.c.h.b16 %v781
    %v2609 = vunpack.c.l.b16 %v782
    %v2610 = vunpack.c.h.b16 %v782
    %v2611 = vunpack.c.l.b16 %v783
    %v2612 = vunpack.c.h.b16 %v783
    %v2613 = vunpack.c.l.b16 %v784
    %v2614 = vunpack.c.h.b16 %v784
    %v2615 = vunpack.c.l.b16 %v785
    %v2616 = vunpack.c.h.b16 %v785
    %v2617 = vunpack.c.l.b16 %v786
    %v2618 = vunpack.c.h.b16 %v786
    %v2619 = vunpack.c.l.b16 %v787
    %v2620 = vunpack.c.h.b16 %v787
    %v2621 = vunpack.c.l.b16 %v788
    %v2622 = vunpack.c.h.b16 %v788
    %v2623 = vunpack.c.l.b16 %v789
    %v2624 = vunpack.c.h.b16 %v789
    %v2625 = vunpack.c.l.b16 %v790
    %v2626 = vunpack.c.h.b16 %v790
    %v2627 = vunpack.c.l.b16 %v791
    %v2628 = vunpack.c.h.b16 %v791
    %v2629 = vunpack.c.l.b16 %v792
    %v2630 = vunpack.c.h.b16 %v792
    %v2631 = vunpack.c.l.b16 %v793
    %v2632 = vunpack.c.h.b16 %v793
    %v2633 = vunpack.c.l.b16 %v794
    %v2634 = vunpack.c.h.b16 %v794
    %v2635 = vunpack.c.l.b16 %v795
    %v2636 = vunpack.c.h.b16 %v795
    %v2637 = vunpack.c.l.b16 %v796
    %v2638 = vunpack.c.h.b16 %v796
    %v2639 = vunpack.c.l.b16 %v797
    %v2640 = vunpack.c.h.b16 %v797
    %v2641 = vunpack.c.l.b16 %v798
    %v2642 = vunpack.c.h.b16 %v798
    %v2643 = vunpack.c.l.b16 %v799
    %v2644 = vunpack.c.h.b16 %v799
    %v2645 = vunpack.c.l.b16 %v800
    %v2646 = vunpack.c.h.b16 %v800
    %v2647 = vunpack.c.l.b16 %v801
    %v2648 = vunpack.c.h.b16 %v801
    %v2649 = vunpack.c.l.b16 %v802
    %v2650 = vunpack.c.h.b16 %v802
    %v2651 = vunpack.c.l.b16 %v803
    %v2652 = vunpack.c.h.b16 %v803
    %v2653 = vunpack.c.l.b16 %v804
    %v2654 = vunpack.c.h.b16 %v804
    %v2655 = vunpack.c.l.b16 %v805
    %v2656 = vunpack.c.h.b16 %v805
    %v2657 = vunpack.c.l.b16 %v806
    %v2658 = vunpack.c.h.b16 %v806
    %v2659 = vunpack.c.l.b16 %v807
    %v2660 = vunpack.c.h.b16 %v807
    %v2661 = vunpack.c.l.b16 %v808
    %v2662 = vunpack.c.h.b16 %v808
    %v2663 = vunpack.c.l.b16 %v809
    %v2664 = vunpack.c.h.b16 %v809
    %v2665 = vunpack.c.l.b16 %v810
    %v2666 = vunpack.c.h.b16 %v810
    %v2667 = vunpack.c.l.b16 %v811
    %v2668 = vunpack.c.h.b16 %v811
    %v2669 = vunpack.c.l.b16 %v812
    %v2670 = vunpack.c.h.b16 %v812
    %v2671 = vunpack.c.l.b16 %v813
    %v2672 = vunpack.c.h.b16 %v813
    %v2673 = vunpack.c.l.b16 %v814
    %v2674 = vunpack.c.h.b16 %v814
    %v2675 = vunpack.c.l.b16 %v815
    %v2676 = vunpack.c.h.b16 %v815
    %v2677 = vunpack.c.l.b16 %v816
    %v2678 = vunpack.c.h.b16 %v816
    %v2679 = vunpack.c.l.b16 %v817
    %v2680 = vunpack.c.h.b16 %v817
    %v2681 = vunpack.c.l.b16 %v818
    %v2682 = vunpack.c.h.b16 %v818
    %v2683 = vunpack.c.l.b16 %v819
    %v2684 = vunpack.c.h.b16 %v819
    %v2685 = vunpack.c.l.b16 %v820
    %v2686 = vunpack.c.h.b16 %v820
    %v2687 = vunpack.c.l.b16 %v821
    %v2688 = vunpack.c.h.b16 %v821
    %v2689 = vunpack.c.l.b16 %v822
    %v2690 = vunpack.c.h.b16 %v822
    %v2691 = vunpack.c.l.b16 %v823
    %v2692 = vunpack.c.h.b16 %v823
    %v2693 = vunpack.c.l.b16 %v824
    %v2694 = vunpack.c.h.b16 %v824
    %v2695 = vunpack.c.l.b16 %v825
    %v2696 = vunpack.c.h.b16 %v825
    %v2697 = vunpack.c.l.b16 %v826
    %v2698 = vunpack.c.h.b16 %v826
    %v2699 = vunpack.c.l.b16 %v827
    %v2700 = vunpack.c.h.b16 %v827
    %v2701 = vunpack.c.l.b16 %v828
    %v2702 = vunpack.c.h.b16 %v828
    %v2703 = vunpack.c.l.b16 %v829
    %v2704 = vunpack.c.h.b16 %v829
    %v2705 = vunpack.c.l.b16 %v830
    %v2706 = vunpack.c.h.b16 %v830
    %v2707 = vunpack.c.l.b16 %v831
    %v2708 = vunpack.c.h.b16 %v831
    %v2709 = vunpack.c.l.b16 %v832
    %v2710 = vunpack.c.h.b16 %v832
    %v2711 = vunpack.c.l.b16 %v833
    %v2712 = vunpack.c.h.b16 %v833
    %v2713 = vunpack.c.l.b16 %v834
    %v2714 = vunpack.c.h.b16 %v834
    %v2715 = vunpack.c.l.b16 %v835
    %v2716 = vunpack.c.h.b16 %v835
    %v2717 = vunpack.c.l.b16 %v836
    %v2718 = vunpack.c.h.b16 %v836
    %v2719 = vunpack.c.l.b16 %v837
    %v2720 = vunpack.c.h.b16 %v837
    %v2721 = vunpack.c.l.b16 %v838
    %v2722 = vunpack.c.h.b16 %v838
    %v2723 = vunpack.c.l.b16 %v839
    %v2724 = vunpack.c.h.b16 %v839
    %v2725 = vunpack.c.l.b16 %v840
    %v2726 = vunpack.c.h.b16 %v840
    %v2727 = vunpack.c.l.b16 %v841
    %v2728 = vunpack.c.h.b16 %v841
    %v2729 = vunpack.c.l.b16 %v842
    %v2730 = vunpack.c.h.b16 %v842
    %v2731 = vpack.c.b16 %v2611, %v2603
    %v2732 = vpack.c.b16 %v2612, %v2604
    %v2733 = vpack.c.b16 %v2613, %v2605
    %v2734 = vpack.c.b16 %v2614, %v2606
    %v2735 = vpack.c.b16 %v2615, %v2607
    %v2736 = vpack.c.b16 %v2616, %v2608
    %v2737 = vpack.c.b16 %v2617, %v2609
    %v2738 = vpack.c.b16 %v2618, %v2610
    %v2739 = vpack.c.b16 %v2627, %v2619
    %v2740 = vpack.c.b16 %v2628, %v2620
    %v2741 = vpack.c.b16 %v2629, %v2621
    %v2742 = vpack.c.b16 %v2630, %v2622
    %v2743 = vpack.c.b16 %v2631, %v2623
    %v2744 = vpack.c.b16 %v2632, %v2624
    %v2745 = vpack.c.b16 %v2633, %v2625
    %v2746 = vpack.c.b16 %v2634, %v2626
    %v2747 = vpack.c.b16 %v2643, %v2635
    %v2748 = vpack.c.b16 %v2644, %v2636
    %v2749 = vpack.c.b16 %v2645, %v2637
    %v2750 = vpack.c.b16 %v2646, %v2638
    %v2751 = vpack.c.b16 %v2647, %v2639
    %v2752 = vpack.c.b16 %v2648, %v2640
    %v2753 = vpack.c.b16 %v2649, %v2641
    %v2754 = vpack.c.b16 %v2650, %v2642
    %v2755 = vpack.c.b16 %v2659, %v2651
    %v2756 = vpack.c.b16 %v2660, %v2652
    %v2757 = vpack.c.b16 %v2661, %v2653
    %v2758 = vpack.c.b16 %v2662, %v2654
    %v2759 = vpack.c.b16 %v2663, %v2655
    %v2760 = vpack.c.b16 %v2664, %v2656
    %v2761 = vpack.c.b16 %v2665, %v2657
    %v2762 = vpack.c.b16 %v2666, %v2658
    %v2763 = vpack.c.b16 %v2675, %v2667
    %v2764 = vpack.c.b16 %v2676, %v2668
    %v2765 = vpack.c.b16 %v2677, %v2669
    %v2766 = vpack.c.b16 %v2678, %v2670
    %v2767 = vpack.c.b16 %v2679, %v2671
    %v2768 = vpack.c.b16 %v2680, %v2672
    %v2769 = vpack.c.b16 %v2681, %v2673
    %v2770 = vpack.c.b16 %v2682, %v2674
    %v2771 = vpack.c.b16 %v2691, %v2683
    %v2772 = vpack.c.b16 %v2692, %v2684
    %v2773 = vpack.c.b16 %v2693, %v2685
    %v2774 = vpack.c.b16 %v2694, %v2686
    %v2775 = vpack.c.b16 %v2695, %v2687
    %v2776 = vpack.c.b16 %v2696, %v2688
    %v2777 = vpack.c.b16 %v2697, %v2689
    %v2778 = vpack.c.b16 %v2698, %v2690
    %v2779 = vpack.c.b16 %v2707, %v2699
    %v2780 = vpack.c.b16 %v2708, %v2700
    %v2781 = vpack.c.b16 %v2709, %v2701
    %v2782 = vpack.c.b16 %v2710, %v2702
    %v2783 = vpack.c.b16 %v2711, %v2703
    %v2784 = vpack.c.b16 %v2712, %v2704
    %v2785 = vpack.c.b16 %v2713, %v2705
    %v2786 = vpack.c.b16 %v2714, %v2706
    %v2787 = vpack.c.b16 %v2723, %v2715
    %v2788 = vpack.c.b16 %v2724, %v2716
    %v2789 = vpack.c.b16 %v2725, %v2717
    %v2790 = vpack.c.b16 %v2726, %v2718
    %v2791 = vpack.c.b16 %v2727, %v2719
    %v2792 = vpack.c.b16 %v2728, %v2720
    %v2793 = vpack.c.b16 %v2729, %v2721
    %v2794 = vpack.c.b16 %v2730, %v2722
    %2859 = vmatpush.bf16.msra.mxu0 %v2787
    %2860 = vmatpush.bf16.msra.mxu0 %v2779
    %2861 = vmatpush.bf16.msra.mxu0 %v2771
    %2862 = vmatpush.bf16.msra.mxu0 %v2763
    %2863 = vmatpush.bf16.msra.mxu0 %v2755
    %2864 = vmatpush.bf16.msra.mxu0 %v2747
    %2865 = vmatpush.bf16.msra.mxu0 %v2739
    %2866 = vmatpush.bf16.msra.mxu0 %v2731
    %2867 = vmatmul.bf16.gmra.mxu0 %v522
    %v2868 = vpop.f32.mrf.mxu0
    %v2869 = vadd.f32 0.0, %v2868
    %v2870 = vpop.f32.mrf.mxu0
    %2871 = vdwg.mxu0
    %2872 = vmatpush.bf16.msra.mxu0 %v2788
    %2873 = vmatpush.bf16.msra.mxu0 %v2780
    %2874 = vmatpush.bf16.msra.mxu0 %v2772
    %2875 = vmatpush.bf16.msra.mxu0 %v2764
    %2876 = vmatpush.bf16.msra.mxu0 %v2756
    %2877 = vmatpush.bf16.msra.mxu0 %v2748
    %2878 = vmatpush.bf16.msra.mxu0 %v2740
    %2879 = vmatpush.bf16.msra.mxu0 %v2732
    %2880 = vmatmul.bf16.gmra.mxu0 %v522
    %v2881 = vpop.f32.mrf.mxu0
    %v2882 = vadd.f32 0.0, %v2881
    %v2883 = vpop.f32.mrf.mxu0
    %2884 = vdwg.mxu0
    %2885 = vmatpush.bf16.msra.mxu0 %v2789
    %2886 = vmatpush.bf16.msra.mxu0 %v2781
    %2887 = vmatpush.bf16.msra.mxu0 %v2773
    %2888 = vmatpush.bf16.msra.mxu0 %v2765
    %2889 = vmatpush.bf16.msra.mxu0 %v2757
    %2890 = vmatpush.bf16.msra.mxu0 %v2749
    %2891 = vmatpush.bf16.msra.mxu0 %v2741
    %2892 = vmatpush.bf16.msra.mxu0 %v2733
    %2893 = vmatmul.bf16.gmra.mxu0 %v522
    %v2894 = vpop.f32.mrf.mxu0
    %v2895 = vadd.f32 0.0, %v2894
    %v2896 = vpop.f32.mrf.mxu0
    %2897 = vdwg.mxu0
    %2898 = vmatpush.bf16.msra.mxu0 %v2790
    %2899 = vmatpush.bf16.msra.mxu0 %v2782
    %2900 = vmatpush.bf16.msra.mxu0 %v2774
    %2901 = vmatpush.bf16.msra.mxu0 %v2766
    %2902 = vmatpush.bf16.msra.mxu0 %v2758
    %2903 = vmatpush.bf16.msra.mxu0 %v2750
    %2904 = vmatpush.bf16.msra.mxu0 %v2742
    %2905 = vmatpush.bf16.msra.mxu0 %v2734
    %2906 = vmatmul.bf16.gmra.mxu0 %v522
    %v2907 = vpop.f32.mrf.mxu0
    %v2908 = vadd.f32 0.0, %v2907
    %v2909 = vpop.f32.mrf.mxu0
    %2910 = vdwg.mxu0
    %2911 = vmatpush.bf16.msra.mxu0 %v2791
    %2912 = vmatpush.bf16.msra.mxu0 %v2783
    %2913 = vmatpush.bf16.msra.mxu0 %v2775
    %2914 = vmatpush.bf16.msra.mxu0 %v2767
    %2915 = vmatpush.bf16.msra.mxu0 %v2759
    %2916 = vmatpush.bf16.msra.mxu0 %v2751
    %2917 = vmatpush.bf16.msra.mxu0 %v2743
    %2918 = vmatpush.bf16.msra.mxu0 %v2735
    %2919 = vmatmul.bf16.gmra.mxu0 %v522
    %v2920 = vpop.f32.mrf.mxu0
    %v2921 = vadd.f32 0.0, %v2920
    %v2922 = vpop.f32.mrf.mxu0
    %2923 = vdwg.mxu0
    %2924 = vmatpush.bf16.msra.mxu0 %v2792
    %2925 = vmatpush.bf16.msra.mxu0 %v2784
    %2926 = vmatpush.bf16.msra.mxu0 %v2776
    %2927 = vmatpush.bf16.msra.mxu0 %v2768
    %2928 = vmatpush.bf16.msra.mxu0 %v2760
    %2929 = vmatpush.bf16.msra.mxu0 %v2752
    %2930 = vmatpush.bf16.msra.mxu0 %v2744
    %2931 = vmatpush.bf16.msra.mxu0 %v2736
    %2932 = vmatmul.bf16.gmra.mxu0 %v522
    %v2933 = vpop.f32.mrf.mxu0
    %v2934 = vadd.f32 0.0, %v2933
    %v2935 = vpop.f32.mrf.mxu0
    %2936 = vdwg.mxu0
    %2937 = vmatpush.bf16.msra.mxu0 %v2793
    %2938 = vmatpush.bf16.msra.mxu0 %v2785
    %2939 = vmatpush.bf16.msra.mxu0 %v2777
    %2940 = vmatpush.bf16.msra.mxu0 %v2769
    %2941 = vmatpush.bf16.msra.mxu0 %v2761
    %2942 = vmatpush.bf16.msra.mxu0 %v2753
    %2943 = vmatpush.bf16.msra.mxu0 %v2745
    %2944 = vmatpush.bf16.msra.mxu0 %v2737
    %2945 = vmatmul.bf16.gmra.mxu0 %v522
    %v2946 = vpop.f32.mrf.mxu0
    %v2947 = vadd.f32 0.0, %v2946
    %v2948 = vpop.f32.mrf.mxu0
    %2949 = vdwg.mxu0
    %2950 = vmatpush.bf16.msra.mxu0 %v2794
    %2951 = vmatpush.bf16.msra.mxu0 %v2786
    %2952 = vmatpush.bf16.msra.mxu0 %v2778
    %2953 = vmatpush.bf16.msra.mxu0 %v2770
    %2954 = vmatpush.bf16.msra.mxu0 %v2762
    %2955 = vmatpush.bf16.msra.mxu0 %v2754
    %2956 = vmatpush.bf16.msra.mxu0 %v2746
    %2957 = vmatpush.bf16.msra.mxu0 %v2738
    %2958 = vmatmul.bf16.gmra.mxu0 %v522
    %v2959 = vpop.f32.mrf.mxu0
    %v2960 = vadd.f32 0.0, %v2959
    %v2961 = vpop.f32.mrf.mxu0
    %2962 = vdwg.mxu0
    %v2963 = vld [vmem:[%s4] sm:$0xf]
    %v2964 = vld [vmem:[%s4 + $0x4] sm:$0xf]
    %v2965 = vld [vmem:[%s4 + $0x8] sm:$0xf]
    %v2966 = vld [vmem:[%s4 + $0xc] sm:$0xf]
    %v2967 = vld [vmem:[%s4 + $0x10] sm:$0xf]
    %v2973 = vperm.slane %v2963, 0
    %v2974 = vperm.slane %v2963, 1
    %v2975 = vperm.slane %v2963, 2
    %v2976 = vperm.slane %v2963, 3
    %v2977 = vperm.slane %v2964, 0
    %v2978 = vperm.slane %v2964, 1
    %v2979 = vperm.slane %v2964, 2
    %v2980 = vperm.slane %v2964, 3
    %v2981 = vperm.slane %v2965, 0
    %v2982 = vperm.slane %v2965, 1
    %v2983 = vperm.slane %v2965, 2
    %v2984 = vperm.slane %v2965, 3
    %v2985 = vperm.slane %v2966, 0
    %v2986 = vperm.slane %v2966, 1
    %v2987 = vperm.slane %v2966, 2
    %v2988 = vperm.slane %v2966, 3
    %v2989 = vperm.slane %v2967, 0
    %v2990 = vperm.slane %v2967, 1
    %v2991 = vperm.slane %v2967, 2
    %v2992 = vperm.slane %v2967, 3
    %v3013 = vadd.f32 %v1173, %v2973
    %v3014 = vadd.f32 %v1186, %v2974
    %v3015 = vadd.f32 %v1199, %v2975
    %v3016 = vadd.f32 %v1212, %v2976
    %v3017 = vadd.f32 %v1597, %v2977
    %v3018 = vadd.f32 %v1610, %v2978
    %v3019 = vadd.f32 %v1623, %v2979
    %v3020 = vadd.f32 %v1636, %v2980
    %v3021 = vadd.f32 %v2021, %v2981
    %v3022 = vadd.f32 %v2034, %v2982
    %v3023 = vadd.f32 %v2047, %v2983
    %v3024 = vadd.f32 %v2060, %v2984
    %v3025 = vadd.f32 %v2445, %v2985
    %v3026 = vadd.f32 %v2458, %v2986
    %v3027 = vadd.f32 %v2471, %v2987
    %v3028 = vadd.f32 %v2484, %v2988
    %v3029 = vadd.f32 %v2869, %v2989
    %v3030 = vadd.f32 %v2882, %v2990
    %v3031 = vadd.f32 %v2895, %v2991
    %v3032 = vadd.f32 %v2908, %v2992
    %v3033 = vmax.f32 %v3013, 0.0
    %v3034 = vmax.f32 %v3014, 0.0
    %v3035 = vmax.f32 %v3015, 0.0
    %v3036 = vmax.f32 %v3016, 0.0
    %v3037 = vmax.f32 %v3017, 0.0
    %v3038 = vmax.f32 %v3018, 0.0
    %v3039 = vmax.f32 %v3019, 0.0
    %v3040 = vmax.f32 %v3020, 0.0
    %v3041 = vmax.f32 %v3021, 0.0
    %v3042 = vmax.f32 %v3022, 0.0
    %v3043 = vmax.f32 %v3023, 0.0
    %v3044 = vmax.f32 %v3024, 0.0
    %v3045 = vmax.f32 %v3025, 0.0
    %v3046 = vmax.f32 %v3026, 0.0
    %v3047 = vmax.f32 %v3027, 0.0
    %v3048 = vmax.f32 %v3028, 0.0
    %v3049 = vmax.f32 %v3029, 0.0
    %v3050 = vmax.f32 %v3030, 0.0
    %v3051 = vmax.f32 %v3031, 0.0
    %v3052 = vmax.f32 %v3032, 0.0
    %v3053 = vadd.f32 %v1225, %v1649
    %v3054 = vadd.f32 %v1238, %v1662
    %v3055 = vadd.f32 %v1251, %v1675
    %v3056 = vadd.f32 %v1264, %v1688
    %v3057 = vadd.f32 %v3053, %v2073
    %v3058 = vadd.f32 %v3054, %v2086
    %v3059 = vadd.f32 %v3055, %v2099
    %v3060 = vadd.f32 %v3056, %v2112
    %v3061 = vadd.f32 %v3057, %v2497
    %v3062 = vadd.f32 %v3058, %v2510
    %v3063 = vadd.f32 %v3059, %v2523
    %v3064 = vadd.f32 %v3060, %v2536
    %v3065 = vadd.f32 %v3061, %v2921
    %v3066 = vadd.f32 %v3062, %v2934
    %v3067 = vadd.f32 %v3063, %v2947
    %v3068 = vadd.f32 %v3064, %v2960
    %v3069 = vld [vmem:[%s5] sm:$0xf]
    %v3071 = vperm.slane %v3069, 0
    %v3072 = vperm.slane %v3069, 1
    %v3073 = vperm.slane %v3069, 2
    %v3074 = vperm.slane %v3069, 3
    %v3079 = vadd.f32 %v3065, %v3071
    %v3080 = vadd.f32 %v3066, %v3072
    %v3081 = vadd.f32 %v3067, %v3073
    %v3082 = vadd.f32 %v3068, %v3074
    %v3083 = vmax.f32 %v3079, 0.0
    %v3084 = vmax.f32 %v3080, 0.0
    %v3085 = vmax.f32 %v3081, 0.0
    %v3086 = vmax.f32 %v3082, 0.0
    %3087 = vst [vmem:[%s10] sm:$0xff] %v3083
    %3088 = vst [vmem:[%s10 + $0x8] sm:$0xff] %v3084
    %3089 = vst [vmem:[%s10 + $0x10] sm:$0xff] %v3085
    %3090 = vst [vmem:[%s10 + $0x18] sm:$0xff] %v3086
    %v3091 = vpack.c.bf16 %v3034, %v3033
    %v3092 = vpack.c.bf16 %v3036, %v3035
    %v3093 = vpack.c.bf16 %v3038, %v3037
    %v3094 = vpack.c.bf16 %v3040, %v3039
    %v3095 = vpack.c.bf16 %v3042, %v3041
    %v3096 = vpack.c.bf16 %v3044, %v3043
    %v3097 = vpack.c.bf16 %v3046, %v3045
    %v3098 = vpack.c.bf16 %v3048, %v3047
    %v3099 = vpack.c.bf16 %v3050, %v3049
    %v3100 = vpack.c.bf16 %v3052, %v3051
    %v3101 = vpack.c.bf16 %v3084, %v3083
    %v3102 = vpack.c.bf16 %v3086, %v3085
    %v3103 = vld [vmem:[#allocation4] sm:$0xf]
    %v3104 = vld [vmem:[#allocation4 + $0x4] sm:$0xf]
    %v3105 = vld [vmem:[#allocation4 + $0x8] sm:$0xf]
    %v3106 = vld [vmem:[#allocation4 + $0xc] sm:$0xf]
    %v3107 = vld [vmem:[#allocation4 + $0x10] sm:$0xf]
    %v3108 = vld [vmem:[#allocation4 + $0x14] sm:$0xf]
    %v3109 = vld [vmem:[#allocation4 + $0x18] sm:$0xf]
    %v3110 = vld [vmem:[#allocation4 + $0x1c] sm:$0xf]
    %v3111 = vld [vmem:[#allocation4 + $0x20] sm:$0xf]
    %v3112 = vld [vmem:[#allocation4 + $0x24] sm:$0xf]
    %v3113 = vld [vmem:[#allocation4 + $0x28] sm:$0xf]
    %v3114 = vld [vmem:[#allocation4 + $0x2c] sm:$0xf]
    %v3115 = vld [vmem:[#allocation4 + $0x30] sm:$0xf]
    %v3116 = vld [vmem:[#allocation4 + $0x34] sm:$0xf]
    %v3117 = vld [vmem:[#allocation4 + $0x38] sm:$0xf]
    %v3118 = vld [vmem:[#allocation4 + $0x3c] sm:$0xf]
    %v3119 = vld [vmem:[#allocation4 + $0x40] sm:$0xf]
    %v3120 = vld [vmem:[#allocation4 + $0x44] sm:$0xf]
    %v3121 = vld [vmem:[#allocation4 + $0x48] sm:$0xf]
    %v3122 = vld [vmem:[#allocation4 + $0x4c] sm:$0xf]
    %v3123 = vld [vmem:[#allocation4 + $0x50] sm:$0xf]
    %v3124 = vld [vmem:[#allocation4 + $0x54] sm:$0xf]
    %v3125 = vld [vmem:[#allocation4 + $0x58] sm:$0xf]
    %v3126 = vld [vmem:[#allocation4 + $0x5c] sm:$0xf]
    %v3127 = vld [vmem:[#allocation4 + $0x60] sm:$0xf]
    %v3128 = vld [vmem:[#allocation4 + $0x64] sm:$0xf]
    %v3129 = vld [vmem:[#allocation4 + $0x68] sm:$0xf]
    %v3130 = vld [vmem:[#allocation4 + $0x6c] sm:$0xf]
    %v3131 = vld [vmem:[#allocation4 + $0x70] sm:$0xf]
    %v3132 = vld [vmem:[#allocation4 + $0x74] sm:$0xf]
    %v3133 = vld [vmem:[#allocation4 + $0x78] sm:$0xf]
    %v3134 = vld [vmem:[#allocation4 + $0x7c] sm:$0xf]
    %v3135 = vld [vmem:[#allocation4 + $0x80] sm:$0xf]
    %v3136 = vld [vmem:[#allocation4 + $0x84] sm:$0xf]
    %v3137 = vld [vmem:[#allocation4 + $0x88] sm:$0xf]
    %v3138 = vld [vmem:[#allocation4 + $0x8c] sm:$0xf]
    %v3139 = vld [vmem:[#allocation4 + $0x90] sm:$0xf]
    %v3140 = vld [vmem:[#allocation4 + $0x94] sm:$0xf]
    %v3141 = vld [vmem:[#allocation4 + $0x98] sm:$0xf]
    %v3142 = vld [vmem:[#allocation4 + $0x9c] sm:$0xf]
    %v3143 = vld [vmem:[#allocation4 + $0xa0] sm:$0xf]
    %v3144 = vld [vmem:[#allocation4 + $0xa4] sm:$0xf]
    %v3145 = vld [vmem:[#allocation4 + $0xa8] sm:$0xf]
    %v3146 = vld [vmem:[#allocation4 + $0xac] sm:$0xf]
    %v3147 = vld [vmem:[#allocation4 + $0xb0] sm:$0xf]
    %v3148 = vld [vmem:[#allocation4 + $0xb4] sm:$0xf]
    %v3149 = vld [vmem:[#allocation4 + $0xb8] sm:$0xf]
    %v3150 = vld [vmem:[#allocation4 + $0xbc] sm:$0xf]
    %v3151 = vld [vmem:[#allocation4 + $0xc0] sm:$0xf]
    %v3152 = vld [vmem:[#allocation4 + $0xc4] sm:$0xf]
    %v3153 = vld [vmem:[#allocation4 + $0xc8] sm:$0xf]
    %v3154 = vld [vmem:[#allocation4 + $0xcc] sm:$0xf]
    %v3155 = vld [vmem:[#allocation4 + $0xd0] sm:$0xf]
    %v3156 = vld [vmem:[#allocation4 + $0xd4] sm:$0xf]
    %v3157 = vld [vmem:[#allocation4 + $0xd8] sm:$0xf]
    %v3158 = vld [vmem:[#allocation4 + $0xdc] sm:$0xf]
    %v3159 = vld [vmem:[#allocation4 + $0xe0] sm:$0xf]
    %v3160 = vld [vmem:[#allocation4 + $0xe4] sm:$0xf]
    %v3161 = vld [vmem:[#allocation4 + $0xe8] sm:$0xf]
    %v3162 = vld [vmem:[#allocation4 + $0xec] sm:$0xf]
    %v3163 = vld [vmem:[#allocation4 + $0xf0] sm:$0xf]
    %v3164 = vld [vmem:[#allocation4 + $0xf4] sm:$0xf]
    %v3165 = vld [vmem:[#allocation4 + $0xf8] sm:$0xf]
    %v3166 = vld [vmem:[#allocation4 + $0xfc] sm:$0xf]
    %v3167 = vld [vmem:[#allocation4 + $0x100] sm:$0xf]
    %v3168 = vld [vmem:[#allocation4 + $0x104] sm:$0xf]
    %v3169 = vld [vmem:[#allocation4 + $0x108] sm:$0xf]
    %v3170 = vld [vmem:[#allocation4 + $0x10c] sm:$0xf]
    %v3171 = vld [vmem:[#allocation4 + $0x110] sm:$0xf]
    %v3172 = vld [vmem:[#allocation4 + $0x114] sm:$0xf]
    %v3173 = vld [vmem:[#allocation4 + $0x118] sm:$0xf]
    %v3174 = vld [vmem:[#allocation4 + $0x11c] sm:$0xf]
    %v3175 = vld [vmem:[#allocation4 + $0x120] sm:$0xf]
    %v3176 = vld [vmem:[#allocation4 + $0x124] sm:$0xf]
    %v3177 = vld [vmem:[#allocation4 + $0x128] sm:$0xf]
    %v3178 = vld [vmem:[#allocation4 + $0x12c] sm:$0xf]
    %v3179 = vld [vmem:[#allocation4 + $0x130] sm:$0xf]
    %v3180 = vld [vmem:[#allocation4 + $0x134] sm:$0xf]
    %v3181 = vld [vmem:[#allocation4 + $0x138] sm:$0xf]
    %v3182 = vld [vmem:[#allocation4 + $0x13c] sm:$0xf]
    %v3183 = vld [vmem:[#allocation4 + $0x140] sm:$0xf]
    %v3184 = vld [vmem:[#allocation4 + $0x144] sm:$0xf]
    %v3185 = vld [vmem:[#allocation4 + $0x148] sm:$0xf]
    %v3186 = vld [vmem:[#allocation4 + $0x14c] sm:$0xf]
    %v3187 = vld [vmem:[#allocation4 + $0x150] sm:$0xf]
    %v3188 = vld [vmem:[#allocation4 + $0x154] sm:$0xf]
    %v3189 = vld [vmem:[#allocation4 + $0x158] sm:$0xf]
    %v3190 = vld [vmem:[#allocation4 + $0x15c] sm:$0xf]
    %v3191 = vld [vmem:[#allocation4 + $0x160] sm:$0xf]
    %v3192 = vld [vmem:[#allocation4 + $0x164] sm:$0xf]
    %v3193 = vld [vmem:[#allocation4 + $0x168] sm:$0xf]
    %v3194 = vld [vmem:[#allocation4 + $0x16c] sm:$0xf]
    %v3195 = vld [vmem:[#allocation4 + $0x170] sm:$0xf]
    %v3196 = vld [vmem:[#allocation4 + $0x174] sm:$0xf]
    %v3197 = vld [vmem:[#allocation4 + $0x178] sm:$0xf]
    %v3198 = vld [vmem:[#allocation4 + $0x17c] sm:$0xf]
    %v3199 = vld [vmem:[#allocation4 + $0x180] sm:$0xf]
    %v3200 = vld [vmem:[#allocation4 + $0x184] sm:$0xf]
    %v3201 = vld [vmem:[#allocation4 + $0x188] sm:$0xf]
    %v3202 = vld [vmem:[#allocation4 + $0x18c] sm:$0xf]
    %v3203 = vld [vmem:[#allocation4 + $0x190] sm:$0xf]
    %v3204 = vld [vmem:[#allocation4 + $0x194] sm:$0xf]
    %v3205 = vld [vmem:[#allocation4 + $0x198] sm:$0xf]
    %v3206 = vld [vmem:[#allocation4 + $0x19c] sm:$0xf]
    %v3207 = vld [vmem:[#allocation4 + $0x1a0] sm:$0xf]
    %v3208 = vld [vmem:[#allocation4 + $0x1a4] sm:$0xf]
    %v3209 = vld [vmem:[#allocation4 + $0x1a8] sm:$0xf]
    %v3210 = vld [vmem:[#allocation4 + $0x1ac] sm:$0xf]
    %v3211 = vld [vmem:[#allocation4 + $0x1b0] sm:$0xf]
    %v3212 = vld [vmem:[#allocation4 + $0x1b4] sm:$0xf]
    %v3213 = vld [vmem:[#allocation4 + $0x1b8] sm:$0xf]
    %v3214 = vld [vmem:[#allocation4 + $0x1bc] sm:$0xf]
    %v3215 = vld [vmem:[#allocation4 + $0x1c0] sm:$0xf]
    %v3216 = vld [vmem:[#allocation4 + $0x1c4] sm:$0xf]
    %v3217 = vld [vmem:[#allocation4 + $0x1c8] sm:$0xf]
    %v3218 = vld [vmem:[#allocation4 + $0x1cc] sm:$0xf]
    %v3219 = vld [vmem:[#allocation4 + $0x1d0] sm:$0xf]
    %v3220 = vld [vmem:[#allocation4 + $0x1d4] sm:$0xf]
    %v3221 = vld [vmem:[#allocation4 + $0x1d8] sm:$0xf]
    %v3222 = vld [vmem:[#allocation4 + $0x1dc] sm:$0xf]
    %v3223 = vld [vmem:[#allocation4 + $0x1e0] sm:$0xf]
    %v3224 = vld [vmem:[#allocation4 + $0x1e4] sm:$0xf]
    %v3225 = vld [vmem:[#allocation4 + $0x1e8] sm:$0xf]
    %v3226 = vld [vmem:[#allocation4 + $0x1ec] sm:$0xf]
    %v3227 = vld [vmem:[#allocation4 + $0x1f0] sm:$0xf]
    %v3228 = vld [vmem:[#allocation4 + $0x1f4] sm:$0xf]
    %v3229 = vld [vmem:[#allocation4 + $0x1f8] sm:$0xf]
    %v3230 = vld [vmem:[#allocation4 + $0x1fc] sm:$0xf]
    %v3231 = vld [vmem:[#allocation4 + $0x200] sm:$0xf]
    %v3232 = vld [vmem:[#allocation4 + $0x204] sm:$0xf]
    %v3233 = vld [vmem:[#allocation4 + $0x208] sm:$0xf]
    %v3234 = vld [vmem:[#allocation4 + $0x20c] sm:$0xf]
    %v3235 = vld [vmem:[#allocation4 + $0x210] sm:$0xf]
    %v3236 = vld [vmem:[#allocation4 + $0x214] sm:$0xf]
    %v3237 = vld [vmem:[#allocation4 + $0x218] sm:$0xf]
    %v3238 = vld [vmem:[#allocation4 + $0x21c] sm:$0xf]
    %v3239 = vld [vmem:[#allocation4 + $0x220] sm:$0xf]
    %v3240 = vld [vmem:[#allocation4 + $0x224] sm:$0xf]
    %v3241 = vld [vmem:[#allocation4 + $0x228] sm:$0xf]
    %v3242 = vld [vmem:[#allocation4 + $0x22c] sm:$0xf]
    %v3243 = vld [vmem:[#allocation4 + $0x230] sm:$0xf]
    %v3244 = vld [vmem:[#allocation4 + $0x234] sm:$0xf]
    %v3245 = vld [vmem:[#allocation4 + $0x238] sm:$0xf]
    %v3246 = vld [vmem:[#allocation4 + $0x23c] sm:$0xf]
    %v3247 = vld [vmem:[#allocation4 + $0x240] sm:$0xf]
    %v3248 = vld [vmem:[#allocation4 + $0x244] sm:$0xf]
    %v3249 = vld [vmem:[#allocation4 + $0x248] sm:$0xf]
    %v3250 = vld [vmem:[#allocation4 + $0x24c] sm:$0xf]
    %v3251 = vld [vmem:[#allocation4 + $0x250] sm:$0xf]
    %v3252 = vld [vmem:[#allocation4 + $0x254] sm:$0xf]
    %v3253 = vld [vmem:[#allocation4 + $0x258] sm:$0xf]
    %v3254 = vld [vmem:[#allocation4 + $0x25c] sm:$0xf]
    %v3255 = vld [vmem:[#allocation4 + $0x260] sm:$0xf]
    %v3256 = vld [vmem:[#allocation4 + $0x264] sm:$0xf]
    %v3257 = vld [vmem:[#allocation4 + $0x268] sm:$0xf]
    %v3258 = vld [vmem:[#allocation4 + $0x26c] sm:$0xf]
    %v3259 = vld [vmem:[#allocation4 + $0x270] sm:$0xf]
    %v3260 = vld [vmem:[#allocation4 + $0x274] sm:$0xf]
    %v3261 = vld [vmem:[#allocation4 + $0x278] sm:$0xf]
    %v3262 = vld [vmem:[#allocation4 + $0x27c] sm:$0xf]
    %v3263 = vld [vmem:[#allocation4 + $0x280] sm:$0xf]
    %v3264 = vld [vmem:[#allocation4 + $0x284] sm:$0xf]
    %v3265 = vld [vmem:[#allocation4 + $0x288] sm:$0xf]
    %v3266 = vld [vmem:[#allocation4 + $0x28c] sm:$0xf]
    %v3267 = vld [vmem:[#allocation4 + $0x290] sm:$0xf]
    %v3268 = vld [vmem:[#allocation4 + $0x294] sm:$0xf]
    %v3269 = vld [vmem:[#allocation4 + $0x298] sm:$0xf]
    %v3270 = vld [vmem:[#allocation4 + $0x29c] sm:$0xf]
    %v3271 = vld [vmem:[#allocation4 + $0x2a0] sm:$0xf]
    %v3272 = vld [vmem:[#allocation4 + $0x2a4] sm:$0xf]
    %v3273 = vld [vmem:[#allocation4 + $0x2a8] sm:$0xf]
    %v3274 = vld [vmem:[#allocation4 + $0x2ac] sm:$0xf]
    %v3275 = vld [vmem:[#allocation4 + $0x2b0] sm:$0xf]
    %v3276 = vld [vmem:[#allocation4 + $0x2b4] sm:$0xf]
    %v3277 = vld [vmem:[#allocation4 + $0x2b8] sm:$0xf]
    %v3278 = vld [vmem:[#allocation4 + $0x2bc] sm:$0xf]
    %v3279 = vld [vmem:[#allocation4 + $0x2c0] sm:$0xf]
    %v3280 = vld [vmem:[#allocation4 + $0x2c4] sm:$0xf]
    %v3281 = vld [vmem:[#allocation4 + $0x2c8] sm:$0xf]
    %v3282 = vld [vmem:[#allocation4 + $0x2cc] sm:$0xf]
    %v3283 = vld [vmem:[#allocation4 + $0x2d0] sm:$0xf]
    %v3284 = vld [vmem:[#allocation4 + $0x2d4] sm:$0xf]
    %v3285 = vld [vmem:[#allocation4 + $0x2d8] sm:$0xf]
    %v3286 = vld [vmem:[#allocation4 + $0x2dc] sm:$0xf]
    %v3287 = vld [vmem:[#allocation4 + $0x2e0] sm:$0xf]
    %v3288 = vld [vmem:[#allocation4 + $0x2e4] sm:$0xf]
    %v3289 = vld [vmem:[#allocation4 + $0x2e8] sm:$0xf]
    %v3290 = vld [vmem:[#allocation4 + $0x2ec] sm:$0xf]
    %v3291 = vld [vmem:[#allocation4 + $0x2f0] sm:$0xf]
    %v3292 = vld [vmem:[#allocation4 + $0x2f4] sm:$0xf]
    %v3293 = vld [vmem:[#allocation4 + $0x2f8] sm:$0xf]
    %v3294 = vld [vmem:[#allocation4 + $0x2fc] sm:$0xf]
    %v3295 = vld [vmem:[#allocation4 + $0x300] sm:$0xf]
    %v3296 = vld [vmem:[#allocation4 + $0x304] sm:$0xf]
    %v3297 = vld [vmem:[#allocation4 + $0x308] sm:$0xf]
    %v3298 = vld [vmem:[#allocation4 + $0x30c] sm:$0xf]
    %v3299 = vld [vmem:[#allocation4 + $0x310] sm:$0xf]
    %v3300 = vld [vmem:[#allocation4 + $0x314] sm:$0xf]
    %v3301 = vld [vmem:[#allocation4 + $0x318] sm:$0xf]
    %v3302 = vld [vmem:[#allocation4 + $0x31c] sm:$0xf]
    %v3303 = vld [vmem:[#allocation4 + $0x320] sm:$0xf]
    %v3304 = vld [vmem:[#allocation4 + $0x324] sm:$0xf]
    %v3305 = vld [vmem:[#allocation4 + $0x328] sm:$0xf]
    %v3306 = vld [vmem:[#allocation4 + $0x32c] sm:$0xf]
    %v3307 = vld [vmem:[#allocation4 + $0x330] sm:$0xf]
    %v3308 = vld [vmem:[#allocation4 + $0x334] sm:$0xf]
    %v3309 = vld [vmem:[#allocation4 + $0x338] sm:$0xf]
    %v3310 = vld [vmem:[#allocation4 + $0x33c] sm:$0xf]
    %v3311 = vld [vmem:[#allocation4 + $0x340] sm:$0xf]
    %v3312 = vld [vmem:[#allocation4 + $0x344] sm:$0xf]
    %v3313 = vld [vmem:[#allocation4 + $0x348] sm:$0xf]
    %v3314 = vld [vmem:[#allocation4 + $0x34c] sm:$0xf]
    %v3315 = vld [vmem:[#allocation4 + $0x350] sm:$0xf]
    %v3316 = vld [vmem:[#allocation4 + $0x354] sm:$0xf]
    %v3317 = vld [vmem:[#allocation4 + $0x358] sm:$0xf]
    %v3318 = vld [vmem:[#allocation4 + $0x35c] sm:$0xf]
    %v3319 = vld [vmem:[#allocation4 + $0x360] sm:$0xf]
    %v3320 = vld [vmem:[#allocation4 + $0x364] sm:$0xf]
    %v3321 = vld [vmem:[#allocation4 + $0x368] sm:$0xf]
    %v3322 = vld [vmem:[#allocation4 + $0x36c] sm:$0xf]
    %v3323 = vld [vmem:[#allocation4 + $0x370] sm:$0xf]
    %v3324 = vld [vmem:[#allocation4 + $0x374] sm:$0xf]
    %v3325 = vld [vmem:[#allocation4 + $0x378] sm:$0xf]
    %v3326 = vld [vmem:[#allocation4 + $0x37c] sm:$0xf]
    %v3327 = vld [vmem:[#allocation4 + $0x380] sm:$0xf]
    %v3328 = vld [vmem:[#allocation4 + $0x384] sm:$0xf]
    %v3329 = vld [vmem:[#allocation4 + $0x388] sm:$0xf]
    %v3330 = vld [vmem:[#allocation4 + $0x38c] sm:$0xf]
    %v3331 = vld [vmem:[#allocation4 + $0x390] sm:$0xf]
    %v3332 = vld [vmem:[#allocation4 + $0x394] sm:$0xf]
    %v3333 = vld [vmem:[#allocation4 + $0x398] sm:$0xf]
    %v3334 = vld [vmem:[#allocation4 + $0x39c] sm:$0xf]
    %v3335 = vld [vmem:[#allocation4 + $0x3a0] sm:$0xf]
    %v3336 = vld [vmem:[#allocation4 + $0x3a4] sm:$0xf]
    %v3337 = vld [vmem:[#allocation4 + $0x3a8] sm:$0xf]
    %v3338 = vld [vmem:[#allocation4 + $0x3ac] sm:$0xf]
    %v3339 = vld [vmem:[#allocation4 + $0x3b0] sm:$0xf]
    %v3340 = vld [vmem:[#allocation4 + $0x3b4] sm:$0xf]
    %v3341 = vld [vmem:[#allocation4 + $0x3b8] sm:$0xf]
    %v3342 = vld [vmem:[#allocation4 + $0x3bc] sm:$0xf]
    %v3343 = vld [vmem:[#allocation4 + $0x3c0] sm:$0xf]
    %v3344 = vld [vmem:[#allocation4 + $0x3c4] sm:$0xf]
    %v3345 = vld [vmem:[#allocation4 + $0x3c8] sm:$0xf]
    %v3346 = vld [vmem:[#allocation4 + $0x3cc] sm:$0xf]
    %v3347 = vld [vmem:[#allocation4 + $0x3d0] sm:$0xf]
    %v3348 = vld [vmem:[#allocation4 + $0x3d4] sm:$0xf]
    %v3349 = vld [vmem:[#allocation4 + $0x3d8] sm:$0xf]
    %v3350 = vld [vmem:[#allocation4 + $0x3dc] sm:$0xf]
    %v3351 = vld [vmem:[#allocation4 + $0x3e0] sm:$0xf]
    %v3352 = vld [vmem:[#allocation4 + $0x3e4] sm:$0xf]
    %v3353 = vld [vmem:[#allocation4 + $0x3e8] sm:$0xf]
    %v3354 = vld [vmem:[#allocation4 + $0x3ec] sm:$0xf]
    %v3355 = vld [vmem:[#allocation4 + $0x3f0] sm:$0xf]
    %v3356 = vld [vmem:[#allocation4 + $0x3f4] sm:$0xf]
    %v3357 = vld [vmem:[#allocation4 + $0x3f8] sm:$0xf]
    %v3358 = vld [vmem:[#allocation4 + $0x3fc] sm:$0xf]
    %v3359 = vld [vmem:[#allocation4 + $0x400] sm:$0xf]
    %v3360 = vld [vmem:[#allocation4 + $0x404] sm:$0xf]
    %v3361 = vld [vmem:[#allocation4 + $0x408] sm:$0xf]
    %v3362 = vld [vmem:[#allocation4 + $0x40c] sm:$0xf]
    %v3363 = vld [vmem:[#allocation4 + $0x410] sm:$0xf]
    %v3364 = vld [vmem:[#allocation4 + $0x414] sm:$0xf]
    %v3365 = vld [vmem:[#allocation4 + $0x418] sm:$0xf]
    %v3366 = vld [vmem:[#allocation4 + $0x41c] sm:$0xf]
    %v3367 = vld [vmem:[#allocation4 + $0x420] sm:$0xf]
    %v3368 = vld [vmem:[#allocation4 + $0x424] sm:$0xf]
    %v3369 = vld [vmem:[#allocation4 + $0x428] sm:$0xf]
    %v3370 = vld [vmem:[#allocation4 + $0x42c] sm:$0xf]
    %v3371 = vld [vmem:[#allocation4 + $0x430] sm:$0xf]
    %v3372 = vld [vmem:[#allocation4 + $0x434] sm:$0xf]
    %v3373 = vld [vmem:[#allocation4 + $0x438] sm:$0xf]
    %v3374 = vld [vmem:[#allocation4 + $0x43c] sm:$0xf]
    %v3375 = vld [vmem:[#allocation4 + $0x440] sm:$0xf]
    %v3376 = vld [vmem:[#allocation4 + $0x444] sm:$0xf]
    %v3377 = vld [vmem:[#allocation4 + $0x448] sm:$0xf]
    %v3378 = vld [vmem:[#allocation4 + $0x44c] sm:$0xf]
    %v3379 = vld [vmem:[#allocation4 + $0x450] sm:$0xf]
    %v3380 = vld [vmem:[#allocation4 + $0x454] sm:$0xf]
    %v3381 = vld [vmem:[#allocation4 + $0x458] sm:$0xf]
    %v3382 = vld [vmem:[#allocation4 + $0x45c] sm:$0xf]
    %v3383 = vld [vmem:[#allocation4 + $0x460] sm:$0xf]
    %v3384 = vld [vmem:[#allocation4 + $0x464] sm:$0xf]
    %v3385 = vld [vmem:[#allocation4 + $0x468] sm:$0xf]
    %v3386 = vld [vmem:[#allocation4 + $0x46c] sm:$0xf]
    %v3387 = vld [vmem:[#allocation4 + $0x470] sm:$0xf]
    %v3388 = vld [vmem:[#allocation4 + $0x474] sm:$0xf]
    %v3389 = vld [vmem:[#allocation4 + $0x478] sm:$0xf]
    %v3390 = vld [vmem:[#allocation4 + $0x47c] sm:$0xf]
    %v3391 = vld [vmem:[#allocation4 + $0x480] sm:$0xf]
    %v3392 = vld [vmem:[#allocation4 + $0x484] sm:$0xf]
    %v3393 = vld [vmem:[#allocation4 + $0x488] sm:$0xf]
    %v3394 = vld [vmem:[#allocation4 + $0x48c] sm:$0xf]
    %v3395 = vld [vmem:[#allocation4 + $0x490] sm:$0xf]
    %v3396 = vld [vmem:[#allocation4 + $0x494] sm:$0xf]
    %v3397 = vld [vmem:[#allocation4 + $0x498] sm:$0xf]
    %v3398 = vld [vmem:[#allocation4 + $0x49c] sm:$0xf]
    %v3399 = vld [vmem:[#allocation4 + $0x4a0] sm:$0xf]
    %v3400 = vld [vmem:[#allocation4 + $0x4a4] sm:$0xf]
    %v3401 = vld [vmem:[#allocation4 + $0x4a8] sm:$0xf]
    %v3402 = vld [vmem:[#allocation4 + $0x4ac] sm:$0xf]
    %v3403 = vld [vmem:[#allocation4 + $0x4b0] sm:$0xf]
    %v3404 = vld [vmem:[#allocation4 + $0x4b4] sm:$0xf]
    %v3405 = vld [vmem:[#allocation4 + $0x4b8] sm:$0xf]
    %v3406 = vld [vmem:[#allocation4 + $0x4bc] sm:$0xf]
    %v3407 = vld [vmem:[#allocation4 + $0x4c0] sm:$0xf]
    %v3408 = vld [vmem:[#allocation4 + $0x4c4] sm:$0xf]
    %v3409 = vld [vmem:[#allocation4 + $0x4c8] sm:$0xf]
    %v3410 = vld [vmem:[#allocation4 + $0x4cc] sm:$0xf]
    %v3411 = vld [vmem:[#allocation4 + $0x4d0] sm:$0xf]
    %v3412 = vld [vmem:[#allocation4 + $0x4d4] sm:$0xf]
    %v3413 = vld [vmem:[#allocation4 + $0x4d8] sm:$0xf]
    %v3414 = vld [vmem:[#allocation4 + $0x4dc] sm:$0xf]
    %v3415 = vld [vmem:[#allocation4 + $0x4e0] sm:$0xf]
    %v3416 = vld [vmem:[#allocation4 + $0x4e4] sm:$0xf]
    %v3417 = vld [vmem:[#allocation4 + $0x4e8] sm:$0xf]
    %v3418 = vld [vmem:[#allocation4 + $0x4ec] sm:$0xf]
    %v3419 = vld [vmem:[#allocation4 + $0x4f0] sm:$0xf]
    %v3420 = vld [vmem:[#allocation4 + $0x4f4] sm:$0xf]
    %v3421 = vld [vmem:[#allocation4 + $0x4f8] sm:$0xf]
    %v3422 = vld [vmem:[#allocation4 + $0x4fc] sm:$0xf]
    %v3423 = vld [vmem:[#allocation4 + $0x500] sm:$0xf]
    %v3424 = vld [vmem:[#allocation4 + $0x504] sm:$0xf]
    %v3425 = vld [vmem:[#allocation4 + $0x508] sm:$0xf]
    %v3426 = vld [vmem:[#allocation4 + $0x50c] sm:$0xf]
    %v3427 = vld [vmem:[#allocation4 + $0x510] sm:$0xf]
    %v3428 = vld [vmem:[#allocation4 + $0x514] sm:$0xf]
    %v3429 = vld [vmem:[#allocation4 + $0x518] sm:$0xf]
    %v3430 = vld [vmem:[#allocation4 + $0x51c] sm:$0xf]
    %v3431 = vld [vmem:[#allocation4 + $0x520] sm:$0xf]
    %v3432 = vld [vmem:[#allocation4 + $0x524] sm:$0xf]
    %v3433 = vld [vmem:[#allocation4 + $0x528] sm:$0xf]
    %v3434 = vld [vmem:[#allocation4 + $0x52c] sm:$0xf]
    %v3435 = vld [vmem:[#allocation4 + $0x530] sm:$0xf]
    %v3436 = vld [vmem:[#allocation4 + $0x534] sm:$0xf]
    %v3437 = vld [vmem:[#allocation4 + $0x538] sm:$0xf]
    %v3438 = vld [vmem:[#allocation4 + $0x53c] sm:$0xf]
    %v3439 = vld [vmem:[#allocation4 + $0x540] sm:$0xf]
    %v3440 = vld [vmem:[#allocation4 + $0x544] sm:$0xf]
    %v3441 = vld [vmem:[#allocation4 + $0x548] sm:$0xf]
    %v3442 = vld [vmem:[#allocation4 + $0x54c] sm:$0xf]
    %v3443 = vld [vmem:[#allocation4 + $0x550] sm:$0xf]
    %v3444 = vld [vmem:[#allocation4 + $0x554] sm:$0xf]
    %v3445 = vld [vmem:[#allocation4 + $0x558] sm:$0xf]
    %v3446 = vld [vmem:[#allocation4 + $0x55c] sm:$0xf]
    %v3447 = vld [vmem:[#allocation4 + $0x560] sm:$0xf]
    %v3448 = vld [vmem:[#allocation4 + $0x564] sm:$0xf]
    %v3449 = vld [vmem:[#allocation4 + $0x568] sm:$0xf]
    %v3450 = vld [vmem:[#allocation4 + $0x56c] sm:$0xf]
    %v3451 = vld [vmem:[#allocation4 + $0x570] sm:$0xf]
    %v3452 = vld [vmem:[#allocation4 + $0x574] sm:$0xf]
    %v3453 = vld [vmem:[#allocation4 + $0x578] sm:$0xf]
    %v3454 = vld [vmem:[#allocation4 + $0x57c] sm:$0xf]
    %v3455 = vld [vmem:[#allocation4 + $0x580] sm:$0xf]
    %v3456 = vld [vmem:[#allocation4 + $0x584] sm:$0xf]
    %v3457 = vld [vmem:[#allocation4 + $0x588] sm:$0xf]
    %v3458 = vld [vmem:[#allocation4 + $0x58c] sm:$0xf]
    %v3459 = vld [vmem:[#allocation4 + $0x590] sm:$0xf]
    %v3460 = vld [vmem:[#allocation4 + $0x594] sm:$0xf]
    %v3461 = vld [vmem:[#allocation4 + $0x598] sm:$0xf]
    %v3462 = vld [vmem:[#allocation4 + $0x59c] sm:$0xf]
    %v3463 = vld [vmem:[#allocation4 + $0x5a0] sm:$0xf]
    %v3464 = vld [vmem:[#allocation4 + $0x5a4] sm:$0xf]
    %v3465 = vld [vmem:[#allocation4 + $0x5a8] sm:$0xf]
    %v3466 = vld [vmem:[#allocation4 + $0x5ac] sm:$0xf]
    %v3467 = vld [vmem:[#allocation4 + $0x5b0] sm:$0xf]
    %v3468 = vld [vmem:[#allocation4 + $0x5b4] sm:$0xf]
    %v3469 = vld [vmem:[#allocation4 + $0x5b8] sm:$0xf]
    %v3470 = vld [vmem:[#allocation4 + $0x5bc] sm:$0xf]
    %v3471 = vld [vmem:[#allocation4 + $0x5c0] sm:$0xf]
    %v3472 = vld [vmem:[#allocation4 + $0x5c4] sm:$0xf]
    %v3473 = vld [vmem:[#allocation4 + $0x5c8] sm:$0xf]
    %v3474 = vld [vmem:[#allocation4 + $0x5cc] sm:$0xf]
    %v3475 = vld [vmem:[#allocation4 + $0x5d0] sm:$0xf]
    %v3476 = vld [vmem:[#allocation4 + $0x5d4] sm:$0xf]
    %v3477 = vld [vmem:[#allocation4 + $0x5d8] sm:$0xf]
    %v3478 = vld [vmem:[#allocation4 + $0x5dc] sm:$0xf]
    %v3479 = vld [vmem:[#allocation4 + $0x5e0] sm:$0xf]
    %v3480 = vld [vmem:[#allocation4 + $0x5e4] sm:$0xf]
    %v3481 = vld [vmem:[#allocation4 + $0x5e8] sm:$0xf]
    %v3482 = vld [vmem:[#allocation4 + $0x5ec] sm:$0xf]
    %v3483 = vld [vmem:[#allocation4 + $0x5f0] sm:$0xf]
    %v3484 = vld [vmem:[#allocation4 + $0x5f4] sm:$0xf]
    %v3485 = vld [vmem:[#allocation4 + $0x5f8] sm:$0xf]
    %v3486 = vld [vmem:[#allocation4 + $0x5fc] sm:$0xf]
    %v3487 = vld [vmem:[%s7] sm:$0x1]
    %v3488 = vld [vmem:[%s7 + $0x1] sm:$0x1]
    %v3489 = vld [vmem:[%s7 + $0x2] sm:$0x1]
    %v3490 = vld [vmem:[%s7 + $0x3] sm:$0x1]
    %v3491 = vld [vmem:[%s7 + $0x4] sm:$0x1]
    %v3492 = vld [vmem:[%s7 + $0x5] sm:$0x1]
    %v3499 = vperm.slane %v3487, 0
    %v3500 = vperm.slane %v3488, 0
    %v3501 = vperm.slane %v3489, 0
    %v3502 = vperm.slane %v3490, 0
    %v3503 = vperm.slane %v3491, 0
    %v3504 = vperm.slane %v3492, 0
    %v3513 = vunpack.c.l.b16 %v3091
    %v3514 = vunpack.c.h.b16 %v3091
    %v3515 = vunpack.c.l.b16 %v3092
    %v3516 = vunpack.c.h.b16 %v3092
    %v3517 = vpack.c.b16 %v3513, %v3513
    %v3518 = vpack.c.b16 %v3514, %v3514
    %v3519 = vpack.c.b16 %v3515, %v3515
    %v3520 = vpack.c.b16 %v3516, %v3516
    %v3589 = vunpack.c.l.b16 %v3103
    %v3590 = vunpack.c.l.b16 %v3104
    %v3591 = vunpack.c.l.b16 %v3105
    %v3592 = vunpack.c.l.b16 %v3106
    %v3593 = vunpack.c.l.b16 %v3107
    %v3594 = vunpack.c.l.b16 %v3108
    %v3595 = vunpack.c.l.b16 %v3109
    %v3596 = vunpack.c.l.b16 %v3110
    %v3597 = vunpack.c.l.b16 %v3111
    %v3598 = vunpack.c.l.b16 %v3112
    %v3599 = vunpack.c.l.b16 %v3113
    %v3600 = vunpack.c.l.b16 %v3114
    %v3601 = vunpack.c.l.b16 %v3115
    %v3602 = vunpack.c.l.b16 %v3116
    %v3603 = vunpack.c.l.b16 %v3117
    %v3604 = vunpack.c.l.b16 %v3118
    %v3605 = vunpack.c.l.b16 %v3119
    %v3606 = vunpack.c.l.b16 %v3120
    %v3607 = vunpack.c.l.b16 %v3121
    %v3608 = vunpack.c.l.b16 %v3122
    %v3609 = vunpack.c.l.b16 %v3123
    %v3610 = vunpack.c.l.b16 %v3124
    %v3611 = vunpack.c.l.b16 %v3125
    %v3612 = vunpack.c.l.b16 %v3126
    %v3613 = vunpack.c.l.b16 %v3127
    %v3614 = vunpack.c.l.b16 %v3128
    %v3615 = vunpack.c.l.b16 %v3129
    %v3616 = vunpack.c.l.b16 %v3130
    %v3617 = vunpack.c.l.b16 %v3131
    %v3618 = vunpack.c.l.b16 %v3132
    %v3619 = vunpack.c.l.b16 %v3133
    %v3620 = vunpack.c.l.b16 %v3134
    %v3621 = vunpack.c.l.b16 %v3135
    %v3622 = vunpack.c.l.b16 %v3136
    %v3623 = vunpack.c.l.b16 %v3137
    %v3624 = vunpack.c.l.b16 %v3138
    %v3625 = vunpack.c.l.b16 %v3139
    %v3626 = vunpack.c.l.b16 %v3140
    %v3627 = vunpack.c.l.b16 %v3141
    %v3628 = vunpack.c.l.b16 %v3142
    %v3629 = vunpack.c.l.b16 %v3143
    %v3630 = vunpack.c.l.b16 %v3144
    %v3631 = vunpack.c.l.b16 %v3145
    %v3632 = vunpack.c.l.b16 %v3146
    %v3633 = vunpack.c.l.b16 %v3147
    %v3634 = vunpack.c.l.b16 %v3148
    %v3635 = vunpack.c.l.b16 %v3149
    %v3636 = vunpack.c.l.b16 %v3150
    %v3637 = vunpack.c.l.b16 %v3151
    %v3638 = vunpack.c.l.b16 %v3152
    %v3639 = vunpack.c.l.b16 %v3153
    %v3640 = vunpack.c.l.b16 %v3154
    %v3641 = vunpack.c.l.b16 %v3155
    %v3642 = vunpack.c.l.b16 %v3156
    %v3643 = vunpack.c.l.b16 %v3157
    %v3644 = vunpack.c.l.b16 %v3158
    %v3645 = vunpack.c.l.b16 %v3159
    %v3646 = vunpack.c.l.b16 %v3160
    %v3647 = vunpack.c.l.b16 %v3161
    %v3648 = vunpack.c.l.b16 %v3162
    %v3649 = vunpack.c.l.b16 %v3163
    %v3650 = vunpack.c.l.b16 %v3164
    %v3651 = vunpack.c.l.b16 %v3165
    %v3652 = vunpack.c.l.b16 %v3166
    %v3653 = vpack.c.b16 %v3590, %v3589
    %v3654 = vpack.c.b16 %v3592, %v3591
    %v3655 = vpack.c.b16 %v3594, %v3593
    %v3656 = vpack.c.b16 %v3596, %v3595
    %v3657 = vpack.c.b16 %v3598, %v3597
    %v3658 = vpack.c.b16 %v3600, %v3599
    %v3659 = vpack.c.b16 %v3602, %v3601
    %v3660 = vpack.c.b16 %v3604, %v3603
    %v3661 = vpack.c.b16 %v3606, %v3605
    %v3662 = vpack.c.b16 %v3608, %v3607
    %v3663 = vpack.c.b16 %v3610, %v3609
    %v3664 = vpack.c.b16 %v3612, %v3611
    %v3665 = vpack.c.b16 %v3614, %v3613
    %v3666 = vpack.c.b16 %v3616, %v3615
    %v3667 = vpack.c.b16 %v3618, %v3617
    %v3668 = vpack.c.b16 %v3620, %v3619
    %v3669 = vpack.c.b16 %v3622, %v3621
    %v3670 = vpack.c.b16 %v3624, %v3623
    %v3671 = vpack.c.b16 %v3626, %v3625
    %v3672 = vpack.c.b16 %v3628, %v3627
    %v3673 = vpack.c.b16 %v3630, %v3629
    %v3674 = vpack.c.b16 %v3632, %v3631
    %v3675 = vpack.c.b16 %v3634, %v3633
    %v3676 = vpack.c.b16 %v3636, %v3635
    %v3677 = vpack.c.b16 %v3638, %v3637
    %v3678 = vpack.c.b16 %v3640, %v3639
    %v3679 = vpack.c.b16 %v3642, %v3641
    %v3680 = vpack.c.b16 %v3644, %v3643
    %v3681 = vpack.c.b16 %v3646, %v3645
    %v3682 = vpack.c.b16 %v3648, %v3647
    %v3683 = vpack.c.b16 %v3650, %v3649
    %v3684 = vpack.c.b16 %v3652, %v3651
    %3717 = vmatpush.bf16.msra.mxu0 %v3660
    %3718 = vmatpush.bf16.msra.mxu0 %v3659
    %3719 = vmatpush.bf16.msra.mxu0 %v3658
    %3720 = vmatpush.bf16.msra.mxu0 %v3657
    %3721 = vmatpush.bf16.msra.mxu0 %v3656
    %3722 = vmatpush.bf16.msra.mxu0 %v3655
    %3723 = vmatpush.bf16.msra.mxu0 %v3654
    %3724 = vmatpush.bf16.msra.mxu0 %v3653
    %3725 = vmatmul.bf16.gmra.mxu0 %v3517
    %v3726 = vpop.f32.mrf.mxu0
    %v3727 = vadd.f32 %v3499, %v3726
    %v3728 = vpop.f32.mrf.mxu0
    %3729 = vdwg.mxu0
    %3730 = vmatpush.bf16.msra.mxu0 %v3668
    %3731 = vmatpush.bf16.msra.mxu0 %v3667
    %3732 = vmatpush.bf16.msra.mxu0 %v3666
    %3733 = vmatpush.bf16.msra.mxu0 %v3665
    %3734 = vmatpush.bf16.msra.mxu0 %v3664
    %3735 = vmatpush.bf16.msra.mxu0 %v3663
    %3736 = vmatpush.bf16.msra.mxu0 %v3662
    %3737 = vmatpush.bf16.msra.mxu0 %v3661
    %3738 = vmatmul.bf16.gmra.mxu0 %v3518
    %v3739 = vpop.f32.mrf.mxu0
    %v3740 = vadd.f32 %v3727, %v3739
    %v3741 = vpop.f32.mrf.mxu0
    %3742 = vdwg.mxu0
    %3743 = vmatpush.bf16.msra.mxu0 %v3676
    %3744 = vmatpush.bf16.msra.mxu0 %v3675
    %3745 = vmatpush.bf16.msra.mxu0 %v3674
    %3746 = vmatpush.bf16.msra.mxu0 %v3673
    %3747 = vmatpush.bf16.msra.mxu0 %v3672
    %3748 = vmatpush.bf16.msra.mxu0 %v3671
    %3749 = vmatpush.bf16.msra.mxu0 %v3670
    %3750 = vmatpush.bf16.msra.mxu0 %v3669
    %3751 = vmatmul.bf16.gmra.mxu0 %v3519
    %v3752 = vpop.f32.mrf.mxu0
    %v3753 = vadd.f32 %v3740, %v3752
    %v3754 = vpop.f32.mrf.mxu0
    %3755 = vdwg.mxu0
    %3756 = vmatpush.bf16.msra.mxu0 %v3684
    %3757 = vmatpush.bf16.msra.mxu0 %v3683
    %3758 = vmatpush.bf16.msra.mxu0 %v3682
    %3759 = vmatpush.bf16.msra.mxu0 %v3681
    %3760 = vmatpush.bf16.msra.mxu0 %v3680
    %3761 = vmatpush.bf16.msra.mxu0 %v3679
    %3762 = vmatpush.bf16.msra.mxu0 %v3678
    %3763 = vmatpush.bf16.msra.mxu0 %v3677
    %3764 = vmatmul.bf16.gmra.mxu0 %v3520
    %v3765 = vpop.f32.mrf.mxu0
    %v3766 = vadd.f32 %v3753, %v3765
    %v3767 = vpop.f32.mrf.mxu0
    %3768 = vdwg.mxu0
    %v3771 = vunpack.c.l.b16 %v3093
    %v3772 = vunpack.c.h.b16 %v3093
    %v3773 = vunpack.c.l.b16 %v3094
    %v3774 = vunpack.c.h.b16 %v3094
    %v3775 = vpack.c.b16 %v3771, %v3771
    %v3776 = vpack.c.b16 %v3772, %v3772
    %v3777 = vpack.c.b16 %v3773, %v3773
    %v3778 = vpack.c.b16 %v3774, %v3774
    %v3847 = vunpack.c.l.b16 %v3167
    %v3848 = vunpack.c.l.b16 %v3168
    %v3849 = vunpack.c.l.b16 %v3169
    %v3850 = vunpack.c.l.b16 %v3170
    %v3851 = vunpack.c.l.b16 %v3171
    %v3852 = vunpack.c.l.b16 %v3172
    %v3853 = vunpack.c.l.b16 %v3173
    %v3854 = vunpack.c.l.b16 %v3174
    %v3855 = vunpack.c.l.b16 %v3175
    %v3856 = vunpack.c.l.b16 %v3176
    %v3857 = vunpack.c.l.b16 %v3177
    %v3858 = vunpack.c.l.b16 %v3178
    %v3859 = vunpack.c.l.b16 %v3179
    %v3860 = vunpack.c.l.b16 %v3180
    %v3861 = vunpack.c.l.b16 %v3181
    %v3862 = vunpack.c.l.b16 %v3182
    %v3863 = vunpack.c.l.b16 %v3183
    %v3864 = vunpack.c.l.b16 %v3184
    %v3865 = vunpack.c.l.b16 %v3185
    %v3866 = vunpack.c.l.b16 %v3186
    %v3867 = vunpack.c.l.b16 %v3187
    %v3868 = vunpack.c.l.b16 %v3188
    %v3869 = vunpack.c.l.b16 %v3189
    %v3870 = vunpack.c.l.b16 %v3190
    %v3871 = vunpack.c.l.b16 %v3191
    %v3872 = vunpack.c.l.b16 %v3192
    %v3873 = vunpack.c.l.b16 %v3193
    %v3874 = vunpack.c.l.b16 %v3194
    %v3875 = vunpack.c.l.b16 %v3195
    %v3876 = vunpack.c.l.b16 %v3196
    %v3877 = vunpack.c.l.b16 %v3197
    %v3878 = vunpack.c.l.b16 %v3198
    %v3879 = vunpack.c.l.b16 %v3199
    %v3880 = vunpack.c.l.b16 %v3200
    %v3881 = vunpack.c.l.b16 %v3201
    %v3882 = vunpack.c.l.b16 %v3202
    %v3883 = vunpack.c.l.b16 %v3203
    %v3884 = vunpack.c.l.b16 %v3204
    %v3885 = vunpack.c.l.b16 %v3205
    %v3886 = vunpack.c.l.b16 %v3206
    %v3887 = vunpack.c.l.b16 %v3207
    %v3888 = vunpack.c.l.b16 %v3208
    %v3889 = vunpack.c.l.b16 %v3209
    %v3890 = vunpack.c.l.b16 %v3210
    %v3891 = vunpack.c.l.b16 %v3211
    %v3892 = vunpack.c.l.b16 %v3212
    %v3893 = vunpack.c.l.b16 %v3213
    %v3894 = vunpack.c.l.b16 %v3214
    %v3895 = vunpack.c.l.b16 %v3215
    %v3896 = vunpack.c.l.b16 %v3216
    %v3897 = vunpack.c.l.b16 %v3217
    %v3898 = vunpack.c.l.b16 %v3218
    %v3899 = vunpack.c.l.b16 %v3219
    %v3900 = vunpack.c.l.b16 %v3220
    %v3901 = vunpack.c.l.b16 %v3221
    %v3902 = vunpack.c.l.b16 %v3222
    %v3903 = vunpack.c.l.b16 %v3223
    %v3904 = vunpack.c.l.b16 %v3224
    %v3905 = vunpack.c.l.b16 %v3225
    %v3906 = vunpack.c.l.b16 %v3226
    %v3907 = vunpack.c.l.b16 %v3227
    %v3908 = vunpack.c.l.b16 %v3228
    %v3909 = vunpack.c.l.b16 %v3229
    %v3910 = vunpack.c.l.b16 %v3230
    %v3911 = vpack.c.b16 %v3848, %v3847
    %v3912 = vpack.c.b16 %v3850, %v3849
    %v3913 = vpack.c.b16 %v3852, %v3851
    %v3914 = vpack.c.b16 %v3854, %v3853
    %v3915 = vpack.c.b16 %v3856, %v3855
    %v3916 = vpack.c.b16 %v3858, %v3857
    %v3917 = vpack.c.b16 %v3860, %v3859
    %v3918 = vpack.c.b16 %v3862, %v3861
    %v3919 = vpack.c.b16 %v3864, %v3863
    %v3920 = vpack.c.b16 %v3866, %v3865
    %v3921 = vpack.c.b16 %v3868, %v3867
    %v3922 = vpack.c.b16 %v3870, %v3869
    %v3923 = vpack.c.b16 %v3872, %v3871
    %v3924 = vpack.c.b16 %v3874, %v3873
    %v3925 = vpack.c.b16 %v3876, %v3875
    %v3926 = vpack.c.b16 %v3878, %v3877
    %v3927 = vpack.c.b16 %v3880, %v3879
    %v3928 = vpack.c.b16 %v3882, %v3881
    %v3929 = vpack.c.b16 %v3884, %v3883
    %v3930 = vpack.c.b16 %v3886, %v3885
    %v3931 = vpack.c.b16 %v3888, %v3887
    %v3932 = vpack.c.b16 %v3890, %v3889
    %v3933 = vpack.c.b16 %v3892, %v3891
    %v3934 = vpack.c.b16 %v3894, %v3893
    %v3935 = vpack.c.b16 %v3896, %v3895
    %v3936 = vpack.c.b16 %v3898, %v3897
    %v3937 = vpack.c.b16 %v3900, %v3899
    %v3938 = vpack.c.b16 %v3902, %v3901
    %v3939 = vpack.c.b16 %v3904, %v3903
    %v3940 = vpack.c.b16 %v3906, %v3905
    %v3941 = vpack.c.b16 %v3908, %v3907
    %v3942 = vpack.c.b16 %v3910, %v3909
    %3975 = vmatpush.bf16.msra.mxu0 %v3918
    %3976 = vmatpush.bf16.msra.mxu0 %v3917
    %3977 = vmatpush.bf16.msra.mxu0 %v3916
    %3978 = vmatpush.bf16.msra.mxu0 %v3915
    %3979 = vmatpush.bf16.msra.mxu0 %v3914
    %3980 = vmatpush.bf16.msra.mxu0 %v3913
    %3981 = vmatpush.bf16.msra.mxu0 %v3912
    %3982 = vmatpush.bf16.msra.mxu0 %v3911
    %3983 = vmatmul.bf16.gmra.mxu0 %v3775
    %v3984 = vpop.f32.mrf.mxu0
    %v3985 = vadd.f32 %v3500, %v3984
    %v3986 = vpop.f32.mrf.mxu0
    %3987 = vdwg.mxu0
    %3988 = vmatpush.bf16.msra.mxu0 %v3926
    %3989 = vmatpush.bf16.msra.mxu0 %v3925
    %3990 = vmatpush.bf16.msra.mxu0 %v3924
    %3991 = vmatpush.bf16.msra.mxu0 %v3923
    %3992 = vmatpush.bf16.msra.mxu0 %v3922
    %3993 = vmatpush.bf16.msra.mxu0 %v3921
    %3994 = vmatpush.bf16.msra.mxu0 %v3920
    %3995 = vmatpush.bf16.msra.mxu0 %v3919
    %3996 = vmatmul.bf16.gmra.mxu0 %v3776
    %v3997 = vpop.f32.mrf.mxu0
    %v3998 = vadd.f32 %v3985, %v3997
    %v3999 = vpop.f32.mrf.mxu0
    %4000 = vdwg.mxu0
    %4001 = vmatpush.bf16.msra.mxu0 %v3934
    %4002 = vmatpush.bf16.msra.mxu0 %v3933
    %4003 = vmatpush.bf16.msra.mxu0 %v3932
    %4004 = vmatpush.bf16.msra.mxu0 %v3931
    %4005 = vmatpush.bf16.msra.mxu0 %v3930
    %4006 = vmatpush.bf16.msra.mxu0 %v3929
    %4007 = vmatpush.bf16.msra.mxu0 %v3928
    %4008 = vmatpush.bf16.msra.mxu0 %v3927
    %4009 = vmatmul.bf16.gmra.mxu0 %v3777
    %v4010 = vpop.f32.mrf.mxu0
    %v4011 = vadd.f32 %v3998, %v4010
    %v4012 = vpop.f32.mrf.mxu0
    %4013 = vdwg.mxu0
    %4014 = vmatpush.bf16.msra.mxu0 %v3942
    %4015 = vmatpush.bf16.msra.mxu0 %v3941
    %4016 = vmatpush.bf16.msra.mxu0 %v3940
    %4017 = vmatpush.bf16.msra.mxu0 %v3939
    %4018 = vmatpush.bf16.msra.mxu0 %v3938
    %4019 = vmatpush.bf16.msra.mxu0 %v3937
    %4020 = vmatpush.bf16.msra.mxu0 %v3936
    %4021 = vmatpush.bf16.msra.mxu0 %v3935
    %4022 = vmatmul.bf16.gmra.mxu0 %v3778
    %v4023 = vpop.f32.mrf.mxu0
    %v4024 = vadd.f32 %v4011, %v4023
    %v4025 = vpop.f32.mrf.mxu0
    %4026 = vdwg.mxu0
    %v4029 = vunpack.c.l.b16 %v3095
    %v4030 = vunpack.c.h.b16 %v3095
    %v4031 = vunpack.c.l.b16 %v3096
    %v4032 = vunpack.c.h.b16 %v3096
    %v4033 = vpack.c.b16 %v4029, %v4029
    %v4034 = vpack.c.b16 %v4030, %v4030
    %v4035 = vpack.c.b16 %v4031, %v4031
    %v4036 = vpack.c.b16 %v4032, %v4032
    %v4105 = vunpack.c.l.b16 %v3231
    %v4106 = vunpack.c.l.b16 %v3232
    %v4107 = vunpack.c.l.b16 %v3233
    %v4108 = vunpack.c.l.b16 %v3234
    %v4109 = vunpack.c.l.b16 %v3235
    %v4110 = vunpack.c.l.b16 %v3236
    %v4111 = vunpack.c.l.b16 %v3237
    %v4112 = vunpack.c.l.b16 %v3238
    %v4113 = vunpack.c.l.b16 %v3239
    %v4114 = vunpack.c.l.b16 %v3240
    %v4115 = vunpack.c.l.b16 %v3241
    %v4116 = vunpack.c.l.b16 %v3242
    %v4117 = vunpack.c.l.b16 %v3243
    %v4118 = vunpack.c.l.b16 %v3244
    %v4119 = vunpack.c.l.b16 %v3245
    %v4120 = vunpack.c.l.b16 %v3246
    %v4121 = vunpack.c.l.b16 %v3247
    %v4122 = vunpack.c.l.b16 %v3248
    %v4123 = vunpack.c.l.b16 %v3249
    %v4124 = vunpack.c.l.b16 %v3250
    %v4125 = vunpack.c.l.b16 %v3251
    %v4126 = vunpack.c.l.b16 %v3252
    %v4127 = vunpack.c.l.b16 %v3253
    %v4128 = vunpack.c.l.b16 %v3254
    %v4129 = vunpack.c.l.b16 %v3255
    %v4130 = vunpack.c.l.b16 %v3256
    %v4131 = vunpack.c.l.b16 %v3257
    %v4132 = vunpack.c.l.b16 %v3258
    %v4133 = vunpack.c.l.b16 %v3259
    %v4134 = vunpack.c.l.b16 %v3260
    %v4135 = vunpack.c.l.b16 %v3261
    %v4136 = vunpack.c.l.b16 %v3262
    %v4137 = vunpack.c.l.b16 %v3263
    %v4138 = vunpack.c.l.b16 %v3264
    %v4139 = vunpack.c.l.b16 %v3265
    %v4140 = vunpack.c.l.b16 %v3266
    %v4141 = vunpack.c.l.b16 %v3267
    %v4142 = vunpack.c.l.b16 %v3268
    %v4143 = vunpack.c.l.b16 %v3269
    %v4144 = vunpack.c.l.b16 %v3270
    %v4145 = vunpack.c.l.b16 %v3271
    %v4146 = vunpack.c.l.b16 %v3272
    %v4147 = vunpack.c.l.b16 %v3273
    %v4148 = vunpack.c.l.b16 %v3274
    %v4149 = vunpack.c.l.b16 %v3275
    %v4150 = vunpack.c.l.b16 %v3276
    %v4151 = vunpack.c.l.b16 %v3277
    %v4152 = vunpack.c.l.b16 %v3278
    %v4153 = vunpack.c.l.b16 %v3279
    %v4154 = vunpack.c.l.b16 %v3280
    %v4155 = vunpack.c.l.b16 %v3281
    %v4156 = vunpack.c.l.b16 %v3282
    %v4157 = vunpack.c.l.b16 %v3283
    %v4158 = vunpack.c.l.b16 %v3284
    %v4159 = vunpack.c.l.b16 %v3285
    %v4160 = vunpack.c.l.b16 %v3286
    %v4161 = vunpack.c.l.b16 %v3287
    %v4162 = vunpack.c.l.b16 %v3288
    %v4163 = vunpack.c.l.b16 %v3289
    %v4164 = vunpack.c.l.b16 %v3290
    %v4165 = vunpack.c.l.b16 %v3291
    %v4166 = vunpack.c.l.b16 %v3292
    %v4167 = vunpack.c.l.b16 %v3293
    %v4168 = vunpack.c.l.b16 %v3294
    %v4169 = vpack.c.b16 %v4106, %v4105
    %v4170 = vpack.c.b16 %v4108, %v4107
    %v4171 = vpack.c.b16 %v4110, %v4109
    %v4172 = vpack.c.b16 %v4112, %v4111
    %v4173 = vpack.c.b16 %v4114, %v4113
    %v4174 = vpack.c.b16 %v4116, %v4115
    %v4175 = vpack.c.b16 %v4118, %v4117
    %v4176 = vpack.c.b16 %v4120, %v4119
    %v4177 = vpack.c.b16 %v4122, %v4121
    %v4178 = vpack.c.b16 %v4124, %v4123
    %v4179 = vpack.c.b16 %v4126, %v4125
    %v4180 = vpack.c.b16 %v4128, %v4127
    %v4181 = vpack.c.b16 %v4130, %v4129
    %v4182 = vpack.c.b16 %v4132, %v4131
    %v4183 = vpack.c.b16 %v4134, %v4133
    %v4184 = vpack.c.b16 %v4136, %v4135
    %v4185 = vpack.c.b16 %v4138, %v4137
    %v4186 = vpack.c.b16 %v4140, %v4139
    %v4187 = vpack.c.b16 %v4142, %v4141
    %v4188 = vpack.c.b16 %v4144, %v4143
    %v4189 = vpack.c.b16 %v4146, %v4145
    %v4190 = vpack.c.b16 %v4148, %v4147
    %v4191 = vpack.c.b16 %v4150, %v4149
    %v4192 = vpack.c.b16 %v4152, %v4151
    %v4193 = vpack.c.b16 %v4154, %v4153
    %v4194 = vpack.c.b16 %v4156, %v4155
    %v4195 = vpack.c.b16 %v4158, %v4157
    %v4196 = vpack.c.b16 %v4160, %v4159
    %v4197 = vpack.c.b16 %v4162, %v4161
    %v4198 = vpack.c.b16 %v4164, %v4163
    %v4199 = vpack.c.b16 %v4166, %v4165
    %v4200 = vpack.c.b16 %v4168, %v4167
    %4233 = vmatpush.bf16.msra.mxu0 %v4176
    %4234 = vmatpush.bf16.msra.mxu0 %v4175
    %4235 = vmatpush.bf16.msra.mxu0 %v4174
    %4236 = vmatpush.bf16.msra.mxu0 %v4173
    %4237 = vmatpush.bf16.msra.mxu0 %v4172
    %4238 = vmatpush.bf16.msra.mxu0 %v4171
    %4239 = vmatpush.bf16.msra.mxu0 %v4170
    %4240 = vmatpush.bf16.msra.mxu0 %v4169
    %4241 = vmatmul.bf16.gmra.mxu0 %v4033
    %v4242 = vpop.f32.mrf.mxu0
    %v4243 = vadd.f32 %v3501, %v4242
    %v4244 = vpop.f32.mrf.mxu0
    %4245 = vdwg.mxu0
    %4246 = vmatpush.bf16.msra.mxu0 %v4184
    %4247 = vmatpush.bf16.msra.mxu0 %v4183
    %4248 = vmatpush.bf16.msra.mxu0 %v4182
    %4249 = vmatpush.bf16.msra.mxu0 %v4181
    %4250 = vmatpush.bf16.msra.mxu0 %v4180
    %4251 = vmatpush.bf16.msra.mxu0 %v4179
    %4252 = vmatpush.bf16.msra.mxu0 %v4178
    %4253 = vmatpush.bf16.msra.mxu0 %v4177
    %4254 = vmatmul.bf16.gmra.mxu0 %v4034
    %v4255 = vpop.f32.mrf.mxu0
    %v4256 = vadd.f32 %v4243, %v4255
    %v4257 = vpop.f32.mrf.mxu0
    %4258 = vdwg.mxu0
    %4259 = vmatpush.bf16.msra.mxu0 %v4192
    %4260 = vmatpush.bf16.msra.mxu0 %v4191
    %4261 = vmatpush.bf16.msra.mxu0 %v4190
    %4262 = vmatpush.bf16.msra.mxu0 %v4189
    %4263 = vmatpush.bf16.msra.mxu0 %v4188
    %4264 = vmatpush.bf16.msra.mxu0 %v4187
    %4265 = vmatpush.bf16.msra.mxu0 %v4186
    %4266 = vmatpush.bf16.msra.mxu0 %v4185
    %4267 = vmatmul.bf16.gmra.mxu0 %v4035
    %v4268 = vpop.f32.mrf.mxu0
    %v4269 = vadd.f32 %v4256, %v4268
    %v4270 = vpop.f32.mrf.mxu0
    %4271 = vdwg.mxu0
    %4272 = vmatpush.bf16.msra.mxu0 %v4200
    %4273 = vmatpush.bf16.msra.mxu0 %v4199
    %4274 = vmatpush.bf16.msra.mxu0 %v4198
    %4275 = vmatpush.bf16.msra.mxu0 %v4197
    %4276 = vmatpush.bf16.msra.mxu0 %v4196
    %4277 = vmatpush.bf16.msra.mxu0 %v4195
    %4278 = vmatpush.bf16.msra.mxu0 %v4194
    %4279 = vmatpush.bf16.msra.mxu0 %v4193
    %4280 = vmatmul.bf16.gmra.mxu0 %v4036
    %v4281 = vpop.f32.mrf.mxu0
    %v4282 = vadd.f32 %v4269, %v4281
    %v4283 = vpop.f32.mrf.mxu0
    %4284 = vdwg.mxu0
    %v4287 = vunpack.c.l.b16 %v3097
    %v4288 = vunpack.c.h.b16 %v3097
    %v4289 = vunpack.c.l.b16 %v3098
    %v4290 = vunpack.c.h.b16 %v3098
    %v4291 = vpack.c.b16 %v4287, %v4287
    %v4292 = vpack.c.b16 %v4288, %v4288
    %v4293 = vpack.c.b16 %v4289, %v4289
    %v4294 = vpack.c.b16 %v4290, %v4290
    %v4363 = vunpack.c.l.b16 %v3295
    %v4364 = vunpack.c.l.b16 %v3296
    %v4365 = vunpack.c.l.b16 %v3297
    %v4366 = vunpack.c.l.b16 %v3298
    %v4367 = vunpack.c.l.b16 %v3299
    %v4368 = vunpack.c.l.b16 %v3300
    %v4369 = vunpack.c.l.b16 %v3301
    %v4370 = vunpack.c.l.b16 %v3302
    %v4371 = vunpack.c.l.b16 %v3303
    %v4372 = vunpack.c.l.b16 %v3304
    %v4373 = vunpack.c.l.b16 %v3305
    %v4374 = vunpack.c.l.b16 %v3306
    %v4375 = vunpack.c.l.b16 %v3307
    %v4376 = vunpack.c.l.b16 %v3308
    %v4377 = vunpack.c.l.b16 %v3309
    %v4378 = vunpack.c.l.b16 %v3310
    %v4379 = vunpack.c.l.b16 %v3311
    %v4380 = vunpack.c.l.b16 %v3312
    %v4381 = vunpack.c.l.b16 %v3313
    %v4382 = vunpack.c.l.b16 %v3314
    %v4383 = vunpack.c.l.b16 %v3315
    %v4384 = vunpack.c.l.b16 %v3316
    %v4385 = vunpack.c.l.b16 %v3317
    %v4386 = vunpack.c.l.b16 %v3318
    %v4387 = vunpack.c.l.b16 %v3319
    %v4388 = vunpack.c.l.b16 %v3320
    %v4389 = vunpack.c.l.b16 %v3321
    %v4390 = vunpack.c.l.b16 %v3322
    %v4391 = vunpack.c.l.b16 %v3323
    %v4392 = vunpack.c.l.b16 %v3324
    %v4393 = vunpack.c.l.b16 %v3325
    %v4394 = vunpack.c.l.b16 %v3326
    %v4395 = vunpack.c.l.b16 %v3327
    %v4396 = vunpack.c.l.b16 %v3328
    %v4397 = vunpack.c.l.b16 %v3329
    %v4398 = vunpack.c.l.b16 %v3330
    %v4399 = vunpack.c.l.b16 %v3331
    %v4400 = vunpack.c.l.b16 %v3332
    %v4401 = vunpack.c.l.b16 %v3333
    %v4402 = vunpack.c.l.b16 %v3334
    %v4403 = vunpack.c.l.b16 %v3335
    %v4404 = vunpack.c.l.b16 %v3336
    %v4405 = vunpack.c.l.b16 %v3337
    %v4406 = vunpack.c.l.b16 %v3338
    %v4407 = vunpack.c.l.b16 %v3339
    %v4408 = vunpack.c.l.b16 %v3340
    %v4409 = vunpack.c.l.b16 %v3341
    %v4410 = vunpack.c.l.b16 %v3342
    %v4411 = vunpack.c.l.b16 %v3343
    %v4412 = vunpack.c.l.b16 %v3344
    %v4413 = vunpack.c.l.b16 %v3345
    %v4414 = vunpack.c.l.b16 %v3346
    %v4415 = vunpack.c.l.b16 %v3347
    %v4416 = vunpack.c.l.b16 %v3348
    %v4417 = vunpack.c.l.b16 %v3349
    %v4418 = vunpack.c.l.b16 %v3350
    %v4419 = vunpack.c.l.b16 %v3351
    %v4420 = vunpack.c.l.b16 %v3352
    %v4421 = vunpack.c.l.b16 %v3353
    %v4422 = vunpack.c.l.b16 %v3354
    %v4423 = vunpack.c.l.b16 %v3355
    %v4424 = vunpack.c.l.b16 %v3356
    %v4425 = vunpack.c.l.b16 %v3357
    %v4426 = vunpack.c.l.b16 %v3358
    %v4427 = vpack.c.b16 %v4364, %v4363
    %v4428 = vpack.c.b16 %v4366, %v4365
    %v4429 = vpack.c.b16 %v4368, %v4367
    %v4430 = vpack.c.b16 %v4370, %v4369
    %v4431 = vpack.c.b16 %v4372, %v4371
    %v4432 = vpack.c.b16 %v4374, %v4373
    %v4433 = vpack.c.b16 %v4376, %v4375
    %v4434 = vpack.c.b16 %v4378, %v4377
    %v4435 = vpack.c.b16 %v4380, %v4379
    %v4436 = vpack.c.b16 %v4382, %v4381
    %v4437 = vpack.c.b16 %v4384, %v4383
    %v4438 = vpack.c.b16 %v4386, %v4385
    %v4439 = vpack.c.b16 %v4388, %v4387
    %v4440 = vpack.c.b16 %v4390, %v4389
    %v4441 = vpack.c.b16 %v4392, %v4391
    %v4442 = vpack.c.b16 %v4394, %v4393
    %v4443 = vpack.c.b16 %v4396, %v4395
    %v4444 = vpack.c.b16 %v4398, %v4397
    %v4445 = vpack.c.b16 %v4400, %v4399
    %v4446 = vpack.c.b16 %v4402, %v4401
    %v4447 = vpack.c.b16 %v4404, %v4403
    %v4448 = vpack.c.b16 %v4406, %v4405
    %v4449 = vpack.c.b16 %v4408, %v4407
    %v4450 = vpack.c.b16 %v4410, %v4409
    %v4451 = vpack.c.b16 %v4412, %v4411
    %v4452 = vpack.c.b16 %v4414, %v4413
    %v4453 = vpack.c.b16 %v4416, %v4415
    %v4454 = vpack.c.b16 %v4418, %v4417
    %v4455 = vpack.c.b16 %v4420, %v4419
    %v4456 = vpack.c.b16 %v4422, %v4421
    %v4457 = vpack.c.b16 %v4424, %v4423
    %v4458 = vpack.c.b16 %v4426, %v4425
    %4491 = vmatpush.bf16.msra.mxu0 %v4434
    %4492 = vmatpush.bf16.msra.mxu0 %v4433
    %4493 = vmatpush.bf16.msra.mxu0 %v4432
    %4494 = vmatpush.bf16.msra.mxu0 %v4431
    %4495 = vmatpush.bf16.msra.mxu0 %v4430
    %4496 = vmatpush.bf16.msra.mxu0 %v4429
    %4497 = vmatpush.bf16.msra.mxu0 %v4428
    %4498 = vmatpush.bf16.msra.mxu0 %v4427
    %4499 = vmatmul.bf16.gmra.mxu0 %v4291
    %v4500 = vpop.f32.mrf.mxu0
    %v4501 = vadd.f32 %v3502, %v4500
    %v4502 = vpop.f32.mrf.mxu0
    %4503 = vdwg.mxu0
    %4504 = vmatpush.bf16.msra.mxu0 %v4442
    %4505 = vmatpush.bf16.msra.mxu0 %v4441
    %4506 = vmatpush.bf16.msra.mxu0 %v4440
    %4507 = vmatpush.bf16.msra.mxu0 %v4439
    %4508 = vmatpush.bf16.msra.mxu0 %v4438
    %4509 = vmatpush.bf16.msra.mxu0 %v4437
    %4510 = vmatpush.bf16.msra.mxu0 %v4436
    %4511 = vmatpush.bf16.msra.mxu0 %v4435
    %4512 = vmatmul.bf16.gmra.mxu0 %v4292
    %v4513 = vpop.f32.mrf.mxu0
    %v4514 = vadd.f32 %v4501, %v4513
    %v4515 = vpop.f32.mrf.mxu0
    %4516 = vdwg.mxu0
    %4517 = vmatpush.bf16.msra.mxu0 %v4450
    %4518 = vmatpush.bf16.msra.mxu0 %v4449
    %4519 = vmatpush.bf16.msra.mxu0 %v4448
    %4520 = vmatpush.bf16.msra.mxu0 %v4447
    %4521 = vmatpush.bf16.msra.mxu0 %v4446
    %4522 = vmatpush.bf16.msra.mxu0 %v4445
    %4523 = vmatpush.bf16.msra.mxu0 %v4444
    %4524 = vmatpush.bf16.msra.mxu0 %v4443
    %4525 = vmatmul.bf16.gmra.mxu0 %v4293
    %v4526 = vpop.f32.mrf.mxu0
    %v4527 = vadd.f32 %v4514, %v4526
    %v4528 = vpop.f32.mrf.mxu0
    %4529 = vdwg.mxu0
    %4530 = vmatpush.bf16.msra.mxu0 %v4458
    %4531 = vmatpush.bf16.msra.mxu0 %v4457
    %4532 = vmatpush.bf16.msra.mxu0 %v4456
    %4533 = vmatpush.bf16.msra.mxu0 %v4455
    %4534 = vmatpush.bf16.msra.mxu0 %v4454
    %4535 = vmatpush.bf16.msra.mxu0 %v4453
    %4536 = vmatpush.bf16.msra.mxu0 %v4452
    %4537 = vmatpush.bf16.msra.mxu0 %v4451
    %4538 = vmatmul.bf16.gmra.mxu0 %v4294
    %v4539 = vpop.f32.mrf.mxu0
    %v4540 = vadd.f32 %v4527, %v4539
    %v4541 = vpop.f32.mrf.mxu0
    %4542 = vdwg.mxu0
    %v4545 = vunpack.c.l.b16 %v3099
    %v4546 = vunpack.c.h.b16 %v3099
    %v4547 = vunpack.c.l.b16 %v3100
    %v4548 = vunpack.c.h.b16 %v3100
    %v4549 = vpack.c.b16 %v4545, %v4545
    %v4550 = vpack.c.b16 %v4546, %v4546
    %v4551 = vpack.c.b16 %v4547, %v4547
    %v4552 = vpack.c.b16 %v4548, %v4548
    %v4621 = vunpack.c.l.b16 %v3359
    %v4622 = vunpack.c.l.b16 %v3360
    %v4623 = vunpack.c.l.b16 %v3361
    %v4624 = vunpack.c.l.b16 %v3362
    %v4625 = vunpack.c.l.b16 %v3363
    %v4626 = vunpack.c.l.b16 %v3364
    %v4627 = vunpack.c.l.b16 %v3365
    %v4628 = vunpack.c.l.b16 %v3366
    %v4629 = vunpack.c.l.b16 %v3367
    %v4630 = vunpack.c.l.b16 %v3368
    %v4631 = vunpack.c.l.b16 %v3369
    %v4632 = vunpack.c.l.b16 %v3370
    %v4633 = vunpack.c.l.b16 %v3371
    %v4634 = vunpack.c.l.b16 %v3372
    %v4635 = vunpack.c.l.b16 %v3373
    %v4636 = vunpack.c.l.b16 %v3374
    %v4637 = vunpack.c.l.b16 %v3375
    %v4638 = vunpack.c.l.b16 %v3376
    %v4639 = vunpack.c.l.b16 %v3377
    %v4640 = vunpack.c.l.b16 %v3378
    %v4641 = vunpack.c.l.b16 %v3379
    %v4642 = vunpack.c.l.b16 %v3380
    %v4643 = vunpack.c.l.b16 %v3381
    %v4644 = vunpack.c.l.b16 %v3382
    %v4645 = vunpack.c.l.b16 %v3383
    %v4646 = vunpack.c.l.b16 %v3384
    %v4647 = vunpack.c.l.b16 %v3385
    %v4648 = vunpack.c.l.b16 %v3386
    %v4649 = vunpack.c.l.b16 %v3387
    %v4650 = vunpack.c.l.b16 %v3388
    %v4651 = vunpack.c.l.b16 %v3389
    %v4652 = vunpack.c.l.b16 %v3390
    %v4653 = vunpack.c.l.b16 %v3391
    %v4654 = vunpack.c.l.b16 %v3392
    %v4655 = vunpack.c.l.b16 %v3393
    %v4656 = vunpack.c.l.b16 %v3394
    %v4657 = vunpack.c.l.b16 %v3395
    %v4658 = vunpack.c.l.b16 %v3396
    %v4659 = vunpack.c.l.b16 %v3397
    %v4660 = vunpack.c.l.b16 %v3398
    %v4661 = vunpack.c.l.b16 %v3399
    %v4662 = vunpack.c.l.b16 %v3400
    %v4663 = vunpack.c.l.b16 %v3401
    %v4664 = vunpack.c.l.b16 %v3402
    %v4665 = vunpack.c.l.b16 %v3403
    %v4666 = vunpack.c.l.b16 %v3404
    %v4667 = vunpack.c.l.b16 %v3405
    %v4668 = vunpack.c.l.b16 %v3406
    %v4669 = vunpack.c.l.b16 %v3407
    %v4670 = vunpack.c.l.b16 %v3408
    %v4671 = vunpack.c.l.b16 %v3409
    %v4672 = vunpack.c.l.b16 %v3410
    %v4673 = vunpack.c.l.b16 %v3411
    %v4674 = vunpack.c.l.b16 %v3412
    %v4675 = vunpack.c.l.b16 %v3413
    %v4676 = vunpack.c.l.b16 %v3414
    %v4677 = vunpack.c.l.b16 %v3415
    %v4678 = vunpack.c.l.b16 %v3416
    %v4679 = vunpack.c.l.b16 %v3417
    %v4680 = vunpack.c.l.b16 %v3418
    %v4681 = vunpack.c.l.b16 %v3419
    %v4682 = vunpack.c.l.b16 %v3420
    %v4683 = vunpack.c.l.b16 %v3421
    %v4684 = vunpack.c.l.b16 %v3422
    %v4685 = vpack.c.b16 %v4622, %v4621
    %v4686 = vpack.c.b16 %v4624, %v4623
    %v4687 = vpack.c.b16 %v4626, %v4625
    %v4688 = vpack.c.b16 %v4628, %v4627
    %v4689 = vpack.c.b16 %v4630, %v4629
    %v4690 = vpack.c.b16 %v4632, %v4631
    %v4691 = vpack.c.b16 %v4634, %v4633
    %v4692 = vpack.c.b16 %v4636, %v4635
    %v4693 = vpack.c.b16 %v4638, %v4637
    %v4694 = vpack.c.b16 %v4640, %v4639
    %v4695 = vpack.c.b16 %v4642, %v4641
    %v4696 = vpack.c.b16 %v4644, %v4643
    %v4697 = vpack.c.b16 %v4646, %v4645
    %v4698 = vpack.c.b16 %v4648, %v4647
    %v4699 = vpack.c.b16 %v4650, %v4649
    %v4700 = vpack.c.b16 %v4652, %v4651
    %v4701 = vpack.c.b16 %v4654, %v4653
    %v4702 = vpack.c.b16 %v4656, %v4655
    %v4703 = vpack.c.b16 %v4658, %v4657
    %v4704 = vpack.c.b16 %v4660, %v4659
    %v4705 = vpack.c.b16 %v4662, %v4661
    %v4706 = vpack.c.b16 %v4664, %v4663
    %v4707 = vpack.c.b16 %v4666, %v4665
    %v4708 = vpack.c.b16 %v4668, %v4667
    %v4709 = vpack.c.b16 %v4670, %v4669
    %v4710 = vpack.c.b16 %v4672, %v4671
    %v4711 = vpack.c.b16 %v4674, %v4673
    %v4712 = vpack.c.b16 %v4676, %v4675
    %v4713 = vpack.c.b16 %v4678, %v4677
    %v4714 = vpack.c.b16 %v4680, %v4679
    %v4715 = vpack.c.b16 %v4682, %v4681
    %v4716 = vpack.c.b16 %v4684, %v4683
    %4749 = vmatpush.bf16.msra.mxu0 %v4692
    %4750 = vmatpush.bf16.msra.mxu0 %v4691
    %4751 = vmatpush.bf16.msra.mxu0 %v4690
    %4752 = vmatpush.bf16.msra.mxu0 %v4689
    %4753 = vmatpush.bf16.msra.mxu0 %v4688
    %4754 = vmatpush.bf16.msra.mxu0 %v4687
    %4755 = vmatpush.bf16.msra.mxu0 %v4686
    %4756 = vmatpush.bf16.msra.mxu0 %v4685
    %4757 = vmatmul.bf16.gmra.mxu0 %v4549
    %v4758 = vpop.f32.mrf.mxu0
    %v4759 = vadd.f32 %v3503, %v4758
    %v4760 = vpop.f32.mrf.mxu0
    %4761 = vdwg.mxu0
    %4762 = vmatpush.bf16.msra.mxu0 %v4700
    %4763 = vmatpush.bf16.msra.mxu0 %v4699
    %4764 = vmatpush.bf16.msra.mxu0 %v4698
    %4765 = vmatpush.bf16.msra.mxu0 %v4697
    %4766 = vmatpush.bf16.msra.mxu0 %v4696
    %4767 = vmatpush.bf16.msra.mxu0 %v4695
    %4768 = vmatpush.bf16.msra.mxu0 %v4694
    %4769 = vmatpush.bf16.msra.mxu0 %v4693
    %4770 = vmatmul.bf16.gmra.mxu0 %v4550
    %v4771 = vpop.f32.mrf.mxu0
    %v4772 = vadd.f32 %v4759, %v4771
    %v4773 = vpop.f32.mrf.mxu0
    %4774 = vdwg.mxu0
    %4775 = vmatpush.bf16.msra.mxu0 %v4708
    %4776 = vmatpush.bf16.msra.mxu0 %v4707
    %4777 = vmatpush.bf16.msra.mxu0 %v4706
    %4778 = vmatpush.bf16.msra.mxu0 %v4705
    %4779 = vmatpush.bf16.msra.mxu0 %v4704
    %4780 = vmatpush.bf16.msra.mxu0 %v4703
    %4781 = vmatpush.bf16.msra.mxu0 %v4702
    %4782 = vmatpush.bf16.msra.mxu0 %v4701
    %4783 = vmatmul.bf16.gmra.mxu0 %v4551
    %v4784 = vpop.f32.mrf.mxu0
    %v4785 = vadd.f32 %v4772, %v4784
    %v4786 = vpop.f32.mrf.mxu0
    %4787 = vdwg.mxu0
    %4788 = vmatpush.bf16.msra.mxu0 %v4716
    %4789 = vmatpush.bf16.msra.mxu0 %v4715
    %4790 = vmatpush.bf16.msra.mxu0 %v4714
    %4791 = vmatpush.bf16.msra.mxu0 %v4713
    %4792 = vmatpush.bf16.msra.mxu0 %v4712
    %4793 = vmatpush.bf16.msra.mxu0 %v4711
    %4794 = vmatpush.bf16.msra.mxu0 %v4710
    %4795 = vmatpush.bf16.msra.mxu0 %v4709
    %4796 = vmatmul.bf16.gmra.mxu0 %v4552
    %v4797 = vpop.f32.mrf.mxu0
    %v4798 = vadd.f32 %v4785, %v4797
    %v4799 = vpop.f32.mrf.mxu0
    %4800 = vdwg.mxu0
    %v4803 = vunpack.c.l.b16 %v3101
    %v4804 = vunpack.c.h.b16 %v3101
    %v4805 = vunpack.c.l.b16 %v3102
    %v4806 = vunpack.c.h.b16 %v3102
    %v4807 = vpack.c.b16 %v4803, %v4803
    %v4808 = vpack.c.b16 %v4804, %v4804
    %v4809 = vpack.c.b16 %v4805, %v4805
    %v4810 = vpack.c.b16 %v4806, %v4806
    %v4879 = vunpack.c.l.b16 %v3423
    %v4880 = vunpack.c.l.b16 %v3424
    %v4881 = vunpack.c.l.b16 %v3425
    %v4882 = vunpack.c.l.b16 %v3426
    %v4883 = vunpack.c.l.b16 %v3427
    %v4884 = vunpack.c.l.b16 %v3428
    %v4885 = vunpack.c.l.b16 %v3429
    %v4886 = vunpack.c.l.b16 %v3430
    %v4887 = vunpack.c.l.b16 %v3431
    %v4888 = vunpack.c.l.b16 %v3432
    %v4889 = vunpack.c.l.b16 %v3433
    %v4890 = vunpack.c.l.b16 %v3434
    %v4891 = vunpack.c.l.b16 %v3435
    %v4892 = vunpack.c.l.b16 %v3436
    %v4893 = vunpack.c.l.b16 %v3437
    %v4894 = vunpack.c.l.b16 %v3438
    %v4895 = vunpack.c.l.b16 %v3439
    %v4896 = vunpack.c.l.b16 %v3440
    %v4897 = vunpack.c.l.b16 %v3441
    %v4898 = vunpack.c.l.b16 %v3442
    %v4899 = vunpack.c.l.b16 %v3443
    %v4900 = vunpack.c.l.b16 %v3444
    %v4901 = vunpack.c.l.b16 %v3445
    %v4902 = vunpack.c.l.b16 %v3446
    %v4903 = vunpack.c.l.b16 %v3447
    %v4904 = vunpack.c.l.b16 %v3448
    %v4905 = vunpack.c.l.b16 %v3449
    %v4906 = vunpack.c.l.b16 %v3450
    %v4907 = vunpack.c.l.b16 %v3451
    %v4908 = vunpack.c.l.b16 %v3452
    %v4909 = vunpack.c.l.b16 %v3453
    %v4910 = vunpack.c.l.b16 %v3454
    %v4911 = vunpack.c.l.b16 %v3455
    %v4912 = vunpack.c.l.b16 %v3456
    %v4913 = vunpack.c.l.b16 %v3457
    %v4914 = vunpack.c.l.b16 %v3458
    %v4915 = vunpack.c.l.b16 %v3459
    %v4916 = vunpack.c.l.b16 %v3460
    %v4917 = vunpack.c.l.b16 %v3461
    %v4918 = vunpack.c.l.b16 %v3462
    %v4919 = vunpack.c.l.b16 %v3463
    %v4920 = vunpack.c.l.b16 %v3464
    %v4921 = vunpack.c.l.b16 %v3465
    %v4922 = vunpack.c.l.b16 %v3466
    %v4923 = vunpack.c.l.b16 %v3467
    %v4924 = vunpack.c.l.b16 %v3468
    %v4925 = vunpack.c.l.b16 %v3469
    %v4926 = vunpack.c.l.b16 %v3470
    %v4927 = vunpack.c.l.b16 %v3471
    %v4928 = vunpack.c.l.b16 %v3472
    %v4929 = vunpack.c.l.b16 %v3473
    %v4930 = vunpack.c.l.b16 %v3474
    %v4931 = vunpack.c.l.b16 %v3475
    %v4932 = vunpack.c.l.b16 %v3476
    %v4933 = vunpack.c.l.b16 %v3477
    %v4934 = vunpack.c.l.b16 %v3478
    %v4935 = vunpack.c.l.b16 %v3479
    %v4936 = vunpack.c.l.b16 %v3480
    %v4937 = vunpack.c.l.b16 %v3481
    %v4938 = vunpack.c.l.b16 %v3482
    %v4939 = vunpack.c.l.b16 %v3483
    %v4940 = vunpack.c.l.b16 %v3484
    %v4941 = vunpack.c.l.b16 %v3485
    %v4942 = vunpack.c.l.b16 %v3486
    %v4943 = vpack.c.b16 %v4880, %v4879
    %v4944 = vpack.c.b16 %v4882, %v4881
    %v4945 = vpack.c.b16 %v4884, %v4883
    %v4946 = vpack.c.b16 %v4886, %v4885
    %v4947 = vpack.c.b16 %v4888, %v4887
    %v4948 = vpack.c.b16 %v4890, %v4889
    %v4949 = vpack.c.b16 %v4892, %v4891
    %v4950 = vpack.c.b16 %v4894, %v4893
    %v4951 = vpack.c.b16 %v4896, %v4895
    %v4952 = vpack.c.b16 %v4898, %v4897
    %v4953 = vpack.c.b16 %v4900, %v4899
    %v4954 = vpack.c.b16 %v4902, %v4901
    %v4955 = vpack.c.b16 %v4904, %v4903
    %v4956 = vpack.c.b16 %v4906, %v4905
    %v4957 = vpack.c.b16 %v4908, %v4907
    %v4958 = vpack.c.b16 %v4910, %v4909
    %v4959 = vpack.c.b16 %v4912, %v4911
    %v4960 = vpack.c.b16 %v4914, %v4913
    %v4961 = vpack.c.b16 %v4916, %v4915
    %v4962 = vpack.c.b16 %v4918, %v4917
    %v4963 = vpack.c.b16 %v4920, %v4919
    %v4964 = vpack.c.b16 %v4922, %v4921
    %v4965 = vpack.c.b16 %v4924, %v4923
    %v4966 = vpack.c.b16 %v4926, %v4925
    %v4967 = vpack.c.b16 %v4928, %v4927
    %v4968 = vpack.c.b16 %v4930, %v4929
    %v4969 = vpack.c.b16 %v4932, %v4931
    %v4970 = vpack.c.b16 %v4934, %v4933
    %v4971 = vpack.c.b16 %v4936, %v4935
    %v4972 = vpack.c.b16 %v4938, %v4937
    %v4973 = vpack.c.b16 %v4940, %v4939
    %v4974 = vpack.c.b16 %v4942, %v4941
    %5007 = vmatpush.bf16.msra.mxu0 %v4950
    %5008 = vmatpush.bf16.msra.mxu0 %v4949
    %5009 = vmatpush.bf16.msra.mxu0 %v4948
    %5010 = vmatpush.bf16.msra.mxu0 %v4947
    %5011 = vmatpush.bf16.msra.mxu0 %v4946
    %5012 = vmatpush.bf16.msra.mxu0 %v4945
    %5013 = vmatpush.bf16.msra.mxu0 %v4944
    %5014 = vmatpush.bf16.msra.mxu0 %v4943
    %5015 = vmatmul.bf16.gmra.mxu0 %v4807
    %v5016 = vpop.f32.mrf.mxu0
    %v5017 = vadd.f32 %v3504, %v5016
    %v5018 = vpop.f32.mrf.mxu0
    %5019 = vdwg.mxu0
    %5020 = vmatpush.bf16.msra.mxu0 %v4958
    %5021 = vmatpush.bf16.msra.mxu0 %v4957
    %5022 = vmatpush.bf16.msra.mxu0 %v4956
    %5023 = vmatpush.bf16.msra.mxu0 %v4955
    %5024 = vmatpush.bf16.msra.mxu0 %v4954
    %5025 = vmatpush.bf16.msra.mxu0 %v4953
    %5026 = vmatpush.bf16.msra.mxu0 %v4952
    %5027 = vmatpush.bf16.msra.mxu0 %v4951
    %5028 = vmatmul.bf16.gmra.mxu0 %v4808
    %v5029 = vpop.f32.mrf.mxu0
    %v5030 = vadd.f32 %v5017, %v5029
    %v5031 = vpop.f32.mrf.mxu0
    %5032 = vdwg.mxu0
    %5033 = vmatpush.bf16.msra.mxu0 %v4966
    %5034 = vmatpush.bf16.msra.mxu0 %v4965
    %5035 = vmatpush.bf16.msra.mxu0 %v4964
    %5036 = vmatpush.bf16.msra.mxu0 %v4963
    %5037 = vmatpush.bf16.msra.mxu0 %v4962
    %5038 = vmatpush.bf16.msra.mxu0 %v4961
    %5039 = vmatpush.bf16.msra.mxu0 %v4960
    %5040 = vmatpush.bf16.msra.mxu0 %v4959
    %5041 = vmatmul.bf16.gmra.mxu0 %v4809
    %v5042 = vpop.f32.mrf.mxu0
    %v5043 = vadd.f32 %v5030, %v5042
    %v5044 = vpop.f32.mrf.mxu0
    %5045 = vdwg.mxu0
    %5046 = vmatpush.bf16.msra.mxu0 %v4974
    %5047 = vmatpush.bf16.msra.mxu0 %v4973
    %5048 = vmatpush.bf16.msra.mxu0 %v4972
    %5049 = vmatpush.bf16.msra.mxu0 %v4971
    %5050 = vmatpush.bf16.msra.mxu0 %v4970
    %5051 = vmatpush.bf16.msra.mxu0 %v4969
    %5052 = vmatpush.bf16.msra.mxu0 %v4968
    %5053 = vmatpush.bf16.msra.mxu0 %v4967
    %5054 = vmatmul.bf16.gmra.mxu0 %v4810
    %v5055 = vpop.f32.mrf.mxu0
    %v5056 = vadd.f32 %v5043, %v5055
    %v5057 = vpop.f32.mrf.mxu0
    %5058 = vdwg.mxu0
    %5059 = vst [vmem:[%s8] sm:$0xff] %v3766
    %5060 = vst [vmem:[%s8 + $0x8] sm:$0xff] %v4024
    %5061 = vst [vmem:[%s8 + $0x10] sm:$0xff] %v4282
    %5062 = vst [vmem:[%s8 + $0x18] sm:$0xff] %v4540
    %5063 = vst [vmem:[%s8 + $0x20] sm:$0xff] %v4798
    %5064 = vst [vmem:[%s8 + $0x28] sm:$0xff] %v5056
    // Predicated region
    $region42: #{_lambda_.1} parent=1 // pred_check
      _
    $region43: #{_lambda_.1} parent=1 // pred_check_branch
      %5066 = sbr.rel (0) target = $region45
    $region44: #{_lambda_.1} parent=1 // pred_region
      _
    $region45: #{_lambda_.1} parent=1 // pred_fallthru
      _
    // Predicated region
    $region46: #{_lambda_.1} parent=1 // pred_check
      _
    $region47: #{_lambda_.1} parent=1 // pred_check_branch
      %5068 = sbr.rel (0) target = $region49
    $region48: #{_lambda_.1} parent=1 // pred_region
      _
    $region49: #{_lambda_.1} parent=1 // pred_fallthru
      _
    // Predicated region
    $region50: #{_lambda_.1} parent=1 // pred_check
      _
    $region51: #{_lambda_.1} parent=1 // pred_check_branch
      %5070 = sbr.rel (0) target = $region53
    $region52: #{_lambda_.1} parent=1 // pred_region
      _
    $region53: #{_lambda_.1} parent=1 // pred_fallthru
      _
    // Predicated region
    $region54: #{_lambda_.1} parent=1 // pred_check
      _
    $region55: #{_lambda_.1} parent=1 // pred_check_branch
      %5072 = sbr.rel (0) target = $region57
    $region56: #{_lambda_.1} parent=1 // pred_region
      _
    $region57: #{_lambda_.1} parent=1 // pred_fallthru
      _
    // Predicated region
    $region58: #{_lambda_.1} parent=1 // pred_check
      _
    $region59: #{_lambda_.1} parent=1 // pred_check_branch
      %5074 = sbr.rel (0) target = $region61
    $region60: #{_lambda_.1} parent=1 // pred_region
      _
    $region61: #{_lambda_.1} parent=1 // pred_fallthru
      _
    // Predicated region
    $region62: #{_lambda_.1} parent=1 // pred_check
      _
    $region63: #{_lambda_.1} parent=1 // pred_check_branch
      %5076 = sbr.rel (0) target = $region65
    $region64: #{_lambda_.1} parent=1 // pred_region
      _
    $region65: #{_lambda_.1} parent=1 // pred_fallthru
      _
    %5077 = vsyncpa [#allocation3], 1
    %5078 = vsyncpa [#allocation5], 1

</llo_original>
